<compile_context>
chip_gen: v7x
topology: tpu7x:2x2x1
jax: 0.10.0
libtpu: 0.0.40
codegen_flags: <defaults>
</compile_context>

<pallas_src>
import numpy as np

import jax
import jax.numpy as jnp
from jax import lax
from jax.experimental import pallas as pl
from jax.experimental.pallas import tpu as pltpu

BN_EPS = 1e-5
LANE = 128
SUB_BF16 = 16          # bf16 sublane tile -> channel padding unit


def _rup(x, m):
    return ((x + m - 1) // m) * m


# ----------------------------- static geometry ------------------------------ #

def _geom(n, ho, wo):
    """Layout constants for one spatial resolution.

    Activations are stored as (Cpad, n*hp*wp + 2*g): each image is a zero-padded
    hp x wp map flattened along lanes; `g` lanes of zero slack on each side make
    every 3x3 tap a static, in-bounds lane slice.  g is a multiple of 128 so
    interior stores are lane-aligned.
    """
    hp, wp = ho + 2, wo + 2
    seg = hp * wp
    g = _rup(wp + 1, LANE)
    return dict(n=n, ho=ho, wo=wo, hp=hp, wp=wp, seg=seg, nl=n * seg, g=g)


def _interior_mask(g):
    m = np.zeros((g['n'], g['hp'], g['wp']), np.float32)
    m[:, 1:1 + g['ho'], 1:1 + g['wo']] = 1.0
    return jnp.asarray(m.reshape(1, g['nl']))


def _downsample_matrix(ga, gb):
    """0/1 matrix S (bf16, exact): (C, ga.nl) @ S picks pixels (2h, 2w) of ga's
    interior into gb's interior layout (stride-2 subsample; borders -> zero)."""
    s = np.zeros((ga['nl'], gb['nl']), np.float32)
    for n in range(ga['n']):
        for h in range(gb['ho']):
            for w in range(gb['wo']):
                p_src = n * ga['seg'] + (2 * h + 1) * ga['wp'] + (2 * w + 1)
                p_dst = n * gb['seg'] + (h + 1) * gb['wp'] + (w + 1)
                s[p_src, p_dst] = 1.0
    return jnp.asarray(s, dtype=jnp.bfloat16)


def _pool_matrix(g):
    """(nl, n) bf16 matrix so that feat (C, nl) @ P = per-image spatial mean."""
    p = np.zeros((g['nl'], g['n']), np.float32)
    inv = 1.0 / (g['ho'] * g['wo'])
    for n in range(g['n']):
        for h in range(g['ho']):
            for w in range(g['wo']):
                p[n * g['seg'] + (h + 1) * g['wp'] + (w + 1), n] = inv
    return jnp.asarray(p, dtype=jnp.bfloat16)


def _pack_input(x, g, rows):
    """(N, 3, H, W) -> (rows, nl + 2*g) bf16 flattened zero-padded layout."""
    n, c, _, _ = x.shape
    xp = jnp.pad(x, ((0, 0), (0, 0), (1, 1), (1, 1)))
    flat = jnp.transpose(xp, (1, 0, 2, 3)).reshape(c, g['nl'])
    flat = jnp.pad(flat, ((0, rows - c), (g['g'], g['g'])))
    return flat.astype(jnp.bfloat16)


def _fold_pack_convs(conv_list, rmax, kmax):
    """Fold inference BN into conv weights and pack EVERY conv of the network
    into one bf16 taps array (n_convs*rmax, kmax) and one f32 bias array
    (n_convs*rmax, 1).

    Conv j's folded taps occupy rows [j*rmax, j*rmax+Cout) and column
    (tap_i*kw + tap_j)*cp_src + cin; every padded row/column is zero, so the
    channel-pad rows of the stacked window contribute nothing to the matmul.
    """
    taps_rows, bias_rows = [], []
    for w, bn_p, cp_src in conv_list:
        scale = bn_p['gamma'] / jnp.sqrt(bn_p['var'] + BN_EPS)
        bias = bn_p['beta'] - bn_p['mean'] * scale
        wf = w * scale[:, None, None, None]                      # (co, ci, kh, kw)
        co, ci, kh, kw = w.shape
        t = jnp.transpose(wf, (0, 2, 3, 1))                      # (co, kh, kw, ci)
        t = jnp.pad(t, ((0, rmax - co), (0, 0), (0, 0), (0, cp_src - ci)))
        t = t.reshape(rmax, kh * kw * cp_src)
        t = jnp.pad(t, ((0, 0), (0, kmax - kh * kw * cp_src)))
        taps_rows.append(t)
        bias_rows.append(jnp.pad(bias.reshape(-1, 1), ((0, rmax - co), (0, 0))))
    return (jnp.concatenate(taps_rows, axis=0).astype(jnp.bfloat16),
            jnp.concatenate(bias_rows, axis=0).astype(jnp.float32))


# --------------------------- fused forward builder --------------------------- #

def build_forward(block_cfg):
    """block_cfg: static tuple of (stride, has_projection_shortcut) per block."""
    for stride, has_sc in block_cfg:
        if stride not in (1, 2) or (stride == 2) != has_sc:
            # Not reachable with this ResNet constructor (stride-1 blocks always
            # keep in_planes == planes).
            raise NotImplementedError("unsupported BasicBlock configuration")

    def forward(x_nchw, params):
        n, c_in, h, w = x_nchw.shape
        num_classes = params['lin_w'].shape[0]

        # ---- stages (one per spatial resolution), all static ----
        geoms = [_geom(n, h, w)]
        stage_of_block = []
        for stride, _ in block_cfg:
            if stride == 2:
                gp = geoms[-1]
                geoms.append(_geom(n, (gp['ho'] - 1) // 2 + 1,
                                   (gp['wo'] - 1) // 2 + 1))
            stage_of_block.append(len(geoms) - 1)
        n_stages = len(geoms)

        stage_ch = [params['conv1_w'].shape[0]]
        for blk, (stride, _) in zip(params['blocks'], block_cfg):
            if stride == 2:
                stage_ch.append(blk['conv1_w'].shape[0])
        cp = [_rup(c, SUB_BF16) for c in stage_ch]     # channel pad per stage
        cp_in = _rup(c_in, SUB_BF16)                   # stem input channel pad
        rmax = max(cp)
        max_nl = max(g['nl'] for g in geoms)

        # ---- conv visitation order (must match the kernel body below) ----
        conv_list = [(params['conv1_w'], params['bn1'], cp_in)]
        for bi, (blk, (stride, has_sc)) in enumerate(zip(params['blocks'],
                                                         block_cfg)):
            s = stage_of_block[bi]
            src = s - 1 if stride == 2 else s
            conv_list.append((blk['conv1_w'], blk['bn1'], cp[src]))
            if has_sc:
                conv_list.append((blk['sc_w'], blk['sc_bn'], cp[src]))
            conv_list.append((blk['conv2_w'], blk['bn2'], cp[s]))
        kmax = max(wt.shape[2] * wt.shape[3] * cps for wt, _, cps in conv_list)
        taps_pack, bias_pack = _fold_pack_convs(conv_list, rmax, kmax)

        lin_w_pad = jnp.pad(params['lin_w'].astype(jnp.float32),
                            ((0, 0), (0, cp[-1] - stage_ch[-1])))

        # ---- kernel operands (packed input + packed folded params) ----
        operands = [_pack_input(x_nchw.astype(jnp.float32), geoms[0], cp_in)]
        operands += [_interior_mask(g) for g in geoms]
        operands += [_downsample_matrix(geoms[i], geoms[i + 1])
                     for i in range(n_stages - 1)]
        operands += [taps_pack, bias_pack, _pool_matrix(geoms[-1]), lin_w_pad,
                     params['lin_b'].reshape(-1, 1).astype(jnp.float32)]
        n_in = len(operands)

        # ---- the single fused kernel ----
        def kernel(*refs):
            in_refs, out_ref, scratch = refs[:n_in], refs[n_in], refs[n_in + 1:]
            a_ext = [scratch[2 * s] for s in range(n_stages)]      # activations
            h_ext = [scratch[2 * s + 1] for s in range(n_stages)]  # block hidden
            stack = scratch[2 * n_stages]                          # stacked windows

            it = iter(in_refs)
            x_ref = next(it)
            mask_refs = [next(it) for _ in range(n_stages)]
            sel_refs = [next(it) for _ in range(n_stages - 1)]
            taps_ref, bias_ref, pool_ref, linw_ref, linb_ref = (
                next(it) for _ in range(5))

            # Zero only the slack lanes once; interiors (incl. channel-pad rows)
            # are fully rewritten by every store below before they are read.
            for s in range(n_stages):
                g = geoms[s]
                for buf in (a_ext[s], h_ext[s]):
                    buf[:, :g['g']] = jnp.zeros((cp[s], g['g']), jnp.bfloat16)
                    buf[:, g['g'] + g['nl']:] = jnp.zeros((cp[s], g['g']),
                                                          jnp.bfloat16)

            conv_ctr = [0]

            def next_taps(cout_pad, k):
                j = conv_ctr[0]
                conv_ctr[0] += 1
                r0 = j * rmax
                return (taps_ref[r0:r0 + cout_pad, :k],
                        bias_ref[r0:r0 + cout_pad, :])

            def conv3x3(src_ref, g, cp_src, taps):
                """3x3 stride-1 conv as ONE bf16 matmul: the 9 shifted windows
                are written as aligned 16-row blocks of the stacked-window
                scratch, then (Cpad, 9*Cpad) x (9*Cpad, nl) with f32 acc."""
                nl = g['nl']
                for i in range(3):
                    for j3 in range(3):
                        t = i * 3 + j3
                        start = g['g'] + (i - 1) * g['wp'] + (j3 - 1)
                        stack[t * cp_src:(t + 1) * cp_src, :nl] = \
                            src_ref[:, start:start + nl]
                return jnp.dot(taps, stack[:9 * cp_src, :nl],
                               preferred_element_type=jnp.float32)

            def store_interior(dst_ref, g, val):
                dst_ref[:, g['g']:g['g'] + g['nl']] = val.astype(jnp.bfloat16)

            # ----- stem: conv1 + folded BN + ReLU -----
            g0 = geoms[0]
            taps, bias = next_taps(cp[0], 9 * cp_in)
            act = jnp.maximum((conv3x3(x_ref, g0, cp_in, taps) + bias)
                              * mask_refs[0][...], 0.0)
            store_interior(a_ext[0], g0, act)

            # ----- BasicBlocks (fully fused, incl. projection shortcut) -----
            for bi, (stride, has_sc) in enumerate(block_cfg):
                s = stage_of_block[bi]
                g = geoms[s]
                if stride == 1:
                    taps1, b1 = next_taps(cp[s], 9 * cp[s])
                    hid = jnp.maximum(
                        (conv3x3(a_ext[s], g, cp[s], taps1) + b1)
                        * mask_refs[s][...], 0.0)
                    store_interior(h_ext[s], g, hid)
                    shortcut = a_ext[s][:, g['g']:g['g'] + g['nl']].astype(
                        jnp.float32)
                else:
                    gp = geoms[s - 1]
                    sel_m = sel_refs[s - 1][...]          # bf16 0/1 selection
                    # conv1 (stride 2): full-res stacked conv, MXU subsample.
                    taps1, b1 = next_taps(cp[s], 9 * cp[s - 1])
                    full = conv3x3(a_ext[s - 1], gp, cp[s - 1], taps1)
                    ds = jnp.dot(full.astype(jnp.bfloat16), sel_m,
                                 preferred_element_type=jnp.float32)
                    hid = jnp.maximum((ds + b1) * mask_refs[s][...], 0.0)
                    store_interior(h_ext[s], g, hid)
                    # 1x1 stride-2 projection shortcut (same selection matrix).
                    tsc, bsc = next_taps(cp[s], cp[s - 1])
                    x_prev = a_ext[s - 1][:, gp['g']:gp['g'] + gp['nl']]
                    x_ds = jnp.dot(x_prev, sel_m,
                                   preferred_element_type=jnp.float32)
                    shortcut = (jnp.dot(tsc, x_ds.astype(jnp.bfloat16),
                                        preferred_element_type=jnp.float32)
                                + bsc) * mask_refs[s][...]

                taps2, b2 = next_taps(cp[s], 9 * cp[s])
                out = jnp.maximum(
                    (conv3x3(h_ext[s], g, cp[s], taps2) + b2 + shortcut)
                    * mask_refs[s][...], 0.0)
                store_interior(a_ext[s], g, out)

            # ----- head: global average pool (as matmul) + linear -----
            gl = geoms[-1]
            feat = a_ext[-1][:, gl['g']:gl['g'] + gl['nl']]
            pooled = jnp.dot(feat, pool_ref[...],
                             preferred_element_type=jnp.float32)       # (Cp, N)
            out_ref[...] = jnp.dot(linw_ref[...], pooled,
                                   preferred_element_type=jnp.float32) \
                + linb_ref[...]

        # ---- pallas_call plumbing: gridless, everything resident in VMEM ----
        scratch_shapes = []
        for s in range(n_stages):
            shp = (cp[s], geoms[s]['nl'] + 2 * geoms[s]['g'])
            scratch_shapes += [pltpu.VMEM(shp, jnp.bfloat16),
                               pltpu.VMEM(shp, jnp.bfloat16)]
        scratch_shapes.append(pltpu.VMEM((9 * rmax, max_nl), jnp.bfloat16))

        vmem = pltpu.MemorySpace.VMEM
        out_shape = jax.ShapeDtypeStruct((num_classes, n), jnp.float32)
        logits_t = pl.pallas_call(
            kernel,
            in_specs=[pl.BlockSpec(memory_space=vmem) for _ in operands],
            out_specs=pl.BlockSpec(memory_space=vmem),
            out_shape=out_shape,
            scratch_shapes=scratch_shapes,
            compiler_params=pltpu.CompilerParams(
                vmem_limit_bytes=32 * 1024 * 1024),
        )(*operands)
        return jnp.transpose(logits_t)                      # (N, num_classes)

    return forward


# -------------------------- parameter initialization ------------------------ #

def init_params(key, ci=4, num_blocks=(1, 1), num_classes=10):
    keys = iter(jax.random.split(key, 64))

    def conv_w(cout, cin, k):
        return 0.1 * jax.random.normal(next(keys), (cout, cin, k, k), jnp.float32)

    def bn(c):
        return dict(
            gamma=1.0 + 0.1 * jax.random.normal(next(keys), (c,), jnp.float32),
            beta=0.1 * jax.random.normal(next(keys), (c,), jnp.float32),
            mean=0.1 * jax.random.normal(next(keys), (c,), jnp.float32),
            var=0.5 + jax.random.uniform(next(keys), (c,), jnp.float32),
        )

    params = dict(conv1_w=conv_w(ci, 3, 3), bn1=bn(ci))
    blocks, cfg = [], []
    in_planes = ci
    for i, v in enumerate(num_blocks, 1):
        stride0 = 1 if i == 1 else 2
        planes = ci * 2 ** (i - 1)
        for st in [stride0] + [1] * (v - 1):
            blk = dict(conv1_w=conv_w(planes, in_planes, 3), bn1=bn(planes),
                       conv2_w=conv_w(planes, planes, 3), bn2=bn(planes))
            has_sc = (st != 1 or in_planes != planes)
            if has_sc:
                blk["sc_w"] = conv_w(planes, in_planes, 1)
                blk["sc_bn"] = bn(planes)
            blocks.append(blk)
            cfg.append((st, has_sc))
            in_planes = planes
    params["blocks"] = blocks
    params["lin_w"] = 0.1 * jax.random.normal(next(keys), (num_classes, in_planes),
                                              jnp.float32)
    params["lin_b"] = 0.1 * jax.random.normal(next(keys), (num_classes,),
                                              jnp.float32)
    return params, tuple(cfg)


# --------------------------- pure-JAX reference ----------------------------- #

def _ref_conv(x, w, stride, padding):
    return lax.conv_general_dilated(
        x, jnp.transpose(w, (2, 3, 1, 0)),
        window_strides=(stride, stride), padding=[(padding, padding)] * 2,
        dimension_numbers=("NHWC", "HWIO", "NHWC"),
        precision=lax.Precision.HIGHEST)


def _ref_bn(x, bn_p):
    return (x - bn_p["mean"]) / jnp.sqrt(bn_p["var"] + BN_EPS) * bn_p["gamma"] \
        + bn_p["beta"]


def resnet_reference(x_nchw, params, block_cfg):
    x = jnp.transpose(x_nchw, (0, 2, 3, 1))
    out = jax.nn.relu(_ref_bn(_ref_conv(x, params["conv1_w"], 1, 1), params["bn1"]))
    for p, (stride, has_sc) in zip(params["blocks"], block_cfg):
        h = jax.nn.relu(_ref_bn(_ref_conv(out, p["conv1_w"], stride, 1), p["bn1"]))
        h = _ref_bn(_ref_conv(h, p["conv2_w"], 1, 1), p["bn2"])
        sc = _ref_bn(_ref_conv(out, p["sc_w"], stride, 0), p["sc_bn"]) if has_sc \
            else out
        out = jax.nn.relu(h + sc)
    pooled = jnp.mean(out, axis=(1, 2))                         # (N, C)
    return jnp.dot(pooled, jnp.transpose(params["lin_w"]),
                   precision=lax.Precision.HIGHEST) + params["lin_b"]


# ---------------------------------- main ------------------------------------ #

if __name__ == "__main__":
    key = jax.random.PRNGKey(0)
    k_x, k_p = jax.random.split(key)

    # ResNet(ci=4, block=BasicBlock, num_blocks=[1, 1], num_classes=10)
    params, block_cfg = init_params(k_p, ci=4, num_blocks=(1, 1), num_classes=10)
    x = jax.random.normal(k_x, (2, 3, 16, 16), jnp.float32)     # NCHW, like PyTorch

    forward = jax.jit(build_forward(block_cfg))
    logits = jax.block_until_ready(forward(x, params))

    ref = jax.block_until_ready(resnet_reference(x, params, block_cfg))
    assert logits.shape == (2, 10)
    assert bool(jnp.all(jnp.isfinite(logits)))
    assert bool(jnp.allclose(logits, ref, rtol=5e-2, atol=5e-2)), (logits, ref)

    print("KERNEL_OK")
</pallas_src>

<mosaic_0001>
module attributes {stable_mosaic.version = 11 : i64} {
  func.func @kernel(%arg0: memref<16x904xbf16, #tpu.memory_space<vmem>>, %arg1: memref<1x648xf32, #tpu.memory_space<vmem>>, %arg2: memref<1x200xf32, #tpu.memory_space<vmem>>, %arg3: memref<648x200xbf16, #tpu.memory_space<vmem>>, %arg4: memref<96x144xbf16, #tpu.memory_space<vmem>>, %arg5: memref<96x1xf32, #tpu.memory_space<vmem>>, %arg6: memref<200x2xbf16, #tpu.memory_space<vmem>>, %arg7: memref<10x16xf32, #tpu.memory_space<vmem>>, %arg8: memref<10x1xf32, #tpu.memory_space<vmem>>, %arg9: memref<10x2xf32, #tpu.memory_space<vmem>>, %arg10: memref<16x904xbf16, #tpu.memory_space<vmem>>, %arg11: memref<16x904xbf16, #tpu.memory_space<vmem>>, %arg12: memref<16x456xbf16, #tpu.memory_space<vmem>>, %arg13: memref<16x456xbf16, #tpu.memory_space<vmem>>, %arg14: memref<144x648xbf16, #tpu.memory_space<vmem>>) attributes {dimension_semantics = [], scalar_prefetch = 0 : i64, scratch_operands = 5 : i64, tpu.core_type = #tpu.core_type<tc>} {
    %cst = arith.constant 0.000000e+00 : bf16
    %0 = vector.broadcast %cst : bf16 to vector<16x128xbf16>
    %c0 = arith.constant 0 : index
    %c0_0 = arith.constant 0 : index
    %1 = vector.load %arg10[%c0, %c0_0] : memref<16x904xbf16, #tpu.memory_space<vmem>>, vector<16x128xbf16>
    tpu.vector_store %arg10[%c0, %c0_0], %0 {strides = array<i32>} : memref<16x904xbf16, #tpu.memory_space<vmem>>, vector<16x128xbf16>,
    %cst_1 = arith.constant 0.000000e+00 : bf16
    %2 = vector.broadcast %cst_1 : bf16 to vector<16x128xbf16>
    %c0_2 = arith.constant 0 : index
    %c776 = arith.constant 776 : index
    %3 = vector.load %arg10[%c0_2, %c776] : memref<16x904xbf16, #tpu.memory_space<vmem>>, vector<16x128xbf16>
    tpu.vector_store %arg10[%c0_2, %c776], %2 {strides = array<i32>} : memref<16x904xbf16, #tpu.memory_space<vmem>>, vector<16x128xbf16>,
    %cst_3 = arith.constant 0.000000e+00 : bf16
    %4 = vector.broadcast %cst_3 : bf16 to vector<16x128xbf16>
    %c0_4 = arith.constant 0 : index
    %c0_5 = arith.constant 0 : index
    %5 = vector.load %arg11[%c0_4, %c0_5] : memref<16x904xbf16, #tpu.memory_space<vmem>>, vector<16x128xbf16>
    tpu.vector_store %arg11[%c0_4, %c0_5], %4 {strides = array<i32>} : memref<16x904xbf16, #tpu.memory_space<vmem>>, vector<16x128xbf16>,
    %cst_6 = arith.constant 0.000000e+00 : bf16
    %6 = vector.broadcast %cst_6 : bf16 to vector<16x128xbf16>
    %c0_7 = arith.constant 0 : index
    %c776_8 = arith.constant 776 : index
    %7 = vector.load %arg11[%c0_7, %c776_8] : memref<16x904xbf16, #tpu.memory_space<vmem>>, vector<16x128xbf16>
    tpu.vector_store %arg11[%c0_7, %c776_8], %6 {strides = array<i32>} : memref<16x904xbf16, #tpu.memory_space<vmem>>, vector<16x128xbf16>,
    %cst_9 = arith.constant 0.000000e+00 : bf16
    %8 = vector.broadcast %cst_9 : bf16 to vector<16x128xbf16>
    %c0_10 = arith.constant 0 : index
    %c0_11 = arith.constant 0 : index
    %9 = vector.load %arg12[%c0_10, %c0_11] : memref<16x456xbf16, #tpu.memory_space<vmem>>, vector<16x128xbf16>
    tpu.vector_store %arg12[%c0_10, %c0_11], %8 {strides = array<i32>} : memref<16x456xbf16, #tpu.memory_space<vmem>>, vector<16x128xbf16>,
    %cst_12 = arith.constant 0.000000e+00 : bf16
    %10 = vector.broadcast %cst_12 : bf16 to vector<16x128xbf16>
    %c0_13 = arith.constant 0 : index
    %c328 = arith.constant 328 : index
    %11 = vector.load %arg12[%c0_13, %c328] : memref<16x456xbf16, #tpu.memory_space<vmem>>, vector<16x128xbf16>
    tpu.vector_store %arg12[%c0_13, %c328], %10 {strides = array<i32>} : memref<16x456xbf16, #tpu.memory_space<vmem>>, vector<16x128xbf16>,
    %cst_14 = arith.constant 0.000000e+00 : bf16
    %12 = vector.broadcast %cst_14 : bf16 to vector<16x128xbf16>
    %c0_15 = arith.constant 0 : index
    %c0_16 = arith.constant 0 : index
    %13 = vector.load %arg13[%c0_15, %c0_16] : memref<16x456xbf16, #tpu.memory_space<vmem>>, vector<16x128xbf16>
    tpu.vector_store %arg13[%c0_15, %c0_16], %12 {strides = array<i32>} : memref<16x456xbf16, #tpu.memory_space<vmem>>, vector<16x128xbf16>,
    %cst_17 = arith.constant 0.000000e+00 : bf16
    %14 = vector.broadcast %cst_17 : bf16 to vector<16x128xbf16>
    %c0_18 = arith.constant 0 : index
    %c328_19 = arith.constant 328 : index
    %15 = vector.load %arg13[%c0_18, %c328_19] : memref<16x456xbf16, #tpu.memory_space<vmem>>, vector<16x128xbf16>
    tpu.vector_store %arg13[%c0_18, %c328_19], %14 {strides = array<i32>} : memref<16x456xbf16, #tpu.memory_space<vmem>>, vector<16x128xbf16>,
    %c0_20 = arith.constant 0 : index
    %c0_21 = arith.constant 0 : index
    %16 = vector.load %arg4[%c0_20, %c0_21] : memref<96x144xbf16, #tpu.memory_space<vmem>>, vector<16x144xbf16>
    %c0_22 = arith.constant 0 : index
    %c0_23 = arith.constant 0 : index
    %17 = vector.load %arg5[%c0_22, %c0_23] : memref<96x1xf32, #tpu.memory_space<vmem>>, vector<16x1xf32>
    %c0_24 = arith.constant 0 : index
    %c109 = arith.constant 109 : index
    %18 = vector.load %arg0[%c0_24, %c109] : memref<16x904xbf16, #tpu.memory_space<vmem>>, vector<16x648xbf16>
    %c0_25 = arith.constant 0 : index
    %c0_26 = arith.constant 0 : index
    %19 = vector.load %arg14[%c0_25, %c0_26] : memref<144x648xbf16, #tpu.memory_space<vmem>>, vector<16x648xbf16>
    tpu.vector_store %arg14[%c0_25, %c0_26], %18 {strides = array<i32>} : memref<144x648xbf16, #tpu.memory_space<vmem>>, vector<16x648xbf16>,
    %c0_27 = arith.constant 0 : index
    %c110 = arith.constant 110 : index
    %20 = vector.load %arg0[%c0_27, %c110] : memref<16x904xbf16, #tpu.memory_space<vmem>>, vector<16x648xbf16>
    %c16 = arith.constant 16 : index
    %c0_28 = arith.constant 0 : index
    %21 = vector.load %arg14[%c16, %c0_28] : memref<144x648xbf16, #tpu.memory_space<vmem>>, vector<16x648xbf16>
    tpu.vector_store %arg14[%c16, %c0_28], %20 {strides = array<i32>} : memref<144x648xbf16, #tpu.memory_space<vmem>>, vector<16x648xbf16>,
    %c0_29 = arith.constant 0 : index
    %c111 = arith.constant 111 : index
    %22 = vector.load %arg0[%c0_29, %c111] : memref<16x904xbf16, #tpu.memory_space<vmem>>, vector<16x648xbf16>
    %c32 = arith.constant 32 : index
    %c0_30 = arith.constant 0 : index
    %23 = vector.load %arg14[%c32, %c0_30] : memref<144x648xbf16, #tpu.memory_space<vmem>>, vector<16x648xbf16>
    tpu.vector_store %arg14[%c32, %c0_30], %22 {strides = array<i32>} : memref<144x648xbf16, #tpu.memory_space<vmem>>, vector<16x648xbf16>,
    %c0_31 = arith.constant 0 : index
    %c127 = arith.constant 127 : index
    %24 = vector.load %arg0[%c0_31, %c127] : memref<16x904xbf16, #tpu.memory_space<vmem>>, vector<16x648xbf16>
    %c48 = arith.constant 48 : index
    %c0_32 = arith.constant 0 : index
    %25 = vector.load %arg14[%c48, %c0_32] : memref<144x648xbf16, #tpu.memory_space<vmem>>, vector<16x648xbf16>
    tpu.vector_store %arg14[%c48, %c0_32], %24 {strides = array<i32>} : memref<144x648xbf16, #tpu.memory_space<vmem>>, vector<16x648xbf16>,
    %c0_33 = arith.constant 0 : index
    %c128 = arith.constant 128 : index
    %26 = vector.load %arg0[%c0_33, %c128] : memref<16x904xbf16, #tpu.memory_space<vmem>>, vector<16x648xbf16>
    %c64 = arith.constant 64 : index
    %c0_34 = arith.constant 0 : index
    %27 = vector.load %arg14[%c64, %c0_34] : memref<144x648xbf16, #tpu.memory_space<vmem>>, vector<16x648xbf16>
    tpu.vector_store %arg14[%c64, %c0_34], %26 {strides = array<i32>} : memref<144x648xbf16, #tpu.memory_space<vmem>>, vector<16x648xbf16>,
    %c0_35 = arith.constant 0 : index
    %c129 = arith.constant 129 : index
    %28 = vector.load %arg0[%c0_35, %c129] : memref<16x904xbf16, #tpu.memory_space<vmem>>, vector<16x648xbf16>
    %c80 = arith.constant 80 : index
    %c0_36 = arith.constant 0 : index
    %29 = vector.load %arg14[%c80, %c0_36] : memref<144x648xbf16, #tpu.memory_space<vmem>>, vector<16x648xbf16>
    tpu.vector_store %arg14[%c80, %c0_36], %28 {strides = array<i32>} : memref<144x648xbf16, #tpu.memory_space<vmem>>, vector<16x648xbf16>,
    %c0_37 = arith.constant 0 : index
    %c145 = arith.constant 145 : index
    %30 = vector.load %arg0[%c0_37, %c145] : memref<16x904xbf16, #tpu.memory_space<vmem>>, vector<16x648xbf16>
    %c96 = arith.constant 96 : index
    %c0_38 = arith.constant 0 : index
    %31 = vector.load %arg14[%c96, %c0_38] : memref<144x648xbf16, #tpu.memory_space<vmem>>, vector<16x648xbf16>
    tpu.vector_store %arg14[%c96, %c0_38], %30 {strides = array<i32>} : memref<144x648xbf16, #tpu.memory_space<vmem>>, vector<16x648xbf16>,
    %c0_39 = arith.constant 0 : index
    %c146 = arith.constant 146 : index
    %32 = vector.load %arg0[%c0_39, %c146] : memref<16x904xbf16, #tpu.memory_space<vmem>>, vector<16x648xbf16>
    %c112 = arith.constant 112 : index
    %c0_40 = arith.constant 0 : index
    %33 = vector.load %arg14[%c112, %c0_40] : memref<144x648xbf16, #tpu.memory_space<vmem>>, vector<16x648xbf16>
    tpu.vector_store %arg14[%c112, %c0_40], %32 {strides = array<i32>} : memref<144x648xbf16, #tpu.memory_space<vmem>>, vector<16x648xbf16>,
    %c0_41 = arith.constant 0 : index
    %c147 = arith.constant 147 : index
    %34 = vector.load %arg0[%c0_41, %c147] : memref<16x904xbf16, #tpu.memory_space<vmem>>, vector<16x648xbf16>
    %c128_42 = arith.constant 128 : index
    %c0_43 = arith.constant 0 : index
    %35 = vector.load %arg14[%c128_42, %c0_43] : memref<144x648xbf16, #tpu.memory_space<vmem>>, vector<16x648xbf16>
    tpu.vector_store %arg14[%c128_42, %c0_43], %34 {strides = array<i32>} : memref<144x648xbf16, #tpu.memory_space<vmem>>, vector<16x648xbf16>,
    %c0_44 = arith.constant 0 : index
    %c0_45 = arith.constant 0 : index
    %36 = vector.load %arg14[%c0_44, %c0_45] : memref<144x648xbf16, #tpu.memory_space<vmem>>, vector<144x648xbf16>
    %cst_46 = arith.constant dense<0.000000e+00> : vector<16x648xf32>
    %37 = tpu.matmul %16, %36, %cst_46 {dimension_numbers = #tpu.dot_dimension_numbers<[1], [0], [0], [1], [0, 0, 1, 1], [], []>} : vector<16x144xbf16>, vector<144x648xbf16>, vector<16x648xf32> -> vector<16x648xf32>
    %38 = vector.broadcast %17 : vector<16x1xf32> to vector<16x648xf32>
    %39 = arith.addf %37, %38 : vector<16x648xf32>
    %c0_47 = arith.constant 0 : index
    %c0_48 = arith.constant 0 : index
    %40 = vector.load %arg1[%c0_47, %c0_48] : memref<1x648xf32, #tpu.memory_space<vmem>>, vector<1x648xf32>
    %41 = vector.broadcast %40 : vector<1x648xf32> to vector<16x648xf32>
    %42 = arith.mulf %39, %41 : vector<16x648xf32>
    %cst_49 = arith.constant 0.000000e+00 : f32
    %43 = vector.broadcast %cst_49 : f32 to vector<16x648xf32>
    %44 = arith.maximumf %42, %43 : vector<16x648xf32>
    %45 = arith.truncf %44 : vector<16x648xf32> to vector<16x648xbf16>
    %c0_50 = arith.constant 0 : index
    %c128_51 = arith.constant 128 : index
    %46 = vector.load %arg10[%c0_50, %c128_51] : memref<16x904xbf16, #tpu.memory_space<vmem>>, vector<16x648xbf16>
    tpu.vector_store %arg10[%c0_50, %c128_51], %45 {strides = array<i32>} : memref<16x904xbf16, #tpu.memory_space<vmem>>, vector<16x648xbf16>,
    %c16_52 = arith.constant 16 : index
    %c0_53 = arith.constant 0 : index
    %47 = vector.load %arg4[%c16_52, %c0_53] : memref<96x144xbf16, #tpu.memory_space<vmem>>, vector<16x144xbf16>
    %c16_54 = arith.constant 16 : index
    %c0_55 = arith.constant 0 : index
    %48 = vector.load %arg5[%c16_54, %c0_55] : memref<96x1xf32, #tpu.memory_space<vmem>>, vector<16x1xf32>
    %c0_56 = arith.constant 0 : index
    %c109_57 = arith.constant 109 : index
    %49 = vector.load %arg10[%c0_56, %c109_57] : memref<16x904xbf16, #tpu.memory_space<vmem>>, vector<16x648xbf16>
    %c0_58 = arith.constant 0 : index
    %c0_59 = arith.constant 0 : index
    %50 = vector.load %arg14[%c0_58, %c0_59] : memref<144x648xbf16, #tpu.memory_space<vmem>>, vector<16x648xbf16>
    tpu.vector_store %arg14[%c0_58, %c0_59], %49 {strides = array<i32>} : memref<144x648xbf16, #tpu.memory_space<vmem>>, vector<16x648xbf16>,
    %c0_60 = arith.constant 0 : index
    %c110_61 = arith.constant 110 : index
    %51 = vector.load %arg10[%c0_60, %c110_61] : memref<16x904xbf16, #tpu.memory_space<vmem>>, vector<16x648xbf16>
    %c16_62 = arith.constant 16 : index
    %c0_63 = arith.constant 0 : index
    %52 = vector.load %arg14[%c16_62, %c0_63] : memref<144x648xbf16, #tpu.memory_space<vmem>>, vector<16x648xbf16>
    tpu.vector_store %arg14[%c16_62, %c0_63], %51 {strides = array<i32>} : memref<144x648xbf16, #tpu.memory_space<vmem>>, vector<16x648xbf16>,
    %c0_64 = arith.constant 0 : index
    %c111_65 = arith.constant 111 : index
    %53 = vector.load %arg10[%c0_64, %c111_65] : memref<16x904xbf16, #tpu.memory_space<vmem>>, vector<16x648xbf16>
    %c32_66 = arith.constant 32 : index
    %c0_67 = arith.constant 0 : index
    %54 = vector.load %arg14[%c32_66, %c0_67] : memref<144x648xbf16, #tpu.memory_space<vmem>>, vector<16x648xbf16>
    tpu.vector_store %arg14[%c32_66, %c0_67], %53 {strides = array<i32>} : memref<144x648xbf16, #tpu.memory_space<vmem>>, vector<16x648xbf16>,
    %c0_68 = arith.constant 0 : index
    %c127_69 = arith.constant 127 : index
    %55 = vector.load %arg10[%c0_68, %c127_69] : memref<16x904xbf16, #tpu.memory_space<vmem>>, vector<16x648xbf16>
    %c48_70 = arith.constant 48 : index
    %c0_71 = arith.constant 0 : index
    %56 = vector.load %arg14[%c48_70, %c0_71] : memref<144x648xbf16, #tpu.memory_space<vmem>>, vector<16x648xbf16>
    tpu.vector_store %arg14[%c48_70, %c0_71], %55 {strides = array<i32>} : memref<144x648xbf16, #tpu.memory_space<vmem>>, vector<16x648xbf16>,
    %c0_72 = arith.constant 0 : index
    %c128_73 = arith.constant 128 : index
    %57 = vector.load %arg10[%c0_72, %c128_73] : memref<16x904xbf16, #tpu.memory_space<vmem>>, vector<16x648xbf16>
    %c64_74 = arith.constant 64 : index
    %c0_75 = arith.constant 0 : index
    %58 = vector.load %arg14[%c64_74, %c0_75] : memref<144x648xbf16, #tpu.memory_space<vmem>>, vector<16x648xbf16>
    tpu.vector_store %arg14[%c64_74, %c0_75], %57 {strides = array<i32>} : memref<144x648xbf16, #tpu.memory_space<vmem>>, vector<16x648xbf16>,
    %c0_76 = arith.constant 0 : index
    %c129_77 = arith.constant 129 : index
    %59 = vector.load %arg10[%c0_76, %c129_77] : memref<16x904xbf16, #tpu.memory_space<vmem>>, vector<16x648xbf16>
    %c80_78 = arith.constant 80 : index
    %c0_79 = arith.constant 0 : index
    %60 = vector.load %arg14[%c80_78, %c0_79] : memref<144x648xbf16, #tpu.memory_space<vmem>>, vector<16x648xbf16>
    tpu.vector_store %arg14[%c80_78, %c0_79], %59 {strides = array<i32>} : memref<144x648xbf16, #tpu.memory_space<vmem>>, vector<16x648xbf16>,
    %c0_80 = arith.constant 0 : index
    %c145_81 = arith.constant 145 : index
    %61 = vector.load %arg10[%c0_80, %c145_81] : memref<16x904xbf16, #tpu.memory_space<vmem>>, vector<16x648xbf16>
    %c96_82 = arith.constant 96 : index
    %c0_83 = arith.constant 0 : index
    %62 = vector.load %arg14[%c96_82, %c0_83] : memref<144x648xbf16, #tpu.memory_space<vmem>>, vector<16x648xbf16>
    tpu.vector_store %arg14[%c96_82, %c0_83], %61 {strides = array<i32>} : memref<144x648xbf16, #tpu.memory_space<vmem>>, vector<16x648xbf16>,
    %c0_84 = arith.constant 0 : index
    %c146_85 = arith.constant 146 : index
    %63 = vector.load %arg10[%c0_84, %c146_85] : memref<16x904xbf16, #tpu.memory_space<vmem>>, vector<16x648xbf16>
    %c112_86 = arith.constant 112 : index
    %c0_87 = arith.constant 0 : index
    %64 = vector.load %arg14[%c112_86, %c0_87] : memref<144x648xbf16, #tpu.memory_space<vmem>>, vector<16x648xbf16>
    tpu.vector_store %arg14[%c112_86, %c0_87], %63 {strides = array<i32>} : memref<144x648xbf16, #tpu.memory_space<vmem>>, vector<16x648xbf16>,
    %c0_88 = arith.constant 0 : index
    %c147_89 = arith.constant 147 : index
    %65 = vector.load %arg10[%c0_88, %c147_89] : memref<16x904xbf16, #tpu.memory_space<vmem>>, vector<16x648xbf16>
    %c128_90 = arith.constant 128 : index
    %c0_91 = arith.constant 0 : index
    %66 = vector.load %arg14[%c128_90, %c0_91] : memref<144x648xbf16, #tpu.memory_space<vmem>>, vector<16x648xbf16>
    tpu.vector_store %arg14[%c128_90, %c0_91], %65 {strides = array<i32>} : memref<144x648xbf16, #tpu.memory_space<vmem>>, vector<16x648xbf16>,
    %c0_92 = arith.constant 0 : index
    %c0_93 = arith.constant 0 : index
    %67 = vector.load %arg14[%c0_92, %c0_93] : memref<144x648xbf16, #tpu.memory_space<vmem>>, vector<144x648xbf16>
    %cst_94 = arith.constant dense<0.000000e+00> : vector<16x648xf32>
    %68 = tpu.matmul %47, %67, %cst_94 {dimension_numbers = #tpu.dot_dimension_numbers<[1], [0], [0], [1], [0, 0, 1, 1], [], []>} : vector<16x144xbf16>, vector<144x648xbf16>, vector<16x648xf32> -> vector<16x648xf32>
    %69 = vector.broadcast %48 : vector<16x1xf32> to vector<16x648xf32>
    %70 = arith.addf %68, %69 : vector<16x648xf32>
    %c0_95 = arith.constant 0 : index
    %c0_96 = arith.constant 0 : index
    %71 = vector.load %arg1[%c0_95, %c0_96] : memref<1x648xf32, #tpu.memory_space<vmem>>, vector<1x648xf32>
    %72 = vector.broadcast %71 : vector<1x648xf32> to vector<16x648xf32>
    %73 = arith.mulf %70, %72 : vector<16x648xf32>
    %cst_97 = arith.constant 0.000000e+00 : f32
    %74 = vector.broadcast %cst_97 : f32 to vector<16x648xf32>
    %75 = arith.maximumf %73, %74 : vector<16x648xf32>
    %76 = arith.truncf %75 : vector<16x648xf32> to vector<16x648xbf16>
    %c0_98 = arith.constant 0 : index
    %c128_99 = arith.constant 128 : index
    %77 = vector.load %arg11[%c0_98, %c128_99] : memref<16x904xbf16, #tpu.memory_space<vmem>>, vector<16x648xbf16>
    tpu.vector_store %arg11[%c0_98, %c128_99], %76 {strides = array<i32>} : memref<16x904xbf16, #tpu.memory_space<vmem>>, vector<16x648xbf16>,
    %c0_100 = arith.constant 0 : index
    %c128_101 = arith.constant 128 : index
    %78 = vector.load %arg10[%c0_100, %c128_101] : memref<16x904xbf16, #tpu.memory_space<vmem>>, vector<16x648xbf16>
    %79 = arith.extf %78 : vector<16x648xbf16> to vector<16x648xf32>
    %c32_102 = arith.constant 32 : index
    %c0_103 = arith.constant 0 : index
    %80 = vector.load %arg4[%c32_102, %c0_103] : memref<96x144xbf16, #tpu.memory_space<vmem>>, vector<16x144xbf16>
    %c32_104 = arith.constant 32 : index
    %c0_105 = arith.constant 0 : index
    %81 = vector.load %arg5[%c32_104, %c0_105] : memref<96x1xf32, #tpu.memory_space<vmem>>, vector<16x1xf32>
    %c0_106 = arith.constant 0 : index
    %c109_107 = arith.constant 109 : index
    %82 = vector.load %arg11[%c0_106, %c109_107] : memref<16x904xbf16, #tpu.memory_space<vmem>>, vector<16x648xbf16>
    %c0_108 = arith.constant 0 : index
    %c0_109 = arith.constant 0 : index
    %83 = vector.load %arg14[%c0_108, %c0_109] : memref<144x648xbf16, #tpu.memory_space<vmem>>, vector<16x648xbf16>
    tpu.vector_store %arg14[%c0_108, %c0_109], %82 {strides = array<i32>} : memref<144x648xbf16, #tpu.memory_space<vmem>>, vector<16x648xbf16>,
    %c0_110 = arith.constant 0 : index
    %c110_111 = arith.constant 110 : index
    %84 = vector.load %arg11[%c0_110, %c110_111] : memref<16x904xbf16, #tpu.memory_space<vmem>>, vector<16x648xbf16>
    %c16_112 = arith.constant 16 : index
    %c0_113 = arith.constant 0 : index
    %85 = vector.load %arg14[%c16_112, %c0_113] : memref<144x648xbf16, #tpu.memory_space<vmem>>, vector<16x648xbf16>
    tpu.vector_store %arg14[%c16_112, %c0_113], %84 {strides = array<i32>} : memref<144x648xbf16, #tpu.memory_space<vmem>>, vector<16x648xbf16>,
    %c0_114 = arith.constant 0 : index
    %c111_115 = arith.constant 111 : index
    %86 = vector.load %arg11[%c0_114, %c111_115] : memref<16x904xbf16, #tpu.memory_space<vmem>>, vector<16x648xbf16>
    %c32_116 = arith.constant 32 : index
    %c0_117 = arith.constant 0 : index
    %87 = vector.load %arg14[%c32_116, %c0_117] : memref<144x648xbf16, #tpu.memory_space<vmem>>, vector<16x648xbf16>
    tpu.vector_store %arg14[%c32_116, %c0_117], %86 {strides = array<i32>} : memref<144x648xbf16, #tpu.memory_space<vmem>>, vector<16x648xbf16>,
    %c0_118 = arith.constant 0 : index
    %c127_119 = arith.constant 127 : index
    %88 = vector.load %arg11[%c0_118, %c127_119] : memref<16x904xbf16, #tpu.memory_space<vmem>>, vector<16x648xbf16>
    %c48_120 = arith.constant 48 : index
    %c0_121 = arith.constant 0 : index
    %89 = vector.load %arg14[%c48_120, %c0_121] : memref<144x648xbf16, #tpu.memory_space<vmem>>, vector<16x648xbf16>
    tpu.vector_store %arg14[%c48_120, %c0_121], %88 {strides = array<i32>} : memref<144x648xbf16, #tpu.memory_space<vmem>>, vector<16x648xbf16>,
    %c0_122 = arith.constant 0 : index
    %c128_123 = arith.constant 128 : index
    %90 = vector.load %arg11[%c0_122, %c128_123] : memref<16x904xbf16, #tpu.memory_space<vmem>>, vector<16x648xbf16>
    %c64_124 = arith.constant 64 : index
    %c0_125 = arith.constant 0 : index
    %91 = vector.load %arg14[%c64_124, %c0_125] : memref<144x648xbf16, #tpu.memory_space<vmem>>, vector<16x648xbf16>
    tpu.vector_store %arg14[%c64_124, %c0_125], %90 {strides = array<i32>} : memref<144x648xbf16, #tpu.memory_space<vmem>>, vector<16x648xbf16>,
    %c0_126 = arith.constant 0 : index
    %c129_127 = arith.constant 129 : index
    %92 = vector.load %arg11[%c0_126, %c129_127] : memref<16x904xbf16, #tpu.memory_space<vmem>>, vector<16x648xbf16>
    %c80_128 = arith.constant 80 : index
    %c0_129 = arith.constant 0 : index
    %93 = vector.load %arg14[%c80_128, %c0_129] : memref<144x648xbf16, #tpu.memory_space<vmem>>, vector<16x648xbf16>
    tpu.vector_store %arg14[%c80_128, %c0_129], %92 {strides = array<i32>} : memref<144x648xbf16, #tpu.memory_space<vmem>>, vector<16x648xbf16>,
    %c0_130 = arith.constant 0 : index
    %c145_131 = arith.constant 145 : index
    %94 = vector.load %arg11[%c0_130, %c145_131] : memref<16x904xbf16, #tpu.memory_space<vmem>>, vector<16x648xbf16>
    %c96_132 = arith.constant 96 : index
    %c0_133 = arith.constant 0 : index
    %95 = vector.load %arg14[%c96_132, %c0_133] : memref<144x648xbf16, #tpu.memory_space<vmem>>, vector<16x648xbf16>
    tpu.vector_store %arg14[%c96_132, %c0_133], %94 {strides = array<i32>} : memref<144x648xbf16, #tpu.memory_space<vmem>>, vector<16x648xbf16>,
    %c0_134 = arith.constant 0 : index
    %c146_135 = arith.constant 146 : index
    %96 = vector.load %arg11[%c0_134, %c146_135] : memref<16x904xbf16, #tpu.memory_space<vmem>>, vector<16x648xbf16>
    %c112_136 = arith.constant 112 : index
    %c0_137 = arith.constant 0 : index
    %97 = vector.load %arg14[%c112_136, %c0_137] : memref<144x648xbf16, #tpu.memory_space<vmem>>, vector<16x648xbf16>
    tpu.vector_store %arg14[%c112_136, %c0_137], %96 {strides = array<i32>} : memref<144x648xbf16, #tpu.memory_space<vmem>>, vector<16x648xbf16>,
    %c0_138 = arith.constant 0 : index
    %c147_139 = arith.constant 147 : index
    %98 = vector.load %arg11[%c0_138, %c147_139] : memref<16x904xbf16, #tpu.memory_space<vmem>>, vector<16x648xbf16>
    %c128_140 = arith.constant 128 : index
    %c0_141 = arith.constant 0 : index
    %99 = vector.load %arg14[%c128_140, %c0_141] : memref<144x648xbf16, #tpu.memory_space<vmem>>, vector<16x648xbf16>
    tpu.vector_store %arg14[%c128_140, %c0_141], %98 {strides = array<i32>} : memref<144x648xbf16, #tpu.memory_space<vmem>>, vector<16x648xbf16>,
    %c0_142 = arith.constant 0 : index
    %c0_143 = arith.constant 0 : index
    %100 = vector.load %arg14[%c0_142, %c0_143] : memref<144x648xbf16, #tpu.memory_space<vmem>>, vector<144x648xbf16>
    %cst_144 = arith.constant dense<0.000000e+00> : vector<16x648xf32>
    %101 = tpu.matmul %80, %100, %cst_144 {dimension_numbers = #tpu.dot_dimension_numbers<[1], [0], [0], [1], [0, 0, 1, 1], [], []>} : vector<16x144xbf16>, vector<144x648xbf16>, vector<16x648xf32> -> vector<16x648xf32>
    %102 = vector.broadcast %81 : vector<16x1xf32> to vector<16x648xf32>
    %103 = arith.addf %101, %102 : vector<16x648xf32>
    %104 = arith.addf %103, %79 : vector<16x648xf32>
    %c0_145 = arith.constant 0 : index
    %c0_146 = arith.constant 0 : index
    %105 = vector.load %arg1[%c0_145, %c0_146] : memref<1x648xf32, #tpu.memory_space<vmem>>, vector<1x648xf32>
    %106 = vector.broadcast %105 : vector<1x648xf32> to vector<16x648xf32>
    %107 = arith.mulf %104, %106 : vector<16x648xf32>
    %cst_147 = arith.constant 0.000000e+00 : f32
    %108 = vector.broadcast %cst_147 : f32 to vector<16x648xf32>
    %109 = arith.maximumf %107, %108 : vector<16x648xf32>
    %110 = arith.truncf %109 : vector<16x648xf32> to vector<16x648xbf16>
    %c0_148 = arith.constant 0 : index
    %c128_149 = arith.constant 128 : index
    %111 = vector.load %arg10[%c0_148, %c128_149] : memref<16x904xbf16, #tpu.memory_space<vmem>>, vector<16x648xbf16>
    tpu.vector_store %arg10[%c0_148, %c128_149], %110 {strides = array<i32>} : memref<16x904xbf16, #tpu.memory_space<vmem>>, vector<16x648xbf16>,
    %c0_150 = arith.constant 0 : index
    %c0_151 = arith.constant 0 : index
    %112 = vector.load %arg3[%c0_150, %c0_151] : memref<648x200xbf16, #tpu.memory_space<vmem>>, vector<648x200xbf16>
    %c48_152 = arith.constant 48 : index
    %c0_153 = arith.constant 0 : index
    %113 = vector.load %arg4[%c48_152, %c0_153] : memref<96x144xbf16, #tpu.memory_space<vmem>>, vector<16x144xbf16>
    %c48_154 = arith.constant 48 : index
    %c0_155 = arith.constant 0 : index
    %114 = vector.load %arg5[%c48_154, %c0_155] : memref<96x1xf32, #tpu.memory_space<vmem>>, vector<16x1xf32>
    %c0_156 = arith.constant 0 : index
    %c109_157 = arith.constant 109 : index
    %115 = vector.load %arg10[%c0_156, %c109_157] : memref<16x904xbf16, #tpu.memory_space<vmem>>, vector<16x648xbf16>
    %c0_158 = arith.constant 0 : index
    %c0_159 = arith.constant 0 : index
    %116 = vector.load %arg14[%c0_158, %c0_159] : memref<144x648xbf16, #tpu.memory_space<vmem>>, vector<16x648xbf16>
    tpu.vector_store %arg14[%c0_158, %c0_159], %115 {strides = array<i32>} : memref<144x648xbf16, #tpu.memory_space<vmem>>, vector<16x648xbf16>,
    %c0_160 = arith.constant 0 : index
    %c110_161 = arith.constant 110 : index
    %117 = vector.load %arg10[%c0_160, %c110_161] : memref<16x904xbf16, #tpu.memory_space<vmem>>, vector<16x648xbf16>
    %c16_162 = arith.constant 16 : index
    %c0_163 = arith.constant 0 : index
    %118 = vector.load %arg14[%c16_162, %c0_163] : memref<144x648xbf16, #tpu.memory_space<vmem>>, vector<16x648xbf16>
    tpu.vector_store %arg14[%c16_162, %c0_163], %117 {strides = array<i32>} : memref<144x648xbf16, #tpu.memory_space<vmem>>, vector<16x648xbf16>,
    %c0_164 = arith.constant 0 : index
    %c111_165 = arith.constant 111 : index
    %119 = vector.load %arg10[%c0_164, %c111_165] : memref<16x904xbf16, #tpu.memory_space<vmem>>, vector<16x648xbf16>
    %c32_166 = arith.constant 32 : index
    %c0_167 = arith.constant 0 : index
    %120 = vector.load %arg14[%c32_166, %c0_167] : memref<144x648xbf16, #tpu.memory_space<vmem>>, vector<16x648xbf16>
    tpu.vector_store %arg14[%c32_166, %c0_167], %119 {strides = array<i32>} : memref<144x648xbf16, #tpu.memory_space<vmem>>, vector<16x648xbf16>,
    %c0_168 = arith.constant 0 : index
    %c127_169 = arith.constant 127 : index
    %121 = vector.load %arg10[%c0_168, %c127_169] : memref<16x904xbf16, #tpu.memory_space<vmem>>, vector<16x648xbf16>
    %c48_170 = arith.constant 48 : index
    %c0_171 = arith.constant 0 : index
    %122 = vector.load %arg14[%c48_170, %c0_171] : memref<144x648xbf16, #tpu.memory_space<vmem>>, vector<16x648xbf16>
    tpu.vector_store %arg14[%c48_170, %c0_171], %121 {strides = array<i32>} : memref<144x648xbf16, #tpu.memory_space<vmem>>, vector<16x648xbf16>,
    %c0_172 = arith.constant 0 : index
    %c128_173 = arith.constant 128 : index
    %123 = vector.load %arg10[%c0_172, %c128_173] : memref<16x904xbf16, #tpu.memory_space<vmem>>, vector<16x648xbf16>
    %c64_174 = arith.constant 64 : index
    %c0_175 = arith.constant 0 : index
    %124 = vector.load %arg14[%c64_174, %c0_175] : memref<144x648xbf16, #tpu.memory_space<vmem>>, vector<16x648xbf16>
    tpu.vector_store %arg14[%c64_174, %c0_175], %123 {strides = array<i32>} : memref<144x648xbf16, #tpu.memory_space<vmem>>, vector<16x648xbf16>,
    %c0_176 = arith.constant 0 : index
    %c129_177 = arith.constant 129 : index
    %125 = vector.load %arg10[%c0_176, %c129_177] : memref<16x904xbf16, #tpu.memory_space<vmem>>, vector<16x648xbf16>
    %c80_178 = arith.constant 80 : index
    %c0_179 = arith.constant 0 : index
    %126 = vector.load %arg14[%c80_178, %c0_179] : memref<144x648xbf16, #tpu.memory_space<vmem>>, vector<16x648xbf16>
    tpu.vector_store %arg14[%c80_178, %c0_179], %125 {strides = array<i32>} : memref<144x648xbf16, #tpu.memory_space<vmem>>, vector<16x648xbf16>,
    %c0_180 = arith.constant 0 : index
    %c145_181 = arith.constant 145 : index
    %127 = vector.load %arg10[%c0_180, %c145_181] : memref<16x904xbf16, #tpu.memory_space<vmem>>, vector<16x648xbf16>
    %c96_182 = arith.constant 96 : index
    %c0_183 = arith.constant 0 : index
    %128 = vector.load %arg14[%c96_182, %c0_183] : memref<144x648xbf16, #tpu.memory_space<vmem>>, vector<16x648xbf16>
    tpu.vector_store %arg14[%c96_182, %c0_183], %127 {strides = array<i32>} : memref<144x648xbf16, #tpu.memory_space<vmem>>, vector<16x648xbf16>,
    %c0_184 = arith.constant 0 : index
    %c146_185 = arith.constant 146 : index
    %129 = vector.load %arg10[%c0_184, %c146_185] : memref<16x904xbf16, #tpu.memory_space<vmem>>, vector<16x648xbf16>
    %c112_186 = arith.constant 112 : index
    %c0_187 = arith.constant 0 : index
    %130 = vector.load %arg14[%c112_186, %c0_187] : memref<144x648xbf16, #tpu.memory_space<vmem>>, vector<16x648xbf16>
    tpu.vector_store %arg14[%c112_186, %c0_187], %129 {strides = array<i32>} : memref<144x648xbf16, #tpu.memory_space<vmem>>, vector<16x648xbf16>,
    %c0_188 = arith.constant 0 : index
    %c147_189 = arith.constant 147 : index
    %131 = vector.load %arg10[%c0_188, %c147_189] : memref<16x904xbf16, #tpu.memory_space<vmem>>, vector<16x648xbf16>
    %c128_190 = arith.constant 128 : index
    %c0_191 = arith.constant 0 : index
    %132 = vector.load %arg14[%c128_190, %c0_191] : memref<144x648xbf16, #tpu.memory_space<vmem>>, vector<16x648xbf16>
    tpu.vector_store %arg14[%c128_190, %c0_191], %131 {strides = array<i32>} : memref<144x648xbf16, #tpu.memory_space<vmem>>, vector<16x648xbf16>,
    %c0_192 = arith.constant 0 : index
    %c0_193 = arith.constant 0 : index
    %133 = vector.load %arg14[%c0_192, %c0_193] : memref<144x648xbf16, #tpu.memory_space<vmem>>, vector<144x648xbf16>
    %cst_194 = arith.constant dense<0.000000e+00> : vector<16x648xf32>
    %134 = tpu.matmul %113, %133, %cst_194 {dimension_numbers = #tpu.dot_dimension_numbers<[1], [0], [0], [1], [0, 0, 1, 1], [], []>} : vector<16x144xbf16>, vector<144x648xbf16>, vector<16x648xf32> -> vector<16x648xf32>
    %135 = arith.truncf %134 : vector<16x648xf32> to vector<16x648xbf16>
    %cst_195 = arith.constant dense<0.000000e+00> : vector<16x200xf32>
    %136 = tpu.matmul %135, %112, %cst_195 {dimension_numbers = #tpu.dot_dimension_numbers<[1], [0], [0], [1], [0, 0, 1, 1], [], []>} : vector<16x648xbf16>, vector<648x200xbf16>, vector<16x200xf32> -> vector<16x200xf32>
    %137 = vector.broadcast %114 : vector<16x1xf32> to vector<16x200xf32>
    %138 = arith.addf %136, %137 : vector<16x200xf32>
    %c0_196 = arith.constant 0 : index
    %c0_197 = arith.constant 0 : index
    %139 = vector.load %arg2[%c0_196, %c0_197] : memref<1x200xf32, #tpu.memory_space<vmem>>, vector<1x200xf32>
    %140 = vector.broadcast %139 : vector<1x200xf32> to vector<16x200xf32>
    %141 = arith.mulf %138, %140 : vector<16x200xf32>
    %cst_198 = arith.constant 0.000000e+00 : f32
    %142 = vector.broadcast %cst_198 : f32 to vector<16x200xf32>
    %143 = arith.maximumf %141, %142 : vector<16x200xf32>
    %144 = arith.truncf %143 : vector<16x200xf32> to vector<16x200xbf16>
    %c0_199 = arith.constant 0 : index
    %c128_200 = arith.constant 128 : index
    %145 = vector.load %arg13[%c0_199, %c128_200] : memref<16x456xbf16, #tpu.memory_space<vmem>>, vector<16x200xbf16>
    tpu.vector_store %arg13[%c0_199, %c128_200], %144 {strides = array<i32>} : memref<16x456xbf16, #tpu.memory_space<vmem>>, vector<16x200xbf16>,
    %c64_201 = arith.constant 64 : index
    %c0_202 = arith.constant 0 : index
    %146 = vector.load %arg4[%c64_201, %c0_202] : memref<96x144xbf16, #tpu.memory_space<vmem>>, vector<16x16xbf16>
    %c64_203 = arith.constant 64 : index
    %c0_204 = arith.constant 0 : index
    %147 = vector.load %arg5[%c64_203, %c0_204] : memref<96x1xf32, #tpu.memory_space<vmem>>, vector<16x1xf32>
    %c0_205 = arith.constant 0 : index
    %c128_206 = arith.constant 128 : index
    %148 = vector.load %arg10[%c0_205, %c128_206] : memref<16x904xbf16, #tpu.memory_space<vmem>>, vector<16x648xbf16>
    %cst_207 = arith.constant dense<0.000000e+00> : vector<16x200xf32>
    %149 = tpu.matmul %148, %112, %cst_207 {dimension_numbers = #tpu.dot_dimension_numbers<[1], [0], [0], [1], [0, 0, 1, 1], [], []>} : vector<16x648xbf16>, vector<648x200xbf16>, vector<16x200xf32> -> vector<16x200xf32>
    %150 = arith.truncf %149 : vector<16x200xf32> to vector<16x200xbf16>
    %cst_208 = arith.constant dense<0.000000e+00> : vector<16x200xf32>
    %151 = tpu.matmul %146, %150, %cst_208 {dimension_numbers = #tpu.dot_dimension_numbers<[1], [0], [0], [1], [0, 0, 1, 1], [], []>} : vector<16x16xbf16>, vector<16x200xbf16>, vector<16x200xf32> -> vector<16x200xf32>
    %152 = vector.broadcast %147 : vector<16x1xf32> to vector<16x200xf32>
    %153 = arith.addf %151, %152 : vector<16x200xf32>
    %c0_209 = arith.constant 0 : index
    %c0_210 = arith.constant 0 : index
    %154 = vector.load %arg2[%c0_209, %c0_210] : memref<1x200xf32, #tpu.memory_space<vmem>>, vector<1x200xf32>
    %155 = vector.broadcast %154 : vector<1x200xf32> to vector<16x200xf32>
    %156 = arith.mulf %153, %155 : vector<16x200xf32>
    %c80_211 = arith.constant 80 : index
    %c0_212 = arith.constant 0 : index
    %157 = vector.load %arg4[%c80_211, %c0_212] : memref<96x144xbf16, #tpu.memory_space<vmem>>, vector<16x144xbf16>
    %c80_213 = arith.constant 80 : index
    %c0_214 = arith.constant 0 : index
    %158 = vector.load %arg5[%c80_213, %c0_214] : memref<96x1xf32, #tpu.memory_space<vmem>>, vector<16x1xf32>
    %c0_215 = arith.constant 0 : index
    %c117 = arith.constant 117 : index
    %159 = vector.load %arg13[%c0_215, %c117] : memref<16x456xbf16, #tpu.memory_space<vmem>>, vector<16x200xbf16>
    %c0_216 = arith.constant 0 : index
    %c0_217 = arith.constant 0 : index
    %160 = vector.load %arg14[%c0_216, %c0_217] : memref<144x648xbf16, #tpu.memory_space<vmem>>, vector<16x200xbf16>
    tpu.vector_store %arg14[%c0_216, %c0_217], %159 {strides = array<i32>} : memref<144x648xbf16, #tpu.memory_space<vmem>>, vector<16x200xbf16>,
    %c0_218 = arith.constant 0 : index
    %c118 = arith.constant 118 : index
    %161 = vector.load %arg13[%c0_218, %c118] : memref<16x456xbf16, #tpu.memory_space<vmem>>, vector<16x200xbf16>
    %c16_219 = arith.constant 16 : index
    %c0_220 = arith.constant 0 : index
    %162 = vector.load %arg14[%c16_219, %c0_220] : memref<144x648xbf16, #tpu.memory_space<vmem>>, vector<16x200xbf16>
    tpu.vector_store %arg14[%c16_219, %c0_220], %161 {strides = array<i32>} : memref<144x648xbf16, #tpu.memory_space<vmem>>, vector<16x200xbf16>,
    %c0_221 = arith.constant 0 : index
    %c119 = arith.constant 119 : index
    %163 = vector.load %arg13[%c0_221, %c119] : memref<16x456xbf16, #tpu.memory_space<vmem>>, vector<16x200xbf16>
    %c32_222 = arith.constant 32 : index
    %c0_223 = arith.constant 0 : index
    %164 = vector.load %arg14[%c32_222, %c0_223] : memref<144x648xbf16, #tpu.memory_space<vmem>>, vector<16x200xbf16>
    tpu.vector_store %arg14[%c32_222, %c0_223], %163 {strides = array<i32>} : memref<144x648xbf16, #tpu.memory_space<vmem>>, vector<16x200xbf16>,
    %c0_224 = arith.constant 0 : index
    %c127_225 = arith.constant 127 : index
    %165 = vector.load %arg13[%c0_224, %c127_225] : memref<16x456xbf16, #tpu.memory_space<vmem>>, vector<16x200xbf16>
    %c48_226 = arith.constant 48 : index
    %c0_227 = arith.constant 0 : index
    %166 = vector.load %arg14[%c48_226, %c0_227] : memref<144x648xbf16, #tpu.memory_space<vmem>>, vector<16x200xbf16>
    tpu.vector_store %arg14[%c48_226, %c0_227], %165 {strides = array<i32>} : memref<144x648xbf16, #tpu.memory_space<vmem>>, vector<16x200xbf16>,
    %c0_228 = arith.constant 0 : index
    %c128_229 = arith.constant 128 : index
    %167 = vector.load %arg13[%c0_228, %c128_229] : memref<16x456xbf16, #tpu.memory_space<vmem>>, vector<16x200xbf16>
    %c64_230 = arith.constant 64 : index
    %c0_231 = arith.constant 0 : index
    %168 = vector.load %arg14[%c64_230, %c0_231] : memref<144x648xbf16, #tpu.memory_space<vmem>>, vector<16x200xbf16>
    tpu.vector_store %arg14[%c64_230, %c0_231], %167 {strides = array<i32>} : memref<144x648xbf16, #tpu.memory_space<vmem>>, vector<16x200xbf16>,
    %c0_232 = arith.constant 0 : index
    %c129_233 = arith.constant 129 : index
    %169 = vector.load %arg13[%c0_232, %c129_233] : memref<16x456xbf16, #tpu.memory_space<vmem>>, vector<16x200xbf16>
    %c80_234 = arith.constant 80 : index
    %c0_235 = arith.constant 0 : index
    %170 = vector.load %arg14[%c80_234, %c0_235] : memref<144x648xbf16, #tpu.memory_space<vmem>>, vector<16x200xbf16>
    tpu.vector_store %arg14[%c80_234, %c0_235], %169 {strides = array<i32>} : memref<144x648xbf16, #tpu.memory_space<vmem>>, vector<16x200xbf16>,
    %c0_236 = arith.constant 0 : index
    %c137 = arith.constant 137 : index
    %171 = vector.load %arg13[%c0_236, %c137] : memref<16x456xbf16, #tpu.memory_space<vmem>>, vector<16x200xbf16>
    %c96_237 = arith.constant 96 : index
    %c0_238 = arith.constant 0 : index
    %172 = vector.load %arg14[%c96_237, %c0_238] : memref<144x648xbf16, #tpu.memory_space<vmem>>, vector<16x200xbf16>
    tpu.vector_store %arg14[%c96_237, %c0_238], %171 {strides = array<i32>} : memref<144x648xbf16, #tpu.memory_space<vmem>>, vector<16x200xbf16>,
    %c0_239 = arith.constant 0 : index
    %c138 = arith.constant 138 : index
    %173 = vector.load %arg13[%c0_239, %c138] : memref<16x456xbf16, #tpu.memory_space<vmem>>, vector<16x200xbf16>
    %c112_240 = arith.constant 112 : index
    %c0_241 = arith.constant 0 : index
    %174 = vector.load %arg14[%c112_240, %c0_241] : memref<144x648xbf16, #tpu.memory_space<vmem>>, vector<16x200xbf16>
    tpu.vector_store %arg14[%c112_240, %c0_241], %173 {strides = array<i32>} : memref<144x648xbf16, #tpu.memory_space<vmem>>, vector<16x200xbf16>,
    %c0_242 = arith.constant 0 : index
    %c139 = arith.constant 139 : index
    %175 = vector.load %arg13[%c0_242, %c139] : memref<16x456xbf16, #tpu.memory_space<vmem>>, vector<16x200xbf16>
    %c128_243 = arith.constant 128 : index
    %c0_244 = arith.constant 0 : index
    %176 = vector.load %arg14[%c128_243, %c0_244] : memref<144x648xbf16, #tpu.memory_space<vmem>>, vector<16x200xbf16>
    tpu.vector_store %arg14[%c128_243, %c0_244], %175 {strides = array<i32>} : memref<144x648xbf16, #tpu.memory_space<vmem>>, vector<16x200xbf16>,
    %c0_245 = arith.constant 0 : index
    %c0_246 = arith.constant 0 : index
    %177 = vector.load %arg14[%c0_245, %c0_246] : memref<144x648xbf16, #tpu.memory_space<vmem>>, vector<144x200xbf16>
    %cst_247 = arith.constant dense<0.000000e+00> : vector<16x200xf32>
    %178 = tpu.matmul %157, %177, %cst_247 {dimension_numbers = #tpu.dot_dimension_numbers<[1], [0], [0], [1], [0, 0, 1, 1], [], []>} : vector<16x144xbf16>, vector<144x200xbf16>, vector<16x200xf32> -> vector<16x200xf32>
    %179 = vector.broadcast %158 : vector<16x1xf32> to vector<16x200xf32>
    %180 = arith.addf %178, %179 : vector<16x200xf32>
    %181 = arith.addf %180, %156 : vector<16x200xf32>
    %c0_248 = arith.constant 0 : index
    %c0_249 = arith.constant 0 : index
    %182 = vector.load %arg2[%c0_248, %c0_249] : memref<1x200xf32, #tpu.memory_space<vmem>>, vector<1x200xf32>
    %183 = vector.broadcast %182 : vector<1x200xf32> to vector<16x200xf32>
    %184 = arith.mulf %181, %183 : vector<16x200xf32>
    %cst_250 = arith.constant 0.000000e+00 : f32
    %185 = vector.broadcast %cst_250 : f32 to vector<16x200xf32>
    %186 = arith.maximumf %184, %185 : vector<16x200xf32>
    %187 = arith.truncf %186 : vector<16x200xf32> to vector<16x200xbf16>
    %c0_251 = arith.constant 0 : index
    %c128_252 = arith.constant 128 : index
    %188 = vector.load %arg12[%c0_251, %c128_252] : memref<16x456xbf16, #tpu.memory_space<vmem>>, vector<16x200xbf16>
    tpu.vector_store %arg12[%c0_251, %c128_252], %187 {strides = array<i32>} : memref<16x456xbf16, #tpu.memory_space<vmem>>, vector<16x200xbf16>,
    %c0_253 = arith.constant 0 : index
    %c128_254 = arith.constant 128 : index
    %189 = vector.load %arg12[%c0_253, %c128_254] : memref<16x456xbf16, #tpu.memory_space<vmem>>, vector<16x200xbf16>
    %c0_255 = arith.constant 0 : index
    %c0_256 = arith.constant 0 : index
    %190 = vector.load %arg6[%c0_255, %c0_256] : memref<200x2xbf16, #tpu.memory_space<vmem>>, vector<200x2xbf16>
    %cst_257 = arith.constant dense<0.000000e+00> : vector<16x2xf32>
    %191 = tpu.matmul %189, %190, %cst_257 {dimension_numbers = #tpu.dot_dimension_numbers<[1], [0], [0], [1], [0, 0, 1, 1], [], []>} : vector<16x200xbf16>, vector<200x2xbf16>, vector<16x2xf32> -> vector<16x2xf32>
    %c0_258 = arith.constant 0 : index
    %c0_259 = arith.constant 0 : index
    %192 = vector.load %arg7[%c0_258, %c0_259] : memref<10x16xf32, #tpu.memory_space<vmem>>, vector<10x16xf32>
    %cst_260 = arith.constant dense<0.000000e+00> : vector<10x2xf32>
    %193 = tpu.matmul %192, %191, %cst_260 {dimension_numbers = #tpu.dot_dimension_numbers<[1], [0], [0], [1], [0, 0, 1, 1], [], []>} : vector<10x16xf32>, vector<16x2xf32>, vector<10x2xf32> -> vector<10x2xf32>
    %c0_261 = arith.constant 0 : index
    %c0_262 = arith.constant 0 : index
    %194 = vector.load %arg8[%c0_261, %c0_262] : memref<10x1xf32, #tpu.memory_space<vmem>>, vector<10x1xf32>
    %195 = vector.broadcast %194 : vector<10x1xf32> to vector<10x2xf32>
    %196 = arith.addf %193, %195 : vector<10x2xf32>
    %c0_263 = arith.constant 0 : index
    %c0_264 = arith.constant 0 : index
    %197 = vector.load %arg9[%c0_263, %c0_264] : memref<10x2xf32, #tpu.memory_space<vmem>>, vector<10x2xf32>
    tpu.vector_store %arg9[%c0_263, %c0_264], %196 {strides = array<i32>} : memref<10x2xf32, #tpu.memory_space<vmem>>, vector<10x2xf32>,
    return
  }
}

</mosaic_0001>

<llo_original>
// kernel: forward.1
$region0: #{forward.1}
  #allocation0 [shape = 'u32[]', space=smem, size = 0x4, offset = 0x4, fixed_abs, tag = 'smem constant byte address 0x4 - core index']
  #allocation1 [shape = 'u32[144,128]{1,0:T(1,128)}', space=vmem, size = 0x12000, scoped, tag = 'internal scratch']
  #allocation2 [shape = 'bf16[16,904]{1,0:T(16,128)(2,1)}', space=vmem, size = 0x8000, scoped, tag = 'scratch operand']
  #allocation3 [shape = 'bf16[16,904]{1,0:T(16,128)(2,1)}', space=vmem, size = 0x8000, scoped, tag = 'scratch operand']
  #allocation4 [shape = 'bf16[16,456]{1,0:T(16,128)(2,1)}', space=vmem, size = 0x4000, scoped, tag = 'scratch operand']
  #allocation5 [shape = 'bf16[16,456]{1,0:T(16,128)(2,1)}', space=vmem, size = 0x4000, scoped, tag = 'scratch operand']
  #allocation6 [shape = 'bf16[144,648]{1,0:T(16,128)(2,1)}', space=vmem, size = 0x36000, scoped, tag = 'scratch operand']
  %s0 = inlined_call_operand.vmem [shape: bf16[16,904], index: 0, kind: input, shape index: {}]
  %s1 = inlined_call_operand.vmem [shape: f32[1,648], index: 1, kind: input, shape index: {}]
  %s2 = inlined_call_operand.vmem [shape: f32[1,200], index: 2, kind: input, shape index: {}]
  %s3 = inlined_call_operand.vmem [shape: bf16[648,200], index: 3, kind: input, shape index: {}]
  %s4 = inlined_call_operand.vmem [shape: bf16[96,144], index: 4, kind: input, shape index: {}]
  %s5 = inlined_call_operand.vmem [shape: f32[96,1], index: 5, kind: input, shape index: {}]
  %s6 = inlined_call_operand.vmem [shape: bf16[200,2], index: 6, kind: input, shape index: {}]
  %s7 = inlined_call_operand.vmem [shape: f32[10,16], index: 7, kind: input, shape index: {}]
  %s8 = inlined_call_operand.vmem [shape: f32[10,1], index: 8, kind: input, shape index: {}]
  %s9 = inlined_call_operand.vmem [shape: f32[10,2], index: 9, kind: output, shape index: {}]
  %s10 = sld [smem:[#allocation0]]
  $region46: #{forward.1} parent=0
    _
  %s12 = ssub.s32 1, %s10
  %s13 = scalar_select 0, %s12, %s10
  // Predicated region
  $region2: #{forward.1} parent=0 // pred_check
    _
  $region3: #{forward.1} parent=0 // pred_check_branch
    %15 = sbr.rel (0) target = $region5
  $region4: #{forward.1} parent=0 // pred_region
    _
  $region5: #{forward.1} parent=0 // pred_fallthru
    _
  // Predicated region
  $region6: #{forward.1} parent=0 // pred_check
    _
  $region7: #{forward.1} parent=0 // pred_check_branch
    %17 = sbr.rel (0) target = $region9
  $region8: #{forward.1} parent=0 // pred_region
    _
  $region9: #{forward.1} parent=0 // pred_fallthru
    _
  // Predicated region
  $region10: #{forward.1} parent=0 // pred_check
    _
  $region11: #{forward.1} parent=0 // pred_check_branch
    %19 = sbr.rel (0) target = $region13
  $region12: #{forward.1} parent=0 // pred_region
    _
  $region13: #{forward.1} parent=0 // pred_fallthru
    _
  // Predicated region
  $region14: #{forward.1} parent=0 // pred_check
    _
  $region15: #{forward.1} parent=0 // pred_check_branch
    %21 = sbr.rel (0) target = $region17
  $region16: #{forward.1} parent=0 // pred_region
    _
  $region17: #{forward.1} parent=0 // pred_fallthru
    _
  // Predicated region
  $region18: #{forward.1} parent=0 // pred_check
    _
  $region19: #{forward.1} parent=0 // pred_check_branch
    %23 = sbr.rel (0) target = $region21
  $region20: #{forward.1} parent=0 // pred_region
    _
  $region21: #{forward.1} parent=0 // pred_fallthru
    _
  // Predicated region
  $region22: #{forward.1} parent=0 // pred_check
    _
  $region23: #{forward.1} parent=0 // pred_check_branch
    %25 = sbr.rel (0) target = $region25
  $region24: #{forward.1} parent=0 // pred_region
    _
  $region25: #{forward.1} parent=0 // pred_fallthru
    _
  // Predicated region
  $region26: #{forward.1} parent=0 // pred_check
    _
  $region27: #{forward.1} parent=0 // pred_check_branch
    %27 = sbr.rel (0) target = $region29
  $region28: #{forward.1} parent=0 // pred_region
    _
  $region29: #{forward.1} parent=0 // pred_fallthru
    _
  // Predicated region
  $region30: #{forward.1} parent=0 // pred_check
    _
  $region31: #{forward.1} parent=0 // pred_check_branch
    %29 = sbr.rel (0) target = $region33
  $region32: #{forward.1} parent=0 // pred_region
    _
  $region33: #{forward.1} parent=0 // pred_fallthru
    _
  // Predicated region
  $region34: #{forward.1} parent=0 // pred_check
    _
  $region35: #{forward.1} parent=0 // pred_check_branch
    %31 = sbr.rel (0) target = $region37
  $region36: #{forward.1} parent=0 // pred_region
    _
  $region37: #{forward.1} parent=0 // pred_fallthru
    _
  %33 = vst [vmem:[#allocation2] sm:$0xff] 0
  %vm34 = vcmask 1047616
  %35 = vst.msk [vmem:[#allocation2 + $0x30] sm:$0xff] %vm34, 0
  %vm36 = vcmask 64512
  %37 = vst.msk [vmem:[#allocation2 + $0x38] sm:$0xff] %vm36, 0
  %38 = vst [vmem:[#allocation3] sm:$0xff] 0
  %39 = vst.msk [vmem:[#allocation3 + $0x30] sm:$0xff] %vm34, 0
  %40 = vst.msk [vmem:[#allocation3 + $0x38] sm:$0xff] %vm36, 0
  %41 = vst [vmem:[#allocation4] sm:$0xff] 0
  %vm42 = vcmask 1048128
  %43 = vst.msk [vmem:[#allocation4 + $0x10] sm:$0xff] %vm42, 0
  %vm44 = vcmask 588800
  %45 = vst.msk [vmem:[#allocation4 + $0x18] sm:$0xff] %vm44, 0
  %46 = vst [vmem:[#allocation5] sm:$0xff] 0
  %47 = vst.msk [vmem:[#allocation5 + $0x10] sm:$0xff] %vm42, 0
  %48 = vst.msk [vmem:[#allocation5 + $0x18] sm:$0xff] %vm44, 0
  %v49 = vld [vmem:[%s4] sm:$0xff]
  %v50 = vld [vmem:[%s4 + $0x8] sm:$0xff]
  %v51 = vld [vmem:[%s5] sm:$0xff]
  %v52 = vld [vmem:[%s5 + $0x8] sm:$0xff]
  %v53 = vld [vmem:[%s0] sm:$0xff]
  %v54 = vld [vmem:[%s0 + $0x8] sm:$0xff]
  %v55 = vld [vmem:[%s0 + $0x10] sm:$0xff]
  %v56 = vld [vmem:[%s0 + $0x20] sm:$0xff]
  %v57 = vld [vmem:[%s0 + $0x28] sm:$0xff]
  %v58 = vld [vmem:[%s0 + $0x30] sm:$0xff]
  %v65 = vunpack.c.l.b16 %v53
  %v66 = vunpack.c.h.b16 %v53
  %v67 = vunpack.c.l.b16 %v54
  %v68 = vunpack.c.h.b16 %v54
  %v69 = vunpack.c.l.b16 %v55
  %v70 = vunpack.c.h.b16 %v55
  %v71 = vunpack.c.l.b16 %v56
  %v72 = vunpack.c.h.b16 %v56
  %v73 = vunpack.c.l.b16 %v57
  %v74 = vunpack.c.h.b16 %v57
  %v75 = vunpack.c.l.b16 %v58
  %v76 = vunpack.c.h.b16 %v58
  %v77 = vpack.c.b16 %v71, %v65
  %v78 = vpack.c.b16 %v72, %v66
  %v79 = vpack.c.b16 %v73, %v67
  %v80 = vpack.c.b16 %v74, %v68
  %v81 = vpack.c.b16 %v75, %v69
  %v82 = vpack.c.b16 %v76, %v70
  %83 = vrot.lane.b32.xlu0 %v77, 19
  %v84 = vpop.permute.xlu0 %83
  %85 = vrot.lane.b32.xlu0 %v78, 19
  %v86 = vpop.permute.xlu0 %85
  %87 = vrot.lane.b32.xlu0 %v79, 19
  %v88 = vpop.permute.xlu0 %87
  %89 = vrot.lane.b32.xlu0 %v80, 19
  %v90 = vpop.permute.xlu0 %89
  %91 = vrot.lane.b32.xlu0 %v81, 19
  %v92 = vpop.permute.xlu0 %91
  %93 = vrot.lane.b32.xlu0 %v82, 19
  %v94 = vpop.permute.xlu0 %93
  %vm95 = vcmask 154624
  %v96 = vsel %vm95, %v84, %v86
  %v97 = vsel %vm95, %v86, %v88
  %v98 = vsel %vm95, %v88, %v90
  %v99 = vsel %vm95, %v90, %v92
  %v100 = vsel %vm95, %v92, %v94
  %107 = vst [vmem:[#allocation6] sm:$0xff] %v96
  %108 = vst [vmem:[#allocation6 + $0x8] sm:$0xff] %v97
  %109 = vst [vmem:[#allocation6 + $0x10] sm:$0xff] %v98
  %110 = vst [vmem:[#allocation6 + $0x18] sm:$0xff] %v99
  %111 = vst [vmem:[#allocation6 + $0x20] sm:$0xff] %v100
  %112 = vst.msk [vmem:[#allocation6 + $0x28] sm:$0xff] %vm36, %v94
  %v113 = vld [vmem:[%s0] sm:$0xff]
  %v114 = vld [vmem:[%s0 + $0x8] sm:$0xff]
  %v115 = vld [vmem:[%s0 + $0x10] sm:$0xff]
  %v116 = vld [vmem:[%s0 + $0x20] sm:$0xff]
  %v117 = vld [vmem:[%s0 + $0x28] sm:$0xff]
  %v118 = vld [vmem:[%s0 + $0x30] sm:$0xff]
  %v125 = vunpack.c.l.b16 %v113
  %v126 = vunpack.c.h.b16 %v113
  %v127 = vunpack.c.l.b16 %v114
  %v128 = vunpack.c.h.b16 %v114
  %v129 = vunpack.c.l.b16 %v115
  %v130 = vunpack.c.h.b16 %v115
  %v131 = vunpack.c.l.b16 %v116
  %v132 = vunpack.c.h.b16 %v116
  %v133 = vunpack.c.l.b16 %v117
  %v134 = vunpack.c.h.b16 %v117
  %v135 = vunpack.c.l.b16 %v118
  %v136 = vunpack.c.h.b16 %v118
  %v137 = vpack.c.b16 %v131, %v125
  %v138 = vpack.c.b16 %v132, %v126
  %v139 = vpack.c.b16 %v133, %v127
  %v140 = vpack.c.b16 %v134, %v128
  %v141 = vpack.c.b16 %v135, %v129
  %v142 = vpack.c.b16 %v136, %v130
  %143 = vrot.lane.b32.xlu0 %v137, 18
  %v144 = vpop.permute.xlu0 %143
  %145 = vrot.lane.b32.xlu0 %v138, 18
  %v146 = vpop.permute.xlu0 %145
  %147 = vrot.lane.b32.xlu0 %v139, 18
  %v148 = vpop.permute.xlu0 %147
  %149 = vrot.lane.b32.xlu0 %v140, 18
  %v150 = vpop.permute.xlu0 %149
  %151 = vrot.lane.b32.xlu0 %v141, 18
  %v152 = vpop.permute.xlu0 %151
  %153 = vrot.lane.b32.xlu0 %v142, 18
  %v154 = vpop.permute.xlu0 %153
  %vm155 = vcmask 146432
  %v156 = vsel %vm155, %v144, %v146
  %v157 = vsel %vm155, %v146, %v148
  %v158 = vsel %vm155, %v148, %v150
  %v159 = vsel %vm155, %v150, %v152
  %v160 = vsel %vm155, %v152, %v154
  %167 = vst [vmem:[#allocation6 + $0x30] sm:$0xff] %v156
  %168 = vst [vmem:[#allocation6 + $0x38] sm:$0xff] %v157
  %169 = vst [vmem:[#allocation6 + $0x40] sm:$0xff] %v158
  %170 = vst [vmem:[#allocation6 + $0x48] sm:$0xff] %v159
  %171 = vst [vmem:[#allocation6 + $0x50] sm:$0xff] %v160
  %172 = vst.msk [vmem:[#allocation6 + $0x58] sm:$0xff] %vm36, %v154
  %v173 = vld [vmem:[%s0] sm:$0xff]
  %v174 = vld [vmem:[%s0 + $0x8] sm:$0xff]
  %v175 = vld [vmem:[%s0 + $0x10] sm:$0xff]
  %v176 = vld [vmem:[%s0 + $0x20] sm:$0xff]
  %v177 = vld [vmem:[%s0 + $0x28] sm:$0xff]
  %v178 = vld [vmem:[%s0 + $0x30] sm:$0xff]
  %v185 = vunpack.c.l.b16 %v173
  %v186 = vunpack.c.h.b16 %v173
  %v187 = vunpack.c.l.b16 %v174
  %v188 = vunpack.c.h.b16 %v174
  %v189 = vunpack.c.l.b16 %v175
  %v190 = vunpack.c.h.b16 %v175
  %v191 = vunpack.c.l.b16 %v176
  %v192 = vunpack.c.h.b16 %v176
  %v193 = vunpack.c.l.b16 %v177
  %v194 = vunpack.c.h.b16 %v177
  %v195 = vunpack.c.l.b16 %v178
  %v196 = vunpack.c.h.b16 %v178
  %v197 = vpack.c.b16 %v191, %v185
  %v198 = vpack.c.b16 %v192, %v186
  %v199 = vpack.c.b16 %v193, %v187
  %v200 = vpack.c.b16 %v194, %v188
  %v201 = vpack.c.b16 %v195, %v189
  %v202 = vpack.c.b16 %v196, %v190
  %203 = vrot.lane.b32.xlu0 %v197, 17
  %v204 = vpop.permute.xlu0 %203
  %205 = vrot.lane.b32.xlu0 %v198, 17
  %v206 = vpop.permute.xlu0 %205
  %207 = vrot.lane.b32.xlu0 %v199, 17
  %v208 = vpop.permute.xlu0 %207
  %209 = vrot.lane.b32.xlu0 %v200, 17
  %v210 = vpop.permute.xlu0 %209
  %211 = vrot.lane.b32.xlu0 %v201, 17
  %v212 = vpop.permute.xlu0 %211
  %213 = vrot.lane.b32.xlu0 %v202, 17
  %v214 = vpop.permute.xlu0 %213
  %vm215 = vcmask 138240
  %v216 = vsel %vm215, %v204, %v206
  %v217 = vsel %vm215, %v206, %v208
  %v218 = vsel %vm215, %v208, %v210
  %v219 = vsel %vm215, %v210, %v212
  %v220 = vsel %vm215, %v212, %v214
  %227 = vst [vmem:[#allocation6 + $0x60] sm:$0xff] %v216
  %228 = vst [vmem:[#allocation6 + $0x68] sm:$0xff] %v217
  %229 = vst [vmem:[#allocation6 + $0x70] sm:$0xff] %v218
  %230 = vst [vmem:[#allocation6 + $0x78] sm:$0xff] %v219
  %231 = vst [vmem:[#allocation6 + $0x80] sm:$0xff] %v220
  %232 = vst.msk [vmem:[#allocation6 + $0x88] sm:$0xff] %vm36, %v214
  %v233 = vld [vmem:[%s0] sm:$0xff]
  %v234 = vld [vmem:[%s0 + $0x8] sm:$0xff]
  %v235 = vld [vmem:[%s0 + $0x10] sm:$0xff]
  %v236 = vld [vmem:[%s0 + $0x18] sm:$0xf]
  %v237 = vld [vmem:[%s0 + $0x20] sm:$0xff]
  %v238 = vld [vmem:[%s0 + $0x28] sm:$0xff]
  %v239 = vld [vmem:[%s0 + $0x30] sm:$0xff]
  %v240 = vld [vmem:[%s0 + $0x38] sm:$0xf]
  %v249 = vunpack.c.l.b16 %v233
  %v250 = vunpack.c.h.b16 %v233
  %v251 = vunpack.c.l.b16 %v234
  %v252 = vunpack.c.h.b16 %v234
  %v253 = vunpack.c.l.b16 %v235
  %v254 = vunpack.c.h.b16 %v235
  %v255 = vunpack.c.l.b16 %v236
  %v256 = vunpack.c.l.b16 %v237
  %v257 = vunpack.c.h.b16 %v237
  %v258 = vunpack.c.l.b16 %v238
  %v259 = vunpack.c.h.b16 %v238
  %v260 = vunpack.c.l.b16 %v239
  %v261 = vunpack.c.h.b16 %v239
  %v262 = vunpack.c.l.b16 %v240
  %v263 = vpack.c.b16 %v256, %v249
  %v264 = vpack.c.b16 %v257, %v250
  %v265 = vpack.c.b16 %v258, %v251
  %v266 = vpack.c.b16 %v259, %v252
  %v267 = vpack.c.b16 %v260, %v253
  %v268 = vpack.c.b16 %v261, %v254
  %v269 = vpack.c.b16 %v262, %v255
  %270 = vrot.lane.b32.xlu0 %v263, 1
  %v271 = vpop.permute.xlu0 %270
  %272 = vrot.lane.b32.xlu0 %v264, 1
  %v273 = vpop.permute.xlu0 %272
  %274 = vrot.lane.b32.xlu0 %v265, 1
  %v275 = vpop.permute.xlu0 %274
  %276 = vrot.lane.b32.xlu0 %v266, 1
  %v277 = vpop.permute.xlu0 %276
  %278 = vrot.lane.b32.xlu0 %v267, 1
  %v279 = vpop.permute.xlu0 %278
  %280 = vrot.lane.b32.xlu0 %v268, 1
  %v281 = vpop.permute.xlu0 %280
  %282 = vrot.lane.b32.xlu0 %v269, 1
  %v283 = vpop.permute.xlu0 %282
  %vm284 = vcmask 7168
  %v285 = vsel %vm284, %v271, %v273
  %v286 = vsel %vm284, %v273, %v275
  %v287 = vsel %vm284, %v275, %v277
  %v288 = vsel %vm284, %v277, %v279
  %v289 = vsel %vm284, %v279, %v281
  %v290 = vsel %vm284, %v281, %v283
  %297 = vst [vmem:[#allocation6 + $0x90] sm:$0xff] %v285
  %298 = vst [vmem:[#allocation6 + $0x98] sm:$0xff] %v286
  %299 = vst [vmem:[#allocation6 + $0xa0] sm:$0xff] %v287
  %300 = vst [vmem:[#allocation6 + $0xa8] sm:$0xff] %v288
  %301 = vst [vmem:[#allocation6 + $0xb0] sm:$0xff] %v289
  %302 = vst.msk [vmem:[#allocation6 + $0xb8] sm:$0xff] %vm36, %v290
  %v303 = vld [vmem:[%s0 + $0x4] sm:$0xff]
  %v304 = vld [vmem:[%s0 + $0xc] sm:$0xff]
  %v305 = vld [vmem:[%s0 + $0x14] sm:$0xff]
  %v306 = vld [vmem:[%s0 + $0x24] sm:$0xff]
  %v307 = vld [vmem:[%s0 + $0x2c] sm:$0xff]
  %v308 = vld [vmem:[%s0 + $0x34] sm:$0xff]
  %v315 = vunpack.c.l.b16 %v303
  %v316 = vunpack.c.h.b16 %v303
  %v317 = vunpack.c.l.b16 %v304
  %v318 = vunpack.c.h.b16 %v304
  %v319 = vunpack.c.l.b16 %v305
  %v320 = vunpack.c.h.b16 %v305
  %v321 = vunpack.c.l.b16 %v306
  %v322 = vunpack.c.h.b16 %v306
  %v323 = vunpack.c.l.b16 %v307
  %v324 = vunpack.c.h.b16 %v307
  %v325 = vunpack.c.l.b16 %v308
  %v326 = vunpack.c.h.b16 %v308
  %v327 = vpack.c.b16 %v321, %v315
  %v328 = vpack.c.b16 %v322, %v316
  %v329 = vpack.c.b16 %v323, %v317
  %v330 = vpack.c.b16 %v324, %v318
  %v331 = vpack.c.b16 %v325, %v319
  %v332 = vpack.c.b16 %v326, %v320
  %339 = vst [vmem:[#allocation6 + $0xc0] sm:$0xff] %v327
  %340 = vst [vmem:[#allocation6 + $0xc8] sm:$0xff] %v328
  %341 = vst [vmem:[#allocation6 + $0xd0] sm:$0xff] %v329
  %342 = vst [vmem:[#allocation6 + $0xd8] sm:$0xff] %v330
  %343 = vst [vmem:[#allocation6 + $0xe0] sm:$0xff] %v331
  %344 = vst.msk [vmem:[#allocation6 + $0xe8] sm:$0xff] %vm36, %v332
  %v345 = vld [vmem:[%s0 + $0x4] sm:$0xff]
  %v346 = vld [vmem:[%s0 + $0xc] sm:$0xff]
  %v347 = vld [vmem:[%s0 + $0x14] sm:$0xff]
  %v348 = vld [vmem:[%s0 + $0x24] sm:$0xff]
  %v349 = vld [vmem:[%s0 + $0x2c] sm:$0xff]
  %v350 = vld [vmem:[%s0 + $0x34] sm:$0xff]
  %v357 = vunpack.c.l.b16 %v345
  %v358 = vunpack.c.h.b16 %v345
  %v359 = vunpack.c.l.b16 %v346
  %v360 = vunpack.c.h.b16 %v346
  %v361 = vunpack.c.l.b16 %v347
  %v362 = vunpack.c.h.b16 %v347
  %v363 = vunpack.c.l.b16 %v348
  %v364 = vunpack.c.h.b16 %v348
  %v365 = vunpack.c.l.b16 %v349
  %v366 = vunpack.c.h.b16 %v349
  %v367 = vunpack.c.l.b16 %v350
  %v368 = vunpack.c.h.b16 %v350
  %v369 = vpack.c.b16 %v363, %v357
  %v370 = vpack.c.b16 %v364, %v358
  %v371 = vpack.c.b16 %v365, %v359
  %v372 = vpack.c.b16 %v366, %v360
  %v373 = vpack.c.b16 %v367, %v361
  %v374 = vpack.c.b16 %v368, %v362
  %375 = vrot.lane.b32.xlu0 %v369, 127
  %v376 = vpop.permute.xlu0 %375
  %377 = vrot.lane.b32.xlu0 %v370, 127
  %v378 = vpop.permute.xlu0 %377
  %379 = vrot.lane.b32.xlu0 %v371, 127
  %v380 = vpop.permute.xlu0 %379
  %381 = vrot.lane.b32.xlu0 %v372, 127
  %v382 = vpop.permute.xlu0 %381
  %383 = vrot.lane.b32.xlu0 %v373, 127
  %v384 = vpop.permute.xlu0 %383
  %385 = vrot.lane.b32.xlu0 %v374, 127
  %v386 = vpop.permute.xlu0 %385
  %vm387 = vcmask 1039360
  %v388 = vsel %vm387, %v376, %v378
  %v389 = vsel %vm387, %v378, %v380
  %v390 = vsel %vm387, %v380, %v382
  %v391 = vsel %vm387, %v382, %v384
  %v392 = vsel %vm387, %v384, %v386
  %399 = vst [vmem:[#allocation6 + $0xf0] sm:$0xff] %v388
  %400 = vst [vmem:[#allocation6 + $0xf8] sm:$0xff] %v389
  %401 = vst [vmem:[#allocation6 + $0x100] sm:$0xff] %v390
  %402 = vst [vmem:[#allocation6 + $0x108] sm:$0xff] %v391
  %403 = vst [vmem:[#allocation6 + $0x110] sm:$0xff] %v392
  %404 = vst.msk [vmem:[#allocation6 + $0x118] sm:$0xff] %vm36, %v386
  %v405 = vld [vmem:[%s0 + $0x4] sm:$0xff]
  %v406 = vld [vmem:[%s0 + $0xc] sm:$0xff]
  %v407 = vld [vmem:[%s0 + $0x14] sm:$0xff]
  %v408 = vld [vmem:[%s0 + $0x24] sm:$0xff]
  %v409 = vld [vmem:[%s0 + $0x2c] sm:$0xff]
  %v410 = vld [vmem:[%s0 + $0x34] sm:$0xff]
  %v417 = vunpack.c.l.b16 %v405
  %v418 = vunpack.c.h.b16 %v405
  %v419 = vunpack.c.l.b16 %v406
  %v420 = vunpack.c.h.b16 %v406
  %v421 = vunpack.c.l.b16 %v407
  %v422 = vunpack.c.h.b16 %v407
  %v423 = vunpack.c.l.b16 %v408
  %v424 = vunpack.c.h.b16 %v408
  %v425 = vunpack.c.l.b16 %v409
  %v426 = vunpack.c.h.b16 %v409
  %v427 = vunpack.c.l.b16 %v410
  %v428 = vunpack.c.h.b16 %v410
  %v429 = vpack.c.b16 %v423, %v417
  %v430 = vpack.c.b16 %v424, %v418
  %v431 = vpack.c.b16 %v425, %v419
  %v432 = vpack.c.b16 %v426, %v420
  %v433 = vpack.c.b16 %v427, %v421
  %v434 = vpack.c.b16 %v428, %v422
  %435 = vrot.lane.b32.xlu0 %v429, 111
  %v436 = vpop.permute.xlu0 %435
  %437 = vrot.lane.b32.xlu0 %v430, 111
  %v438 = vpop.permute.xlu0 %437
  %439 = vrot.lane.b32.xlu0 %v431, 111
  %v440 = vpop.permute.xlu0 %439
  %441 = vrot.lane.b32.xlu0 %v432, 111
  %v442 = vpop.permute.xlu0 %441
  %443 = vrot.lane.b32.xlu0 %v433, 111
  %v444 = vpop.permute.xlu0 %443
  %445 = vrot.lane.b32.xlu0 %v434, 111
  %v446 = vpop.permute.xlu0 %445
  %vm447 = vcmask 908288
  %v448 = vsel %vm447, %v436, %v438
  %v449 = vsel %vm447, %v438, %v440
  %v450 = vsel %vm447, %v440, %v442
  %v451 = vsel %vm447, %v442, %v444
  %v452 = vsel %vm447, %v444, %v446
  %459 = vst [vmem:[#allocation6 + $0x120] sm:$0xff] %v448
  %460 = vst [vmem:[#allocation6 + $0x128] sm:$0xff] %v449
  %461 = vst [vmem:[#allocation6 + $0x130] sm:$0xff] %v450
  %462 = vst [vmem:[#allocation6 + $0x138] sm:$0xff] %v451
  %463 = vst [vmem:[#allocation6 + $0x140] sm:$0xff] %v452
  %464 = vst.msk [vmem:[#allocation6 + $0x148] sm:$0xff] %vm36, %v446
  %v465 = vld [vmem:[%s0 + $0x4] sm:$0xff]
  %v466 = vld [vmem:[%s0 + $0xc] sm:$0xff]
  %v467 = vld [vmem:[%s0 + $0x14] sm:$0xff]
  %v468 = vld [vmem:[%s0 + $0x24] sm:$0xff]
  %v469 = vld [vmem:[%s0 + $0x2c] sm:$0xff]
  %v470 = vld [vmem:[%s0 + $0x34] sm:$0xff]
  %v477 = vunpack.c.l.b16 %v465
  %v478 = vunpack.c.h.b16 %v465
  %v479 = vunpack.c.l.b16 %v466
  %v480 = vunpack.c.h.b16 %v466
  %v481 = vunpack.c.l.b16 %v467
  %v482 = vunpack.c.h.b16 %v467
  %v483 = vunpack.c.l.b16 %v468
  %v484 = vunpack.c.h.b16 %v468
  %v485 = vunpack.c.l.b16 %v469
  %v486 = vunpack.c.h.b16 %v469
  %v487 = vunpack.c.l.b16 %v470
  %v488 = vunpack.c.h.b16 %v470
  %v489 = vpack.c.b16 %v483, %v477
  %v490 = vpack.c.b16 %v484, %v478
  %v491 = vpack.c.b16 %v485, %v479
  %v492 = vpack.c.b16 %v486, %v480
  %v493 = vpack.c.b16 %v487, %v481
  %v494 = vpack.c.b16 %v488, %v482
  %495 = vrot.lane.b32.xlu0 %v489, 110
  %v496 = vpop.permute.xlu0 %495
  %497 = vrot.lane.b32.xlu0 %v490, 110
  %v498 = vpop.permute.xlu0 %497
  %499 = vrot.lane.b32.xlu0 %v491, 110
  %v500 = vpop.permute.xlu0 %499
  %501 = vrot.lane.b32.xlu0 %v492, 110
  %v502 = vpop.permute.xlu0 %501
  %503 = vrot.lane.b32.xlu0 %v493, 110
  %v504 = vpop.permute.xlu0 %503
  %505 = vrot.lane.b32.xlu0 %v494, 110
  %v506 = vpop.permute.xlu0 %505
  %vm507 = vcmask 900096
  %v508 = vsel %vm507, %v496, %v498
  %v509 = vsel %vm507, %v498, %v500
  %v510 = vsel %vm507, %v500, %v502
  %v511 = vsel %vm507, %v502, %v504
  %v512 = vsel %vm507, %v504, %v506
  %519 = vst [vmem:[#allocation6 + $0x150] sm:$0xff] %v508
  %520 = vst [vmem:[#allocation6 + $0x158] sm:$0xff] %v509
  %521 = vst [vmem:[#allocation6 + $0x160] sm:$0xff] %v510
  %522 = vst [vmem:[#allocation6 + $0x168] sm:$0xff] %v511
  %523 = vst [vmem:[#allocation6 + $0x170] sm:$0xff] %v512
  %524 = vst.msk [vmem:[#allocation6 + $0x178] sm:$0xff] %vm36, %v506
  %v525 = vld [vmem:[%s0 + $0x4] sm:$0xff]
  %v526 = vld [vmem:[%s0 + $0xc] sm:$0xff]
  %v527 = vld [vmem:[%s0 + $0x14] sm:$0xff]
  %v528 = vld [vmem:[%s0 + $0x24] sm:$0xff]
  %v529 = vld [vmem:[%s0 + $0x2c] sm:$0xff]
  %v530 = vld [vmem:[%s0 + $0x34] sm:$0xff]
  %v537 = vunpack.c.l.b16 %v525
  %v538 = vunpack.c.h.b16 %v525
  %v539 = vunpack.c.l.b16 %v526
  %v540 = vunpack.c.h.b16 %v526
  %v541 = vunpack.c.l.b16 %v527
  %v542 = vunpack.c.h.b16 %v527
  %v543 = vunpack.c.l.b16 %v528
  %v544 = vunpack.c.h.b16 %v528
  %v545 = vunpack.c.l.b16 %v529
  %v546 = vunpack.c.h.b16 %v529
  %v547 = vunpack.c.l.b16 %v530
  %v548 = vunpack.c.h.b16 %v530
  %v549 = vpack.c.b16 %v543, %v537
  %v550 = vpack.c.b16 %v544, %v538
  %v551 = vpack.c.b16 %v545, %v539
  %v552 = vpack.c.b16 %v546, %v540
  %v553 = vpack.c.b16 %v547, %v541
  %v554 = vpack.c.b16 %v548, %v542
  %555 = vrot.lane.b32.xlu0 %v549, 109
  %v556 = vpop.permute.xlu0 %555
  %557 = vrot.lane.b32.xlu0 %v550, 109
  %v558 = vpop.permute.xlu0 %557
  %559 = vrot.lane.b32.xlu0 %v551, 109
  %v560 = vpop.permute.xlu0 %559
  %561 = vrot.lane.b32.xlu0 %v552, 109
  %v562 = vpop.permute.xlu0 %561
  %563 = vrot.lane.b32.xlu0 %v553, 109
  %v564 = vpop.permute.xlu0 %563
  %565 = vrot.lane.b32.xlu0 %v554, 109
  %v566 = vpop.permute.xlu0 %565
  %vm567 = vcmask 891904
  %v568 = vsel %vm567, %v556, %v558
  %v569 = vsel %vm567, %v558, %v560
  %v570 = vsel %vm567, %v560, %v562
  %v571 = vsel %vm567, %v562, %v564
  %v572 = vsel %vm567, %v564, %v566
  %579 = vst [vmem:[#allocation6 + $0x180] sm:$0xff] %v568
  %580 = vst [vmem:[#allocation6 + $0x188] sm:$0xff] %v569
  %581 = vst [vmem:[#allocation6 + $0x190] sm:$0xff] %v570
  %582 = vst [vmem:[#allocation6 + $0x198] sm:$0xff] %v571
  %583 = vst [vmem:[#allocation6 + $0x1a0] sm:$0xff] %v572
  %584 = vst.msk [vmem:[#allocation6 + $0x1a8] sm:$0xff] %vm36, %v566
  %v585 = vld [vmem:[#allocation6] sm:$0xff]
  %v586 = vld [vmem:[#allocation6 + $0x8] sm:$0xff]
  %v587 = vld [vmem:[#allocation6 + $0x10] sm:$0xff]
  %v588 = vld [vmem:[#allocation6 + $0x18] sm:$0xff]
  %v589 = vld [vmem:[#allocation6 + $0x20] sm:$0xff]
  %v590 = vld [vmem:[#allocation6 + $0x28] sm:$0xff]
  %v591 = vld [vmem:[#allocation6 + $0x30] sm:$0xff]
  %v592 = vld [vmem:[#allocation6 + $0x38] sm:$0xff]
  %v593 = vld [vmem:[#allocation6 + $0x40] sm:$0xff]
  %v594 = vld [vmem:[#allocation6 + $0x48] sm:$0xff]
  %v595 = vld [vmem:[#allocation6 + $0x50] sm:$0xff]
  %v596 = vld [vmem:[#allocation6 + $0x58] sm:$0xff]
  %v597 = vld [vmem:[#allocation6 + $0x60] sm:$0xff]
  %v598 = vld [vmem:[#allocation6 + $0x68] sm:$0xff]
  %v599 = vld [vmem:[#allocation6 + $0x70] sm:$0xff]
  %v600 = vld [vmem:[#allocation6 + $0x78] sm:$0xff]
  %v601 = vld [vmem:[#allocation6 + $0x80] sm:$0xff]
  %v602 = vld [vmem:[#allocation6 + $0x88] sm:$0xff]
  %v603 = vld [vmem:[#allocation6 + $0x90] sm:$0xff]
  %v604 = vld [vmem:[#allocation6 + $0x98] sm:$0xff]
  %v605 = vld [vmem:[#allocation6 + $0xa0] sm:$0xff]
  %v606 = vld [vmem:[#allocation6 + $0xa8] sm:$0xff]
  %v607 = vld [vmem:[#allocation6 + $0xb0] sm:$0xff]
  %v608 = vld [vmem:[#allocation6 + $0xb8] sm:$0xff]
  %v609 = vld [vmem:[#allocation6 + $0xc0] sm:$0xff]
  %v610 = vld [vmem:[#allocation6 + $0xc8] sm:$0xff]
  %v611 = vld [vmem:[#allocation6 + $0xd0] sm:$0xff]
  %v612 = vld [vmem:[#allocation6 + $0xd8] sm:$0xff]
  %v613 = vld [vmem:[#allocation6 + $0xe0] sm:$0xff]
  %v614 = vld [vmem:[#allocation6 + $0xe8] sm:$0xff]
  %v615 = vld [vmem:[#allocation6 + $0xf0] sm:$0xff]
  %v616 = vld [vmem:[#allocation6 + $0xf8] sm:$0xff]
  %v617 = vld [vmem:[#allocation6 + $0x100] sm:$0xff]
  %v618 = vld [vmem:[#allocation6 + $0x108] sm:$0xff]
  %v619 = vld [vmem:[#allocation6 + $0x110] sm:$0xff]
  %v620 = vld [vmem:[#allocation6 + $0x118] sm:$0xff]
  %v621 = vld [vmem:[#allocation6 + $0x120] sm:$0xff]
  %v622 = vld [vmem:[#allocation6 + $0x128] sm:$0xff]
  %v623 = vld [vmem:[#allocation6 + $0x130] sm:$0xff]
  %v624 = vld [vmem:[#allocation6 + $0x138] sm:$0xff]
  %v625 = vld [vmem:[#allocation6 + $0x140] sm:$0xff]
  %v626 = vld [vmem:[#allocation6 + $0x148] sm:$0xff]
  %v627 = vld [vmem:[#allocation6 + $0x150] sm:$0xff]
  %v628 = vld [vmem:[#allocation6 + $0x158] sm:$0xff]
  %v629 = vld [vmem:[#allocation6 + $0x160] sm:$0xff]
  %v630 = vld [vmem:[#allocation6 + $0x168] sm:$0xff]
  %v631 = vld [vmem:[#allocation6 + $0x170] sm:$0xff]
  %v632 = vld [vmem:[#allocation6 + $0x178] sm:$0xff]
  %v633 = vld [vmem:[#allocation6 + $0x180] sm:$0xff]
  %v634 = vld [vmem:[#allocation6 + $0x188] sm:$0xff]
  %v635 = vld [vmem:[#allocation6 + $0x190] sm:$0xff]
  %v636 = vld [vmem:[#allocation6 + $0x198] sm:$0xff]
  %v637 = vld [vmem:[#allocation6 + $0x1a0] sm:$0xff]
  %v638 = vld [vmem:[#allocation6 + $0x1a8] sm:$0xff]
  %640 = vset.pattern.permute.xlu0 0
  %641 = vperm.xlu0 %640, %v51
  %v642 = vpop.permute.xlu0 %641
  %645 = vset.pattern.permute.xlu0 0
  %646 = vperm.xlu0 %645, %v52
  %v647 = vpop.permute.xlu0 %646
  %v651 = vunpack.c.l.b16 %v49
  %v652 = vunpack.c.h.b16 %v49
  %v653 = vunpack.c.l.b16 %v50
  %v654 = vunpack.c.h.b16 %v50
  %v655 = vpack.c.b16 %v653, %v651
  %v656 = vpack.c.b16 %v654, %v652
  %vm658 = vcmask 130048
  %v660 = vsel %vm658, %v656, 0
  %662 = vmatprep.subr.bf16.mxu0 %v586
  %663 = vmatpush1.bf16.msra.mxu0 %v585
  %664 = vmatprep.subr.bf16.mxu0 %v592
  %665 = vmatpush1.bf16.msra.mxu0 %v591
  %666 = vmatprep.subr.bf16.mxu0 %v598
  %667 = vmatpush1.bf16.msra.mxu0 %v597
  %668 = vmatprep.subr.bf16.mxu0 %v604
  %669 = vmatpush1.bf16.msra.mxu0 %v603
  %670 = vmatprep.subr.bf16.mxu0 %v610
  %671 = vmatpush1.bf16.msra.mxu0 %v609
  %672 = vmatprep.subr.bf16.mxu0 %v616
  %673 = vmatpush1.bf16.msra.mxu0 %v615
  %674 = vmatprep.subr.bf16.mxu0 %v622
  %675 = vmatpush1.bf16.msra.mxu0 %v621
  %676 = vmatprep.subr.bf16.mxu0 %v628
  %677 = vmatpush1.bf16.msra.mxu0 %v627
  %678 = vmatprep.subr.bf16.mxu0 %v634
  %679 = vmatpush1.bf16.msra.mxu0 %v633
  %680 = vmatprep.subr.bf16.mxu0 0
  %681 = vmatpush1.bf16.msra.mxu0 0
  %682 = vmatprep.subr.bf16.mxu0 0
  %683 = vmatpush1.bf16.msra.mxu0 0
  %684 = vmatprep.subr.bf16.mxu0 0
  %685 = vmatpush1.bf16.msra.mxu0 0
  %686 = vmatprep.subr.bf16.mxu0 0
  %687 = vmatpush1.bf16.msra.mxu0 0
  %688 = vmatprep.subr.bf16.mxu0 0
  %689 = vmatpush1.bf16.msra.mxu0 0
  %690 = vmatprep.subr.bf16.mxu0 0
  %691 = vmatpush1.bf16.msra.mxu0 0
  %692 = vmatprep.subr.bf16.mxu0 0
  %693 = vmatpush1.bf16.msra.mxu0 0
  %694 = vmatprep.mubr.bf16.mxu0 %v660
  %695 = vmatmul.mubr.bf16.gmra.mrb[0].mxu0 %v655
  %v696 = vpop.f32.mrb[0].mxu0
  %v697 = vadd.f32 %v642, %v696
  %v698 = vpop.f32.mrb[0].mxu0
  %v699 = vadd.f32 %v642, %v698
  %v700 = vpop.f32.mrb[0].mxu0
  %v701 = vadd.f32 %v647, %v700
  %v702 = vpop.f32.mrb[0].mxu0
  %v703 = vadd.f32 %v647, %v702
  %704 = vdwg.mxu0
  %705 = vmatprep.subr.bf16.mxu0 %v588
  %706 = vmatpush1.bf16.msra.mxu0 %v587
  %707 = vmatprep.subr.bf16.mxu0 %v594
  %708 = vmatpush1.bf16.msra.mxu0 %v593
  %709 = vmatprep.subr.bf16.mxu0 %v600
  %710 = vmatpush1.bf16.msra.mxu0 %v599
  %711 = vmatprep.subr.bf16.mxu0 %v606
  %712 = vmatpush1.bf16.msra.mxu0 %v605
  %713 = vmatprep.subr.bf16.mxu0 %v612
  %714 = vmatpush1.bf16.msra.mxu0 %v611
  %715 = vmatprep.subr.bf16.mxu0 %v618
  %716 = vmatpush1.bf16.msra.mxu0 %v617
  %717 = vmatprep.subr.bf16.mxu0 %v624
  %718 = vmatpush1.bf16.msra.mxu0 %v623
  %719 = vmatprep.subr.bf16.mxu0 %v630
  %720 = vmatpush1.bf16.msra.mxu0 %v629
  %721 = vmatprep.subr.bf16.mxu0 %v636
  %722 = vmatpush1.bf16.msra.mxu0 %v635
  %723 = vmatprep.subr.bf16.mxu0 0
  %724 = vmatpush1.bf16.msra.mxu0 0
  %725 = vmatprep.subr.bf16.mxu0 0
  %726 = vmatpush1.bf16.msra.mxu0 0
  %727 = vmatprep.subr.bf16.mxu0 0
  %728 = vmatpush1.bf16.msra.mxu0 0
  %729 = vmatprep.subr.bf16.mxu0 0
  %730 = vmatpush1.bf16.msra.mxu0 0
  %731 = vmatprep.subr.bf16.mxu0 0
  %732 = vmatpush1.bf16.msra.mxu0 0
  %733 = vmatprep.subr.bf16.mxu0 0
  %734 = vmatpush1.bf16.msra.mxu0 0
  %735 = vmatprep.subr.bf16.mxu0 0
  %736 = vmatpush1.bf16.msra.mxu0 0
  %737 = vmatprep.mubr.bf16.mxu0 %v660
  %738 = vmatmul.mubr.bf16.gmra.mrb[0].mxu0 %v655
  %v739 = vpop.f32.mrb[0].mxu0
  %v740 = vadd.f32 %v642, %v739
  %v741 = vpop.f32.mrb[0].mxu0
  %v742 = vadd.f32 %v642, %v741
  %v743 = vpop.f32.mrb[0].mxu0
  %v744 = vadd.f32 %v647, %v743
  %v745 = vpop.f32.mrb[0].mxu0
  %v746 = vadd.f32 %v647, %v745
  %747 = vdwg.mxu0
  %748 = vmatprep.subr.bf16.mxu0 %v590
  %749 = vmatpush1.bf16.msra.mxu0 %v589
  %750 = vmatprep.subr.bf16.mxu0 %v596
  %751 = vmatpush1.bf16.msra.mxu0 %v595
  %752 = vmatprep.subr.bf16.mxu0 %v602
  %753 = vmatpush1.bf16.msra.mxu0 %v601
  %754 = vmatprep.subr.bf16.mxu0 %v608
  %755 = vmatpush1.bf16.msra.mxu0 %v607
  %756 = vmatprep.subr.bf16.mxu0 %v614
  %757 = vmatpush1.bf16.msra.mxu0 %v613
  %758 = vmatprep.subr.bf16.mxu0 %v620
  %759 = vmatpush1.bf16.msra.mxu0 %v619
  %760 = vmatprep.subr.bf16.mxu0 %v626
  %761 = vmatpush1.bf16.msra.mxu0 %v625
  %762 = vmatprep.subr.bf16.mxu0 %v632
  %763 = vmatpush1.bf16.msra.mxu0 %v631
  %764 = vmatprep.subr.bf16.mxu0 %v638
  %765 = vmatpush1.bf16.msra.mxu0 %v637
  %766 = vmatprep.subr.bf16.mxu0 0
  %767 = vmatpush1.bf16.msra.mxu0 0
  %768 = vmatprep.subr.bf16.mxu0 0
  %769 = vmatpush1.bf16.msra.mxu0 0
  %770 = vmatprep.subr.bf16.mxu0 0
  %771 = vmatpush1.bf16.msra.mxu0 0
  %772 = vmatprep.subr.bf16.mxu0 0
  %773 = vmatpush1.bf16.msra.mxu0 0
  %774 = vmatprep.subr.bf16.mxu0 0
  %775 = vmatpush1.bf16.msra.mxu0 0
  %776 = vmatprep.subr.bf16.mxu0 0
  %777 = vmatpush1.bf16.msra.mxu0 0
  %778 = vmatprep.subr.bf16.mxu0 0
  %779 = vmatpush1.bf16.msra.mxu0 0
  %780 = vmatprep.mubr.bf16.mxu0 %v660
  %781 = vmatmul.mubr.bf16.gmra.mrb[0].mxu0 %v655
  %v782 = vpop.f32.mrb[0].mxu0
  %v783 = vadd.f32 %v642, %v782
  %v784 = vpop.f32.mrb[0].mxu0
  %v785 = vadd.f32 %v642, %v784
  %v786 = vpop.f32.mrb[0].mxu0
  %v787 = vadd.f32 %v647, %v786
  %v788 = vpop.f32.mrb[0].mxu0
  %v789 = vadd.f32 %v647, %v788
  %790 = vdwg.mxu0
  %v791 = vld [vmem:[%s1] sm:$0x3f]
  %v793 = vlaneseq
  %v794 = vshrl.u32 %v793, 7
  %v795 = vsub.s32 0, %v794
  %v796 = vrot.slane %v791, %v795
  %v797 = vlaneseq
  %v798 = vshrl.u32 %v797, 7
  %v799 = vsub.s32 1, %v798
  %v800 = vrot.slane %v791, %v799
  %v801 = vlaneseq
  %v802 = vshrl.u32 %v801, 7
  %v803 = vsub.s32 2, %v802
  %v804 = vrot.slane %v791, %v803
  %v805 = vlaneseq
  %v806 = vshrl.u32 %v805, 7
  %v807 = vsub.s32 3, %v806
  %v808 = vrot.slane %v791, %v807
  %v809 = vlaneseq
  %v810 = vshrl.u32 %v809, 7
  %v811 = vsub.s32 4, %v810
  %v812 = vrot.slane %v791, %v811
  %v813 = vlaneseq
  %v814 = vshrl.u32 %v813, 7
  %v815 = vsub.s32 5, %v814
  %v816 = vrot.slane %v791, %v815
  %v823 = vmul.f32 %v697, %v796
  %v824 = vmul.f32 %v699, %v800
  %v825 = vmul.f32 %v740, %v804
  %v826 = vmul.f32 %v742, %v808
  %v827 = vmul.f32 %v783, %v812
  %v828 = vmul.f32 %v785, %v816
  %v829 = vmul.f32 %v701, %v796
  %v830 = vmul.f32 %v703, %v800
  %v831 = vmul.f32 %v744, %v804
  %v832 = vmul.f32 %v746, %v808
  %v833 = vmul.f32 %v787, %v812
  %v834 = vmul.f32 %v789, %v816
  %v835 = vmax.f32 %v823, 0.0
  %v836 = vmax.f32 %v824, 0.0
  %v837 = vmax.f32 %v825, 0.0
  %v838 = vmax.f32 %v826, 0.0
  %v839 = vmax.f32 %v827, 0.0
  %v840 = vmax.f32 %v828, 0.0
  %v841 = vmax.f32 %v829, 0.0
  %v842 = vmax.f32 %v830, 0.0
  %v843 = vmax.f32 %v831, 0.0
  %v844 = vmax.f32 %v832, 0.0
  %v845 = vmax.f32 %v833, 0.0
  %v846 = vmax.f32 %v834, 0.0
  %v847 = vpack.c.bf16 %v841, %v835
  %v848 = vpack.c.bf16 %v842, %v836
  %v849 = vpack.c.bf16 %v843, %v837
  %v850 = vpack.c.bf16 %v844, %v838
  %v851 = vpack.c.bf16 %v845, %v839
  %v852 = vpack.c.bf16 %v846, %v840
  %853 = vst [vmem:[#allocation2 + $0x8] sm:$0xff] %v847
  %854 = vst [vmem:[#allocation2 + $0x10] sm:$0xff] %v848
  %855 = vst [vmem:[#allocation2 + $0x18] sm:$0xff] %v849
  %856 = vst [vmem:[#allocation2 + $0x20] sm:$0xff] %v850
  %857 = vst [vmem:[#allocation2 + $0x28] sm:$0xff] %v851
  %858 = vst.msk [vmem:[#allocation2 + $0x30] sm:$0xff] %vm36, %v852
  %v859 = vld [vmem:[%s4 + $0x10] sm:$0xff]
  %v860 = vld [vmem:[%s4 + $0x18] sm:$0xff]
  %v861 = vld [vmem:[%s5 + $0x10] sm:$0xff]
  %v862 = vld [vmem:[%s5 + $0x18] sm:$0xff]
  %v863 = vld [vmem:[#allocation2] sm:$0xff]
  %v864 = vld [vmem:[#allocation2 + $0x8] sm:$0xff]
  %v865 = vld [vmem:[#allocation2 + $0x10] sm:$0xff]
  %v866 = vld [vmem:[#allocation2 + $0x18] sm:$0xff]
  %v867 = vld [vmem:[#allocation2 + $0x20] sm:$0xff]
  %v868 = vld [vmem:[#allocation2 + $0x28] sm:$0xff]
  %875 = vrot.lane.b32.xlu0 %v863, 19
  %v876 = vpop.permute.xlu0 %875
  %877 = vrot.lane.b32.xlu0 %v864, 19
  %v878 = vpop.permute.xlu0 %877
  %879 = vrot.lane.b32.xlu0 %v865, 19
  %v880 = vpop.permute.xlu0 %879
  %881 = vrot.lane.b32.xlu0 %v866, 19
  %v882 = vpop.permute.xlu0 %881
  %883 = vrot.lane.b32.xlu0 %v867, 19
  %v884 = vpop.permute.xlu0 %883
  %885 = vrot.lane.b32.xlu0 %v868, 19
  %v886 = vpop.permute.xlu0 %885
  %v887 = vsel %vm95, %v876, %v878
  %v888 = vsel %vm95, %v878, %v880
  %v889 = vsel %vm95, %v880, %v882
  %v890 = vsel %vm95, %v882, %v884
  %v891 = vsel %vm95, %v884, %v886
  %898 = vst [vmem:[#allocation6] sm:$0xff] %v887
  %899 = vst [vmem:[#allocation6 + $0x8] sm:$0xff] %v888
  %900 = vst [vmem:[#allocation6 + $0x10] sm:$0xff] %v889
  %901 = vst [vmem:[#allocation6 + $0x18] sm:$0xff] %v890
  %902 = vst [vmem:[#allocation6 + $0x20] sm:$0xff] %v891
  %903 = vst.msk [vmem:[#allocation6 + $0x28] sm:$0xff] %vm36, %v886
  %v904 = vld [vmem:[#allocation2] sm:$0xff]
  %v905 = vld [vmem:[#allocation2 + $0x8] sm:$0xff]
  %v906 = vld [vmem:[#allocation2 + $0x10] sm:$0xff]
  %v907 = vld [vmem:[#allocation2 + $0x18] sm:$0xff]
  %v908 = vld [vmem:[#allocation2 + $0x20] sm:$0xff]
  %v909 = vld [vmem:[#allocation2 + $0x28] sm:$0xff]
  %916 = vrot.lane.b32.xlu0 %v904, 18
  %v917 = vpop.permute.xlu0 %916
  %918 = vrot.lane.b32.xlu0 %v905, 18
  %v919 = vpop.permute.xlu0 %918
  %920 = vrot.lane.b32.xlu0 %v906, 18
  %v921 = vpop.permute.xlu0 %920
  %922 = vrot.lane.b32.xlu0 %v907, 18
  %v923 = vpop.permute.xlu0 %922
  %924 = vrot.lane.b32.xlu0 %v908, 18
  %v925 = vpop.permute.xlu0 %924
  %926 = vrot.lane.b32.xlu0 %v909, 18
  %v927 = vpop.permute.xlu0 %926
  %v928 = vsel %vm155, %v917, %v919
  %v929 = vsel %vm155, %v919, %v921
  %v930 = vsel %vm155, %v921, %v923
  %v931 = vsel %vm155, %v923, %v925
  %v932 = vsel %vm155, %v925, %v927
  %939 = vst [vmem:[#allocation6 + $0x30] sm:$0xff] %v928
  %940 = vst [vmem:[#allocation6 + $0x38] sm:$0xff] %v929
  %941 = vst [vmem:[#allocation6 + $0x40] sm:$0xff] %v930
  %942 = vst [vmem:[#allocation6 + $0x48] sm:$0xff] %v931
  %943 = vst [vmem:[#allocation6 + $0x50] sm:$0xff] %v932
  %944 = vst.msk [vmem:[#allocation6 + $0x58] sm:$0xff] %vm36, %v927
  %v945 = vld [vmem:[#allocation2] sm:$0xff]
  %v946 = vld [vmem:[#allocation2 + $0x8] sm:$0xff]
  %v947 = vld [vmem:[#allocation2 + $0x10] sm:$0xff]
  %v948 = vld [vmem:[#allocation2 + $0x18] sm:$0xff]
  %v949 = vld [vmem:[#allocation2 + $0x20] sm:$0xff]
  %v950 = vld [vmem:[#allocation2 + $0x28] sm:$0xff]
  %957 = vrot.lane.b32.xlu0 %v945, 17
  %v958 = vpop.permute.xlu0 %957
  %959 = vrot.lane.b32.xlu0 %v946, 17
  %v960 = vpop.permute.xlu0 %959
  %961 = vrot.lane.b32.xlu0 %v947, 17
  %v962 = vpop.permute.xlu0 %961
  %963 = vrot.lane.b32.xlu0 %v948, 17
  %v964 = vpop.permute.xlu0 %963
  %965 = vrot.lane.b32.xlu0 %v949, 17
  %v966 = vpop.permute.xlu0 %965
  %967 = vrot.lane.b32.xlu0 %v950, 17
  %v968 = vpop.permute.xlu0 %967
  %v969 = vsel %vm215, %v958, %v960
  %v970 = vsel %vm215, %v960, %v962
  %v971 = vsel %vm215, %v962, %v964
  %v972 = vsel %vm215, %v964, %v966
  %v973 = vsel %vm215, %v966, %v968
  %980 = vst [vmem:[#allocation6 + $0x60] sm:$0xff] %v969
  %981 = vst [vmem:[#allocation6 + $0x68] sm:$0xff] %v970
  %982 = vst [vmem:[#allocation6 + $0x70] sm:$0xff] %v971
  %983 = vst [vmem:[#allocation6 + $0x78] sm:$0xff] %v972
  %984 = vst [vmem:[#allocation6 + $0x80] sm:$0xff] %v973
  %985 = vst.msk [vmem:[#allocation6 + $0x88] sm:$0xff] %vm36, %v968
  %v986 = vld [vmem:[#allocation2] sm:$0xff]
  %v987 = vld [vmem:[#allocation2 + $0x8] sm:$0xff]
  %v988 = vld [vmem:[#allocation2 + $0x10] sm:$0xff]
  %v989 = vld [vmem:[#allocation2 + $0x18] sm:$0xff]
  %v990 = vld [vmem:[#allocation2 + $0x20] sm:$0xff]
  %v991 = vld [vmem:[#allocation2 + $0x28] sm:$0xff]
  %v992 = vld [vmem:[#allocation2 + $0x30] sm:$0xff]
  %1000 = vrot.lane.b32.xlu0 %v986, 1
  %v1001 = vpop.permute.xlu0 %1000
  %1002 = vrot.lane.b32.xlu0 %v987, 1
  %v1003 = vpop.permute.xlu0 %1002
  %1004 = vrot.lane.b32.xlu0 %v988, 1
  %v1005 = vpop.permute.xlu0 %1004
  %1006 = vrot.lane.b32.xlu0 %v989, 1
  %v1007 = vpop.permute.xlu0 %1006
  %1008 = vrot.lane.b32.xlu0 %v990, 1
  %v1009 = vpop.permute.xlu0 %1008
  %1010 = vrot.lane.b32.xlu0 %v991, 1
  %v1011 = vpop.permute.xlu0 %1010
  %1012 = vrot.lane.b32.xlu0 %v992, 1
  %v1013 = vpop.permute.xlu0 %1012
  %v1014 = vsel %vm284, %v1001, %v1003
  %v1015 = vsel %vm284, %v1003, %v1005
  %v1016 = vsel %vm284, %v1005, %v1007
  %v1017 = vsel %vm284, %v1007, %v1009
  %v1018 = vsel %vm284, %v1009, %v1011
  %v1019 = vsel %vm284, %v1011, %v1013
  %1026 = vst [vmem:[#allocation6 + $0x90] sm:$0xff] %v1014
  %1027 = vst [vmem:[#allocation6 + $0x98] sm:$0xff] %v1015
  %1028 = vst [vmem:[#allocation6 + $0xa0] sm:$0xff] %v1016
  %1029 = vst [vmem:[#allocation6 + $0xa8] sm:$0xff] %v1017
  %1030 = vst [vmem:[#allocation6 + $0xb0] sm:$0xff] %v1018
  %1031 = vst.msk [vmem:[#allocation6 + $0xb8] sm:$0xff] %vm36, %v1019
  %v1032 = vld [vmem:[#allocation2 + $0x8] sm:$0xff]
  %v1033 = vld [vmem:[#allocation2 + $0x10] sm:$0xff]
  %v1034 = vld [vmem:[#allocation2 + $0x18] sm:$0xff]
  %v1035 = vld [vmem:[#allocation2 + $0x20] sm:$0xff]
  %v1036 = vld [vmem:[#allocation2 + $0x28] sm:$0xff]
  %v1037 = vld [vmem:[#allocation2 + $0x30] sm:$0xff]
  %1038 = vst [vmem:[#allocation6 + $0xc0] sm:$0xff] %v1032
  %1039 = vst [vmem:[#allocation6 + $0xc8] sm:$0xff] %v1033
  %1040 = vst [vmem:[#allocation6 + $0xd0] sm:$0xff] %v1034
  %1041 = vst [vmem:[#allocation6 + $0xd8] sm:$0xff] %v1035
  %1042 = vst [vmem:[#allocation6 + $0xe0] sm:$0xff] %v1036
  %1043 = vst.msk [vmem:[#allocation6 + $0xe8] sm:$0xff] %vm36, %v1037
  %v1044 = vld [vmem:[#allocation2 + $0x8] sm:$0xff]
  %v1045 = vld [vmem:[#allocation2 + $0x10] sm:$0xff]
  %v1046 = vld [vmem:[#allocation2 + $0x18] sm:$0xff]
  %v1047 = vld [vmem:[#allocation2 + $0x20] sm:$0xff]
  %v1048 = vld [vmem:[#allocation2 + $0x28] sm:$0xff]
  %v1049 = vld [vmem:[#allocation2 + $0x30] sm:$0xff]
  %1056 = vrot.lane.b32.xlu0 %v1044, 127
  %v1057 = vpop.permute.xlu0 %1056
  %1058 = vrot.lane.b32.xlu0 %v1045, 127
  %v1059 = vpop.permute.xlu0 %1058
  %1060 = vrot.lane.b32.xlu0 %v1046, 127
  %v1061 = vpop.permute.xlu0 %1060
  %1062 = vrot.lane.b32.xlu0 %v1047, 127
  %v1063 = vpop.permute.xlu0 %1062
  %1064 = vrot.lane.b32.xlu0 %v1048, 127
  %v1065 = vpop.permute.xlu0 %1064
  %1066 = vrot.lane.b32.xlu0 %v1049, 127
  %v1067 = vpop.permute.xlu0 %1066
  %v1068 = vsel %vm387, %v1057, %v1059
  %v1069 = vsel %vm387, %v1059, %v1061
  %v1070 = vsel %vm387, %v1061, %v1063
  %v1071 = vsel %vm387, %v1063, %v1065
  %v1072 = vsel %vm387, %v1065, %v1067
  %1079 = vst [vmem:[#allocation6 + $0xf0] sm:$0xff] %v1068
  %1080 = vst [vmem:[#allocation6 + $0xf8] sm:$0xff] %v1069
  %1081 = vst [vmem:[#allocation6 + $0x100] sm:$0xff] %v1070
  %1082 = vst [vmem:[#allocation6 + $0x108] sm:$0xff] %v1071
  %1083 = vst [vmem:[#allocation6 + $0x110] sm:$0xff] %v1072
  %1084 = vst.msk [vmem:[#allocation6 + $0x118] sm:$0xff] %vm36, %v1067
  %v1085 = vld [vmem:[#allocation2 + $0x8] sm:$0xff]
  %v1086 = vld [vmem:[#allocation2 + $0x10] sm:$0xff]
  %v1087 = vld [vmem:[#allocation2 + $0x18] sm:$0xff]
  %v1088 = vld [vmem:[#allocation2 + $0x20] sm:$0xff]
  %v1089 = vld [vmem:[#allocation2 + $0x28] sm:$0xff]
  %v1090 = vld [vmem:[#allocation2 + $0x30] sm:$0xff]
  %1097 = vrot.lane.b32.xlu0 %v1085, 111
  %v1098 = vpop.permute.xlu0 %1097
  %1099 = vrot.lane.b32.xlu0 %v1086, 111
  %v1100 = vpop.permute.xlu0 %1099
  %1101 = vrot.lane.b32.xlu0 %v1087, 111
  %v1102 = vpop.permute.xlu0 %1101
  %1103 = vrot.lane.b32.xlu0 %v1088, 111
  %v1104 = vpop.permute.xlu0 %1103
  %1105 = vrot.lane.b32.xlu0 %v1089, 111
  %v1106 = vpop.permute.xlu0 %1105
  %1107 = vrot.lane.b32.xlu0 %v1090, 111
  %v1108 = vpop.permute.xlu0 %1107
  %v1109 = vsel %vm447, %v1098, %v1100
  %v1110 = vsel %vm447, %v1100, %v1102
  %v1111 = vsel %vm447, %v1102, %v1104
  %v1112 = vsel %vm447, %v1104, %v1106
  %v1113 = vsel %vm447, %v1106, %v1108
  %1120 = vst [vmem:[#allocation6 + $0x120] sm:$0xff] %v1109
  %1121 = vst [vmem:[#allocation6 + $0x128] sm:$0xff] %v1110
  %1122 = vst [vmem:[#allocation6 + $0x130] sm:$0xff] %v1111
  %1123 = vst [vmem:[#allocation6 + $0x138] sm:$0xff] %v1112
  %1124 = vst [vmem:[#allocation6 + $0x140] sm:$0xff] %v1113
  %1125 = vst.msk [vmem:[#allocation6 + $0x148] sm:$0xff] %vm36, %v1108
  %v1126 = vld [vmem:[#allocation2 + $0x8] sm:$0xff]
  %v1127 = vld [vmem:[#allocation2 + $0x10] sm:$0xff]
  %v1128 = vld [vmem:[#allocation2 + $0x18] sm:$0xff]
  %v1129 = vld [vmem:[#allocation2 + $0x20] sm:$0xff]
  %v1130 = vld [vmem:[#allocation2 + $0x28] sm:$0xff]
  %v1131 = vld [vmem:[#allocation2 + $0x30] sm:$0xff]
  %1138 = vrot.lane.b32.xlu0 %v1126, 110
  %v1139 = vpop.permute.xlu0 %1138
  %1140 = vrot.lane.b32.xlu0 %v1127, 110
  %v1141 = vpop.permute.xlu0 %1140
  %1142 = vrot.lane.b32.xlu0 %v1128, 110
  %v1143 = vpop.permute.xlu0 %1142
  %1144 = vrot.lane.b32.xlu0 %v1129, 110
  %v1145 = vpop.permute.xlu0 %1144
  %1146 = vrot.lane.b32.xlu0 %v1130, 110
  %v1147 = vpop.permute.xlu0 %1146
  %1148 = vrot.lane.b32.xlu0 %v1131, 110
  %v1149 = vpop.permute.xlu0 %1148
  %v1150 = vsel %vm507, %v1139, %v1141
  %v1151 = vsel %vm507, %v1141, %v1143
  %v1152 = vsel %vm507, %v1143, %v1145
  %v1153 = vsel %vm507, %v1145, %v1147
  %v1154 = vsel %vm507, %v1147, %v1149
  %1161 = vst [vmem:[#allocation6 + $0x150] sm:$0xff] %v1150
  %1162 = vst [vmem:[#allocation6 + $0x158] sm:$0xff] %v1151
  %1163 = vst [vmem:[#allocation6 + $0x160] sm:$0xff] %v1152
  %1164 = vst [vmem:[#allocation6 + $0x168] sm:$0xff] %v1153
  %1165 = vst [vmem:[#allocation6 + $0x170] sm:$0xff] %v1154
  %1166 = vst.msk [vmem:[#allocation6 + $0x178] sm:$0xff] %vm36, %v1149
  %v1167 = vld [vmem:[#allocation2 + $0x8] sm:$0xff]
  %v1168 = vld [vmem:[#allocation2 + $0x10] sm:$0xff]
  %v1169 = vld [vmem:[#allocation2 + $0x18] sm:$0xff]
  %v1170 = vld [vmem:[#allocation2 + $0x20] sm:$0xff]
  %v1171 = vld [vmem:[#allocation2 + $0x28] sm:$0xff]
  %v1172 = vld [vmem:[#allocation2 + $0x30] sm:$0xff]
  %1179 = vrot.lane.b32.xlu0 %v1167, 109
  %v1180 = vpop.permute.xlu0 %1179
  %1181 = vrot.lane.b32.xlu0 %v1168, 109
  %v1182 = vpop.permute.xlu0 %1181
  %1183 = vrot.lane.b32.xlu0 %v1169, 109
  %v1184 = vpop.permute.xlu0 %1183
  %1185 = vrot.lane.b32.xlu0 %v1170, 109
  %v1186 = vpop.permute.xlu0 %1185
  %1187 = vrot.lane.b32.xlu0 %v1171, 109
  %v1188 = vpop.permute.xlu0 %1187
  %1189 = vrot.lane.b32.xlu0 %v1172, 109
  %v1190 = vpop.permute.xlu0 %1189
  %v1191 = vsel %vm567, %v1180, %v1182
  %v1192 = vsel %vm567, %v1182, %v1184
  %v1193 = vsel %vm567, %v1184, %v1186
  %v1194 = vsel %vm567, %v1186, %v1188
  %v1195 = vsel %vm567, %v1188, %v1190
  %1202 = vst [vmem:[#allocation6 + $0x180] sm:$0xff] %v1191
  %1203 = vst [vmem:[#allocation6 + $0x188] sm:$0xff] %v1192
  %1204 = vst [vmem:[#allocation6 + $0x190] sm:$0xff] %v1193
  %1205 = vst [vmem:[#allocation6 + $0x198] sm:$0xff] %v1194
  %1206 = vst [vmem:[#allocation6 + $0x1a0] sm:$0xff] %v1195
  %1207 = vst.msk [vmem:[#allocation6 + $0x1a8] sm:$0xff] %vm36, %v1190
  %v1208 = vld [vmem:[#allocation6] sm:$0xff]
  %v1209 = vld [vmem:[#allocation6 + $0x8] sm:$0xff]
  %v1210 = vld [vmem:[#allocation6 + $0x10] sm:$0xff]
  %v1211 = vld [vmem:[#allocation6 + $0x18] sm:$0xff]
  %v1212 = vld [vmem:[#allocation6 + $0x20] sm:$0xff]
  %v1213 = vld [vmem:[#allocation6 + $0x28] sm:$0xff]
  %v1214 = vld [vmem:[#allocation6 + $0x30] sm:$0xff]
  %v1215 = vld [vmem:[#allocation6 + $0x38] sm:$0xff]
  %v1216 = vld [vmem:[#allocation6 + $0x40] sm:$0xff]
  %v1217 = vld [vmem:[#allocation6 + $0x48] sm:$0xff]
  %v1218 = vld [vmem:[#allocation6 + $0x50] sm:$0xff]
  %v1219 = vld [vmem:[#allocation6 + $0x58] sm:$0xff]
  %v1220 = vld [vmem:[#allocation6 + $0x60] sm:$0xff]
  %v1221 = vld [vmem:[#allocation6 + $0x68] sm:$0xff]
  %v1222 = vld [vmem:[#allocation6 + $0x70] sm:$0xff]
  %v1223 = vld [vmem:[#allocation6 + $0x78] sm:$0xff]
  %v1224 = vld [vmem:[#allocation6 + $0x80] sm:$0xff]
  %v1225 = vld [vmem:[#allocation6 + $0x88] sm:$0xff]
  %v1226 = vld [vmem:[#allocation6 + $0x90] sm:$0xff]
  %v1227 = vld [vmem:[#allocation6 + $0x98] sm:$0xff]
  %v1228 = vld [vmem:[#allocation6 + $0xa0] sm:$0xff]
  %v1229 = vld [vmem:[#allocation6 + $0xa8] sm:$0xff]
  %v1230 = vld [vmem:[#allocation6 + $0xb0] sm:$0xff]
  %v1231 = vld [vmem:[#allocation6 + $0xb8] sm:$0xff]
  %v1232 = vld [vmem:[#allocation6 + $0xc0] sm:$0xff]
  %v1233 = vld [vmem:[#allocation6 + $0xc8] sm:$0xff]
  %v1234 = vld [vmem:[#allocation6 + $0xd0] sm:$0xff]
  %v1235 = vld [vmem:[#allocation6 + $0xd8] sm:$0xff]
  %v1236 = vld [vmem:[#allocation6 + $0xe0] sm:$0xff]
  %v1237 = vld [vmem:[#allocation6 + $0xe8] sm:$0xff]
  %v1238 = vld [vmem:[#allocation6 + $0xf0] sm:$0xff]
  %v1239 = vld [vmem:[#allocation6 + $0xf8] sm:$0xff]
  %v1240 = vld [vmem:[#allocation6 + $0x100] sm:$0xff]
  %v1241 = vld [vmem:[#allocation6 + $0x108] sm:$0xff]
  %v1242 = vld [vmem:[#allocation6 + $0x110] sm:$0xff]
  %v1243 = vld [vmem:[#allocation6 + $0x118] sm:$0xff]
  %v1244 = vld [vmem:[#allocation6 + $0x120] sm:$0xff]
  %v1245 = vld [vmem:[#allocation6 + $0x128] sm:$0xff]
  %v1246 = vld [vmem:[#allocation6 + $0x130] sm:$0xff]
  %v1247 = vld [vmem:[#allocation6 + $0x138] sm:$0xff]
  %v1248 = vld [vmem:[#allocation6 + $0x140] sm:$0xff]
  %v1249 = vld [vmem:[#allocation6 + $0x148] sm:$0xff]
  %v1250 = vld [vmem:[#allocation6 + $0x150] sm:$0xff]
  %v1251 = vld [vmem:[#allocation6 + $0x158] sm:$0xff]
  %v1252 = vld [vmem:[#allocation6 + $0x160] sm:$0xff]
  %v1253 = vld [vmem:[#allocation6 + $0x168] sm:$0xff]
  %v1254 = vld [vmem:[#allocation6 + $0x170] sm:$0xff]
  %v1255 = vld [vmem:[#allocation6 + $0x178] sm:$0xff]
  %v1256 = vld [vmem:[#allocation6 + $0x180] sm:$0xff]
  %v1257 = vld [vmem:[#allocation6 + $0x188] sm:$0xff]
  %v1258 = vld [vmem:[#allocation6 + $0x190] sm:$0xff]
  %v1259 = vld [vmem:[#allocation6 + $0x198] sm:$0xff]
  %v1260 = vld [vmem:[#allocation6 + $0x1a0] sm:$0xff]
  %v1261 = vld [vmem:[#allocation6 + $0x1a8] sm:$0xff]
  %1263 = vset.pattern.permute.xlu0 0
  %1264 = vperm.xlu0 %1263, %v861
  %v1265 = vpop.permute.xlu0 %1264
  %1268 = vset.pattern.permute.xlu0 0
  %1269 = vperm.xlu0 %1268, %v862
  %v1270 = vpop.permute.xlu0 %1269
  %v1274 = vunpack.c.l.b16 %v859
  %v1275 = vunpack.c.h.b16 %v859
  %v1276 = vunpack.c.l.b16 %v860
  %v1277 = vunpack.c.h.b16 %v860
  %v1278 = vpack.c.b16 %v1276, %v1274
  %v1279 = vpack.c.b16 %v1277, %v1275
  %v1282 = vsel %vm658, %v1279, 0
  %1284 = vmatprep.subr.bf16.mxu0 %v1209
  %1285 = vmatpush1.bf16.msra.mxu0 %v1208
  %1286 = vmatprep.subr.bf16.mxu0 %v1215
  %1287 = vmatpush1.bf16.msra.mxu0 %v1214
  %1288 = vmatprep.subr.bf16.mxu0 %v1221
  %1289 = vmatpush1.bf16.msra.mxu0 %v1220
  %1290 = vmatprep.subr.bf16.mxu0 %v1227
  %1291 = vmatpush1.bf16.msra.mxu0 %v1226
  %1292 = vmatprep.subr.bf16.mxu0 %v1233
  %1293 = vmatpush1.bf16.msra.mxu0 %v1232
  %1294 = vmatprep.subr.bf16.mxu0 %v1239
  %1295 = vmatpush1.bf16.msra.mxu0 %v1238
  %1296 = vmatprep.subr.bf16.mxu0 %v1245
  %1297 = vmatpush1.bf16.msra.mxu0 %v1244
  %1298 = vmatprep.subr.bf16.mxu0 %v1251
  %1299 = vmatpush1.bf16.msra.mxu0 %v1250
  %1300 = vmatprep.subr.bf16.mxu0 %v1257
  %1301 = vmatpush1.bf16.msra.mxu0 %v1256
  %1302 = vmatprep.subr.bf16.mxu0 0
  %1303 = vmatpush1.bf16.msra.mxu0 0
  %1304 = vmatprep.subr.bf16.mxu0 0
  %1305 = vmatpush1.bf16.msra.mxu0 0
  %1306 = vmatprep.subr.bf16.mxu0 0
  %1307 = vmatpush1.bf16.msra.mxu0 0
  %1308 = vmatprep.subr.bf16.mxu0 0
  %1309 = vmatpush1.bf16.msra.mxu0 0
  %1310 = vmatprep.subr.bf16.mxu0 0
  %1311 = vmatpush1.bf16.msra.mxu0 0
  %1312 = vmatprep.subr.bf16.mxu0 0
  %1313 = vmatpush1.bf16.msra.mxu0 0
  %1314 = vmatprep.subr.bf16.mxu0 0
  %1315 = vmatpush1.bf16.msra.mxu0 0
  %1316 = vmatprep.mubr.bf16.mxu0 %v1282
  %1317 = vmatmul.mubr.bf16.gmra.mrb[0].mxu0 %v1278
  %v1318 = vpop.f32.mrb[0].mxu0
  %v1319 = vadd.f32 %v1265, %v1318
  %v1320 = vpop.f32.mrb[0].mxu0
  %v1321 = vadd.f32 %v1265, %v1320
  %v1322 = vpop.f32.mrb[0].mxu0
  %v1323 = vadd.f32 %v1270, %v1322
  %v1324 = vpop.f32.mrb[0].mxu0
  %v1325 = vadd.f32 %v1270, %v1324
  %1326 = vdwg.mxu0
  %1327 = vmatprep.subr.bf16.mxu0 %v1211
  %1328 = vmatpush1.bf16.msra.mxu0 %v1210
  %1329 = vmatprep.subr.bf16.mxu0 %v1217
  %1330 = vmatpush1.bf16.msra.mxu0 %v1216
  %1331 = vmatprep.subr.bf16.mxu0 %v1223
  %1332 = vmatpush1.bf16.msra.mxu0 %v1222
  %1333 = vmatprep.subr.bf16.mxu0 %v1229
  %1334 = vmatpush1.bf16.msra.mxu0 %v1228
  %1335 = vmatprep.subr.bf16.mxu0 %v1235
  %1336 = vmatpush1.bf16.msra.mxu0 %v1234
  %1337 = vmatprep.subr.bf16.mxu0 %v1241
  %1338 = vmatpush1.bf16.msra.mxu0 %v1240
  %1339 = vmatprep.subr.bf16.mxu0 %v1247
  %1340 = vmatpush1.bf16.msra.mxu0 %v1246
  %1341 = vmatprep.subr.bf16.mxu0 %v1253
  %1342 = vmatpush1.bf16.msra.mxu0 %v1252
  %1343 = vmatprep.subr.bf16.mxu0 %v1259
  %1344 = vmatpush1.bf16.msra.mxu0 %v1258
  %1345 = vmatprep.subr.bf16.mxu0 0
  %1346 = vmatpush1.bf16.msra.mxu0 0
  %1347 = vmatprep.subr.bf16.mxu0 0
  %1348 = vmatpush1.bf16.msra.mxu0 0
  %1349 = vmatprep.subr.bf16.mxu0 0
  %1350 = vmatpush1.bf16.msra.mxu0 0
  %1351 = vmatprep.subr.bf16.mxu0 0
  %1352 = vmatpush1.bf16.msra.mxu0 0
  %1353 = vmatprep.subr.bf16.mxu0 0
  %1354 = vmatpush1.bf16.msra.mxu0 0
  %1355 = vmatprep.subr.bf16.mxu0 0
  %1356 = vmatpush1.bf16.msra.mxu0 0
  %1357 = vmatprep.subr.bf16.mxu0 0
  %1358 = vmatpush1.bf16.msra.mxu0 0
  %1359 = vmatprep.mubr.bf16.mxu0 %v1282
  %1360 = vmatmul.mubr.bf16.gmra.mrb[0].mxu0 %v1278
  %v1361 = vpop.f32.mrb[0].mxu0
  %v1362 = vadd.f32 %v1265, %v1361
  %v1363 = vpop.f32.mrb[0].mxu0
  %v1364 = vadd.f32 %v1265, %v1363
  %v1365 = vpop.f32.mrb[0].mxu0
  %v1366 = vadd.f32 %v1270, %v1365
  %v1367 = vpop.f32.mrb[0].mxu0
  %v1368 = vadd.f32 %v1270, %v1367
  %1369 = vdwg.mxu0
  %1370 = vmatprep.subr.bf16.mxu0 %v1213
  %1371 = vmatpush1.bf16.msra.mxu0 %v1212
  %1372 = vmatprep.subr.bf16.mxu0 %v1219
  %1373 = vmatpush1.bf16.msra.mxu0 %v1218
  %1374 = vmatprep.subr.bf16.mxu0 %v1225
  %1375 = vmatpush1.bf16.msra.mxu0 %v1224
  %1376 = vmatprep.subr.bf16.mxu0 %v1231
  %1377 = vmatpush1.bf16.msra.mxu0 %v1230
  %1378 = vmatprep.subr.bf16.mxu0 %v1237
  %1379 = vmatpush1.bf16.msra.mxu0 %v1236
  %1380 = vmatprep.subr.bf16.mxu0 %v1243
  %1381 = vmatpush1.bf16.msra.mxu0 %v1242
  %1382 = vmatprep.subr.bf16.mxu0 %v1249
  %1383 = vmatpush1.bf16.msra.mxu0 %v1248
  %1384 = vmatprep.subr.bf16.mxu0 %v1255
  %1385 = vmatpush1.bf16.msra.mxu0 %v1254
  %1386 = vmatprep.subr.bf16.mxu0 %v1261
  %1387 = vmatpush1.bf16.msra.mxu0 %v1260
  %1388 = vmatprep.subr.bf16.mxu0 0
  %1389 = vmatpush1.bf16.msra.mxu0 0
  %1390 = vmatprep.subr.bf16.mxu0 0
  %1391 = vmatpush1.bf16.msra.mxu0 0
  %1392 = vmatprep.subr.bf16.mxu0 0
  %1393 = vmatpush1.bf16.msra.mxu0 0
  %1394 = vmatprep.subr.bf16.mxu0 0
  %1395 = vmatpush1.bf16.msra.mxu0 0
  %1396 = vmatprep.subr.bf16.mxu0 0
  %1397 = vmatpush1.bf16.msra.mxu0 0
  %1398 = vmatprep.subr.bf16.mxu0 0
  %1399 = vmatpush1.bf16.msra.mxu0 0
  %1400 = vmatprep.subr.bf16.mxu0 0
  %1401 = vmatpush1.bf16.msra.mxu0 0
  %1402 = vmatprep.mubr.bf16.mxu0 %v1282
  %1403 = vmatmul.mubr.bf16.gmra.mrb[0].mxu0 %v1278
  %v1404 = vpop.f32.mrb[0].mxu0
  %v1405 = vadd.f32 %v1265, %v1404
  %v1406 = vpop.f32.mrb[0].mxu0
  %v1407 = vadd.f32 %v1265, %v1406
  %v1408 = vpop.f32.mrb[0].mxu0
  %v1409 = vadd.f32 %v1270, %v1408
  %v1410 = vpop.f32.mrb[0].mxu0
  %v1411 = vadd.f32 %v1270, %v1410
  %1412 = vdwg.mxu0
  %v1413 = vld [vmem:[%s1] sm:$0x3f]
  %v1415 = vlaneseq
  %v1416 = vshrl.u32 %v1415, 7
  %v1417 = vsub.s32 0, %v1416
  %v1418 = vrot.slane %v1413, %v1417
  %v1419 = vlaneseq
  %v1420 = vshrl.u32 %v1419, 7
  %v1421 = vsub.s32 1, %v1420
  %v1422 = vrot.slane %v1413, %v1421
  %v1423 = vlaneseq
  %v1424 = vshrl.u32 %v1423, 7
  %v1425 = vsub.s32 2, %v1424
  %v1426 = vrot.slane %v1413, %v1425
  %v1427 = vlaneseq
  %v1428 = vshrl.u32 %v1427, 7
  %v1429 = vsub.s32 3, %v1428
  %v1430 = vrot.slane %v1413, %v1429
  %v1431 = vlaneseq
  %v1432 = vshrl.u32 %v1431, 7
  %v1433 = vsub.s32 4, %v1432
  %v1434 = vrot.slane %v1413, %v1433
  %v1435 = vlaneseq
  %v1436 = vshrl.u32 %v1435, 7
  %v1437 = vsub.s32 5, %v1436
  %v1438 = vrot.slane %v1413, %v1437
  %v1445 = vmul.f32 %v1319, %v1418
  %v1446 = vmul.f32 %v1321, %v1422
  %v1447 = vmul.f32 %v1362, %v1426
  %v1448 = vmul.f32 %v1364, %v1430
  %v1449 = vmul.f32 %v1405, %v1434
  %v1450 = vmul.f32 %v1407, %v1438
  %v1451 = vmul.f32 %v1323, %v1418
  %v1452 = vmul.f32 %v1325, %v1422
  %v1453 = vmul.f32 %v1366, %v1426
  %v1454 = vmul.f32 %v1368, %v1430
  %v1455 = vmul.f32 %v1409, %v1434
  %v1456 = vmul.f32 %v1411, %v1438
  %v1457 = vmax.f32 %v1445, 0.0
  %v1458 = vmax.f32 %v1446, 0.0
  %v1459 = vmax.f32 %v1447, 0.0
  %v1460 = vmax.f32 %v1448, 0.0
  %v1461 = vmax.f32 %v1449, 0.0
  %v1462 = vmax.f32 %v1450, 0.0
  %v1463 = vmax.f32 %v1451, 0.0
  %v1464 = vmax.f32 %v1452, 0.0
  %v1465 = vmax.f32 %v1453, 0.0
  %v1466 = vmax.f32 %v1454, 0.0
  %v1467 = vmax.f32 %v1455, 0.0
  %v1468 = vmax.f32 %v1456, 0.0
  %v1469 = vpack.c.bf16 %v1463, %v1457
  %v1470 = vpack.c.bf16 %v1464, %v1458
  %v1471 = vpack.c.bf16 %v1465, %v1459
  %v1472 = vpack.c.bf16 %v1466, %v1460
  %v1473 = vpack.c.bf16 %v1467, %v1461
  %v1474 = vpack.c.bf16 %v1468, %v1462
  %1475 = vst [vmem:[#allocation3 + $0x8] sm:$0xff] %v1469
  %1476 = vst [vmem:[#allocation3 + $0x10] sm:$0xff] %v1470
  %1477 = vst [vmem:[#allocation3 + $0x18] sm:$0xff] %v1471
  %1478 = vst [vmem:[#allocation3 + $0x20] sm:$0xff] %v1472
  %1479 = vst [vmem:[#allocation3 + $0x28] sm:$0xff] %v1473
  %1480 = vst.msk [vmem:[#allocation3 + $0x30] sm:$0xff] %vm36, %v1474
  %v1481 = vld [vmem:[#allocation2 + $0x8] sm:$0xff]
  %v1482 = vld [vmem:[#allocation2 + $0x10] sm:$0xff]
  %v1483 = vld [vmem:[#allocation2 + $0x18] sm:$0xff]
  %v1484 = vld [vmem:[#allocation2 + $0x20] sm:$0xff]
  %v1485 = vld [vmem:[#allocation2 + $0x28] sm:$0xff]
  %v1486 = vld [vmem:[#allocation2 + $0x30] sm:$0xff]
  %v1487 = vunpack.c.l.bf16 %v1481
  %v1488 = vunpack.c.l.bf16 %v1482
  %v1489 = vunpack.c.l.bf16 %v1483
  %v1490 = vunpack.c.l.bf16 %v1484
  %v1491 = vunpack.c.l.bf16 %v1485
  %v1492 = vunpack.c.l.bf16 %v1486
  %v1493 = vunpack.c.h.bf16 %v1481
  %v1494 = vunpack.c.h.bf16 %v1482
  %v1495 = vunpack.c.h.bf16 %v1483
  %v1496 = vunpack.c.h.bf16 %v1484
  %v1497 = vunpack.c.h.bf16 %v1485
  %v1498 = vunpack.c.h.bf16 %v1486
  %v1499 = vld [vmem:[%s4 + $0x20] sm:$0xff]
  %v1500 = vld [vmem:[%s4 + $0x28] sm:$0xff]
  %v1501 = vld [vmem:[%s5 + $0x20] sm:$0xff]
  %v1502 = vld [vmem:[%s5 + $0x28] sm:$0xff]
  %v1503 = vld [vmem:[#allocation3] sm:$0xff]
  %v1504 = vld [vmem:[#allocation3 + $0x8] sm:$0xff]
  %v1505 = vld [vmem:[#allocation3 + $0x10] sm:$0xff]
  %v1506 = vld [vmem:[#allocation3 + $0x18] sm:$0xff]
  %v1507 = vld [vmem:[#allocation3 + $0x20] sm:$0xff]
  %v1508 = vld [vmem:[#allocation3 + $0x28] sm:$0xff]
  %1515 = vrot.lane.b32.xlu0 %v1503, 19
  %v1516 = vpop.permute.xlu0 %1515
  %1517 = vrot.lane.b32.xlu0 %v1504, 19
  %v1518 = vpop.permute.xlu0 %1517
  %1519 = vrot.lane.b32.xlu0 %v1505, 19
  %v1520 = vpop.permute.xlu0 %1519
  %1521 = vrot.lane.b32.xlu0 %v1506, 19
  %v1522 = vpop.permute.xlu0 %1521
  %1523 = vrot.lane.b32.xlu0 %v1507, 19
  %v1524 = vpop.permute.xlu0 %1523
  %1525 = vrot.lane.b32.xlu0 %v1508, 19
  %v1526 = vpop.permute.xlu0 %1525
  %v1527 = vsel %vm95, %v1516, %v1518
  %v1528 = vsel %vm95, %v1518, %v1520
  %v1529 = vsel %vm95, %v1520, %v1522
  %v1530 = vsel %vm95, %v1522, %v1524
  %v1531 = vsel %vm95, %v1524, %v1526
  %1538 = vst [vmem:[#allocation6] sm:$0xff] %v1527
  %1539 = vst [vmem:[#allocation6 + $0x8] sm:$0xff] %v1528
  %1540 = vst [vmem:[#allocation6 + $0x10] sm:$0xff] %v1529
  %1541 = vst [vmem:[#allocation6 + $0x18] sm:$0xff] %v1530
  %1542 = vst [vmem:[#allocation6 + $0x20] sm:$0xff] %v1531
  %1543 = vst.msk [vmem:[#allocation6 + $0x28] sm:$0xff] %vm36, %v1526
  %v1544 = vld [vmem:[#allocation3] sm:$0xff]
  %v1545 = vld [vmem:[#allocation3 + $0x8] sm:$0xff]
  %v1546 = vld [vmem:[#allocation3 + $0x10] sm:$0xff]
  %v1547 = vld [vmem:[#allocation3 + $0x18] sm:$0xff]
  %v1548 = vld [vmem:[#allocation3 + $0x20] sm:$0xff]
  %v1549 = vld [vmem:[#allocation3 + $0x28] sm:$0xff]
  %1556 = vrot.lane.b32.xlu0 %v1544, 18
  %v1557 = vpop.permute.xlu0 %1556
  %1558 = vrot.lane.b32.xlu0 %v1545, 18
  %v1559 = vpop.permute.xlu0 %1558
  %1560 = vrot.lane.b32.xlu0 %v1546, 18
  %v1561 = vpop.permute.xlu0 %1560
  %1562 = vrot.lane.b32.xlu0 %v1547, 18
  %v1563 = vpop.permute.xlu0 %1562
  %1564 = vrot.lane.b32.xlu0 %v1548, 18
  %v1565 = vpop.permute.xlu0 %1564
  %1566 = vrot.lane.b32.xlu0 %v1549, 18
  %v1567 = vpop.permute.xlu0 %1566
  %v1568 = vsel %vm155, %v1557, %v1559
  %v1569 = vsel %vm155, %v1559, %v1561
  %v1570 = vsel %vm155, %v1561, %v1563
  %v1571 = vsel %vm155, %v1563, %v1565
  %v1572 = vsel %vm155, %v1565, %v1567
  %1579 = vst [vmem:[#allocation6 + $0x30] sm:$0xff] %v1568
  %1580 = vst [vmem:[#allocation6 + $0x38] sm:$0xff] %v1569
  %1581 = vst [vmem:[#allocation6 + $0x40] sm:$0xff] %v1570
  %1582 = vst [vmem:[#allocation6 + $0x48] sm:$0xff] %v1571
  %1583 = vst [vmem:[#allocation6 + $0x50] sm:$0xff] %v1572
  %1584 = vst.msk [vmem:[#allocation6 + $0x58] sm:$0xff] %vm36, %v1567
  %v1585 = vld [vmem:[#allocation3] sm:$0xff]
  %v1586 = vld [vmem:[#allocation3 + $0x8] sm:$0xff]
  %v1587 = vld [vmem:[#allocation3 + $0x10] sm:$0xff]
  %v1588 = vld [vmem:[#allocation3 + $0x18] sm:$0xff]
  %v1589 = vld [vmem:[#allocation3 + $0x20] sm:$0xff]
  %v1590 = vld [vmem:[#allocation3 + $0x28] sm:$0xff]
  %1597 = vrot.lane.b32.xlu0 %v1585, 17
  %v1598 = vpop.permute.xlu0 %1597
  %1599 = vrot.lane.b32.xlu0 %v1586, 17
  %v1600 = vpop.permute.xlu0 %1599
  %1601 = vrot.lane.b32.xlu0 %v1587, 17
  %v1602 = vpop.permute.xlu0 %1601
  %1603 = vrot.lane.b32.xlu0 %v1588, 17
  %v1604 = vpop.permute.xlu0 %1603
  %1605 = vrot.lane.b32.xlu0 %v1589, 17
  %v1606 = vpop.permute.xlu0 %1605
  %1607 = vrot.lane.b32.xlu0 %v1590, 17
  %v1608 = vpop.permute.xlu0 %1607
  %v1609 = vsel %vm215, %v1598, %v1600
  %v1610 = vsel %vm215, %v1600, %v1602
  %v1611 = vsel %vm215, %v1602, %v1604
  %v1612 = vsel %vm215, %v1604, %v1606
  %v1613 = vsel %vm215, %v1606, %v1608
  %1620 = vst [vmem:[#allocation6 + $0x60] sm:$0xff] %v1609
  %1621 = vst [vmem:[#allocation6 + $0x68] sm:$0xff] %v1610
  %1622 = vst [vmem:[#allocation6 + $0x70] sm:$0xff] %v1611
  %1623 = vst [vmem:[#allocation6 + $0x78] sm:$0xff] %v1612
  %1624 = vst [vmem:[#allocation6 + $0x80] sm:$0xff] %v1613
  %1625 = vst.msk [vmem:[#allocation6 + $0x88] sm:$0xff] %vm36, %v1608
  %v1626 = vld [vmem:[#allocation3] sm:$0xff]
  %v1627 = vld [vmem:[#allocation3 + $0x8] sm:$0xff]
  %v1628 = vld [vmem:[#allocation3 + $0x10] sm:$0xff]
  %v1629 = vld [vmem:[#allocation3 + $0x18] sm:$0xff]
  %v1630 = vld [vmem:[#allocation3 + $0x20] sm:$0xff]
  %v1631 = vld [vmem:[#allocation3 + $0x28] sm:$0xff]
  %v1632 = vld [vmem:[#allocation3 + $0x30] sm:$0xff]
  %1640 = vrot.lane.b32.xlu0 %v1626, 1
  %v1641 = vpop.permute.xlu0 %1640
  %1642 = vrot.lane.b32.xlu0 %v1627, 1
  %v1643 = vpop.permute.xlu0 %1642
  %1644 = vrot.lane.b32.xlu0 %v1628, 1
  %v1645 = vpop.permute.xlu0 %1644
  %1646 = vrot.lane.b32.xlu0 %v1629, 1
  %v1647 = vpop.permute.xlu0 %1646
  %1648 = vrot.lane.b32.xlu0 %v1630, 1
  %v1649 = vpop.permute.xlu0 %1648
  %1650 = vrot.lane.b32.xlu0 %v1631, 1
  %v1651 = vpop.permute.xlu0 %1650
  %1652 = vrot.lane.b32.xlu0 %v1632, 1
  %v1653 = vpop.permute.xlu0 %1652
  %v1654 = vsel %vm284, %v1641, %v1643
  %v1655 = vsel %vm284, %v1643, %v1645
  %v1656 = vsel %vm284, %v1645, %v1647
  %v1657 = vsel %vm284, %v1647, %v1649
  %v1658 = vsel %vm284, %v1649, %v1651
  %v1659 = vsel %vm284, %v1651, %v1653
  %1666 = vst [vmem:[#allocation6 + $0x90] sm:$0xff] %v1654
  %1667 = vst [vmem:[#allocation6 + $0x98] sm:$0xff] %v1655
  %1668 = vst [vmem:[#allocation6 + $0xa0] sm:$0xff] %v1656
  %1669 = vst [vmem:[#allocation6 + $0xa8] sm:$0xff] %v1657
  %1670 = vst [vmem:[#allocation6 + $0xb0] sm:$0xff] %v1658
  %1671 = vst.msk [vmem:[#allocation6 + $0xb8] sm:$0xff] %vm36, %v1659
  %v1672 = vld [vmem:[#allocation3 + $0x8] sm:$0xff]
  %v1673 = vld [vmem:[#allocation3 + $0x10] sm:$0xff]
  %v1674 = vld [vmem:[#allocation3 + $0x18] sm:$0xff]
  %v1675 = vld [vmem:[#allocation3 + $0x20] sm:$0xff]
  %v1676 = vld [vmem:[#allocation3 + $0x28] sm:$0xff]
  %v1677 = vld [vmem:[#allocation3 + $0x30] sm:$0xff]
  %1678 = vst [vmem:[#allocation6 + $0xc0] sm:$0xff] %v1672
  %1679 = vst [vmem:[#allocation6 + $0xc8] sm:$0xff] %v1673
  %1680 = vst [vmem:[#allocation6 + $0xd0] sm:$0xff] %v1674
  %1681 = vst [vmem:[#allocation6 + $0xd8] sm:$0xff] %v1675
  %1682 = vst [vmem:[#allocation6 + $0xe0] sm:$0xff] %v1676
  %1683 = vst.msk [vmem:[#allocation6 + $0xe8] sm:$0xff] %vm36, %v1677
  %v1684 = vld [vmem:[#allocation3 + $0x8] sm:$0xff]
  %v1685 = vld [vmem:[#allocation3 + $0x10] sm:$0xff]
  %v1686 = vld [vmem:[#allocation3 + $0x18] sm:$0xff]
  %v1687 = vld [vmem:[#allocation3 + $0x20] sm:$0xff]
  %v1688 = vld [vmem:[#allocation3 + $0x28] sm:$0xff]
  %v1689 = vld [vmem:[#allocation3 + $0x30] sm:$0xff]
  %1696 = vrot.lane.b32.xlu0 %v1684, 127
  %v1697 = vpop.permute.xlu0 %1696
  %1698 = vrot.lane.b32.xlu0 %v1685, 127
  %v1699 = vpop.permute.xlu0 %1698
  %1700 = vrot.lane.b32.xlu0 %v1686, 127
  %v1701 = vpop.permute.xlu0 %1700
  %1702 = vrot.lane.b32.xlu0 %v1687, 127
  %v1703 = vpop.permute.xlu0 %1702
  %1704 = vrot.lane.b32.xlu0 %v1688, 127
  %v1705 = vpop.permute.xlu0 %1704
  %1706 = vrot.lane.b32.xlu0 %v1689, 127
  %v1707 = vpop.permute.xlu0 %1706
  %v1708 = vsel %vm387, %v1697, %v1699
  %v1709 = vsel %vm387, %v1699, %v1701
  %v1710 = vsel %vm387, %v1701, %v1703
  %v1711 = vsel %vm387, %v1703, %v1705
  %v1712 = vsel %vm387, %v1705, %v1707
  %1719 = vst [vmem:[#allocation6 + $0xf0] sm:$0xff] %v1708
  %1720 = vst [vmem:[#allocation6 + $0xf8] sm:$0xff] %v1709
  %1721 = vst [vmem:[#allocation6 + $0x100] sm:$0xff] %v1710
  %1722 = vst [vmem:[#allocation6 + $0x108] sm:$0xff] %v1711
  %1723 = vst [vmem:[#allocation6 + $0x110] sm:$0xff] %v1712
  %1724 = vst.msk [vmem:[#allocation6 + $0x118] sm:$0xff] %vm36, %v1707
  %v1725 = vld [vmem:[#allocation3 + $0x8] sm:$0xff]
  %v1726 = vld [vmem:[#allocation3 + $0x10] sm:$0xff]
  %v1727 = vld [vmem:[#allocation3 + $0x18] sm:$0xff]
  %v1728 = vld [vmem:[#allocation3 + $0x20] sm:$0xff]
  %v1729 = vld [vmem:[#allocation3 + $0x28] sm:$0xff]
  %v1730 = vld [vmem:[#allocation3 + $0x30] sm:$0xff]
  %1737 = vrot.lane.b32.xlu0 %v1725, 111
  %v1738 = vpop.permute.xlu0 %1737
  %1739 = vrot.lane.b32.xlu0 %v1726, 111
  %v1740 = vpop.permute.xlu0 %1739
  %1741 = vrot.lane.b32.xlu0 %v1727, 111
  %v1742 = vpop.permute.xlu0 %1741
  %1743 = vrot.lane.b32.xlu0 %v1728, 111
  %v1744 = vpop.permute.xlu0 %1743
  %1745 = vrot.lane.b32.xlu0 %v1729, 111
  %v1746 = vpop.permute.xlu0 %1745
  %1747 = vrot.lane.b32.xlu0 %v1730, 111
  %v1748 = vpop.permute.xlu0 %1747
  %v1749 = vsel %vm447, %v1738, %v1740
  %v1750 = vsel %vm447, %v1740, %v1742
  %v1751 = vsel %vm447, %v1742, %v1744
  %v1752 = vsel %vm447, %v1744, %v1746
  %v1753 = vsel %vm447, %v1746, %v1748
  %1760 = vst [vmem:[#allocation6 + $0x120] sm:$0xff] %v1749
  %1761 = vst [vmem:[#allocation6 + $0x128] sm:$0xff] %v1750
  %1762 = vst [vmem:[#allocation6 + $0x130] sm:$0xff] %v1751
  %1763 = vst [vmem:[#allocation6 + $0x138] sm:$0xff] %v1752
  %1764 = vst [vmem:[#allocation6 + $0x140] sm:$0xff] %v1753
  %1765 = vst.msk [vmem:[#allocation6 + $0x148] sm:$0xff] %vm36, %v1748
  %v1766 = vld [vmem:[#allocation3 + $0x8] sm:$0xff]
  %v1767 = vld [vmem:[#allocation3 + $0x10] sm:$0xff]
  %v1768 = vld [vmem:[#allocation3 + $0x18] sm:$0xff]
  %v1769 = vld [vmem:[#allocation3 + $0x20] sm:$0xff]
  %v1770 = vld [vmem:[#allocation3 + $0x28] sm:$0xff]
  %v1771 = vld [vmem:[#allocation3 + $0x30] sm:$0xff]
  %1778 = vrot.lane.b32.xlu0 %v1766, 110
  %v1779 = vpop.permute.xlu0 %1778
  %1780 = vrot.lane.b32.xlu0 %v1767, 110
  %v1781 = vpop.permute.xlu0 %1780
  %1782 = vrot.lane.b32.xlu0 %v1768, 110
  %v1783 = vpop.permute.xlu0 %1782
  %1784 = vrot.lane.b32.xlu0 %v1769, 110
  %v1785 = vpop.permute.xlu0 %1784
  %1786 = vrot.lane.b32.xlu0 %v1770, 110
  %v1787 = vpop.permute.xlu0 %1786
  %1788 = vrot.lane.b32.xlu0 %v1771, 110
  %v1789 = vpop.permute.xlu0 %1788
  %v1790 = vsel %vm507, %v1779, %v1781
  %v1791 = vsel %vm507, %v1781, %v1783
  %v1792 = vsel %vm507, %v1783, %v1785
  %v1793 = vsel %vm507, %v1785, %v1787
  %v1794 = vsel %vm507, %v1787, %v1789
  %1801 = vst [vmem:[#allocation6 + $0x150] sm:$0xff] %v1790
  %1802 = vst [vmem:[#allocation6 + $0x158] sm:$0xff] %v1791
  %1803 = vst [vmem:[#allocation6 + $0x160] sm:$0xff] %v1792
  %1804 = vst [vmem:[#allocation6 + $0x168] sm:$0xff] %v1793
  %1805 = vst [vmem:[#allocation6 + $0x170] sm:$0xff] %v1794
  %1806 = vst.msk [vmem:[#allocation6 + $0x178] sm:$0xff] %vm36, %v1789
  %v1807 = vld [vmem:[#allocation3 + $0x8] sm:$0xff]
  %v1808 = vld [vmem:[#allocation3 + $0x10] sm:$0xff]
  %v1809 = vld [vmem:[#allocation3 + $0x18] sm:$0xff]
  %v1810 = vld [vmem:[#allocation3 + $0x20] sm:$0xff]
  %v1811 = vld [vmem:[#allocation3 + $0x28] sm:$0xff]
  %v1812 = vld [vmem:[#allocation3 + $0x30] sm:$0xff]
  %1819 = vrot.lane.b32.xlu0 %v1807, 109
  %v1820 = vpop.permute.xlu0 %1819
  %1821 = vrot.lane.b32.xlu0 %v1808, 109
  %v1822 = vpop.permute.xlu0 %1821
  %1823 = vrot.lane.b32.xlu0 %v1809, 109
  %v1824 = vpop.permute.xlu0 %1823
  %1825 = vrot.lane.b32.xlu0 %v1810, 109
  %v1826 = vpop.permute.xlu0 %1825
  %1827 = vrot.lane.b32.xlu0 %v1811, 109
  %v1828 = vpop.permute.xlu0 %1827
  %1829 = vrot.lane.b32.xlu0 %v1812, 109
  %v1830 = vpop.permute.xlu0 %1829
  %v1831 = vsel %vm567, %v1820, %v1822
  %v1832 = vsel %vm567, %v1822, %v1824
  %v1833 = vsel %vm567, %v1824, %v1826
  %v1834 = vsel %vm567, %v1826, %v1828
  %v1835 = vsel %vm567, %v1828, %v1830
  %1842 = vst [vmem:[#allocation6 + $0x180] sm:$0xff] %v1831
  %1843 = vst [vmem:[#allocation6 + $0x188] sm:$0xff] %v1832
  %1844 = vst [vmem:[#allocation6 + $0x190] sm:$0xff] %v1833
  %1845 = vst [vmem:[#allocation6 + $0x198] sm:$0xff] %v1834
  %1846 = vst [vmem:[#allocation6 + $0x1a0] sm:$0xff] %v1835
  %1847 = vst.msk [vmem:[#allocation6 + $0x1a8] sm:$0xff] %vm36, %v1830
  %v1848 = vld [vmem:[#allocation6] sm:$0xff]
  %v1849 = vld [vmem:[#allocation6 + $0x8] sm:$0xff]
  %v1850 = vld [vmem:[#allocation6 + $0x10] sm:$0xff]
  %v1851 = vld [vmem:[#allocation6 + $0x18] sm:$0xff]
  %v1852 = vld [vmem:[#allocation6 + $0x20] sm:$0xff]
  %v1853 = vld [vmem:[#allocation6 + $0x28] sm:$0xff]
  %v1854 = vld [vmem:[#allocation6 + $0x30] sm:$0xff]
  %v1855 = vld [vmem:[#allocation6 + $0x38] sm:$0xff]
  %v1856 = vld [vmem:[#allocation6 + $0x40] sm:$0xff]
  %v1857 = vld [vmem:[#allocation6 + $0x48] sm:$0xff]
  %v1858 = vld [vmem:[#allocation6 + $0x50] sm:$0xff]
  %v1859 = vld [vmem:[#allocation6 + $0x58] sm:$0xff]
  %v1860 = vld [vmem:[#allocation6 + $0x60] sm:$0xff]
  %v1861 = vld [vmem:[#allocation6 + $0x68] sm:$0xff]
  %v1862 = vld [vmem:[#allocation6 + $0x70] sm:$0xff]
  %v1863 = vld [vmem:[#allocation6 + $0x78] sm:$0xff]
  %v1864 = vld [vmem:[#allocation6 + $0x80] sm:$0xff]
  %v1865 = vld [vmem:[#allocation6 + $0x88] sm:$0xff]
  %v1866 = vld [vmem:[#allocation6 + $0x90] sm:$0xff]
  %v1867 = vld [vmem:[#allocation6 + $0x98] sm:$0xff]
  %v1868 = vld [vmem:[#allocation6 + $0xa0] sm:$0xff]
  %v1869 = vld [vmem:[#allocation6 + $0xa8] sm:$0xff]
  %v1870 = vld [vmem:[#allocation6 + $0xb0] sm:$0xff]
  %v1871 = vld [vmem:[#allocation6 + $0xb8] sm:$0xff]
  %v1872 = vld [vmem:[#allocation6 + $0xc0] sm:$0xff]
  %v1873 = vld [vmem:[#allocation6 + $0xc8] sm:$0xff]
  %v1874 = vld [vmem:[#allocation6 + $0xd0] sm:$0xff]
  %v1875 = vld [vmem:[#allocation6 + $0xd8] sm:$0xff]
  %v1876 = vld [vmem:[#allocation6 + $0xe0] sm:$0xff]
  %v1877 = vld [vmem:[#allocation6 + $0xe8] sm:$0xff]
  %v1878 = vld [vmem:[#allocation6 + $0xf0] sm:$0xff]
  %v1879 = vld [vmem:[#allocation6 + $0xf8] sm:$0xff]
  %v1880 = vld [vmem:[#allocation6 + $0x100] sm:$0xff]
  %v1881 = vld [vmem:[#allocation6 + $0x108] sm:$0xff]
  %v1882 = vld [vmem:[#allocation6 + $0x110] sm:$0xff]
  %v1883 = vld [vmem:[#allocation6 + $0x118] sm:$0xff]
  %v1884 = vld [vmem:[#allocation6 + $0x120] sm:$0xff]
  %v1885 = vld [vmem:[#allocation6 + $0x128] sm:$0xff]
  %v1886 = vld [vmem:[#allocation6 + $0x130] sm:$0xff]
  %v1887 = vld [vmem:[#allocation6 + $0x138] sm:$0xff]
  %v1888 = vld [vmem:[#allocation6 + $0x140] sm:$0xff]
  %v1889 = vld [vmem:[#allocation6 + $0x148] sm:$0xff]
  %v1890 = vld [vmem:[#allocation6 + $0x150] sm:$0xff]
  %v1891 = vld [vmem:[#allocation6 + $0x158] sm:$0xff]
  %v1892 = vld [vmem:[#allocation6 + $0x160] sm:$0xff]
  %v1893 = vld [vmem:[#allocation6 + $0x168] sm:$0xff]
  %v1894 = vld [vmem:[#allocation6 + $0x170] sm:$0xff]
  %v1895 = vld [vmem:[#allocation6 + $0x178] sm:$0xff]
  %v1896 = vld [vmem:[#allocation6 + $0x180] sm:$0xff]
  %v1897 = vld [vmem:[#allocation6 + $0x188] sm:$0xff]
  %v1898 = vld [vmem:[#allocation6 + $0x190] sm:$0xff]
  %v1899 = vld [vmem:[#allocation6 + $0x198] sm:$0xff]
  %v1900 = vld [vmem:[#allocation6 + $0x1a0] sm:$0xff]
  %v1901 = vld [vmem:[#allocation6 + $0x1a8] sm:$0xff]
  %1903 = vset.pattern.permute.xlu0 0
  %1904 = vperm.xlu0 %1903, %v1501
  %v1905 = vpop.permute.xlu0 %1904
  %1908 = vset.pattern.permute.xlu0 0
  %1909 = vperm.xlu0 %1908, %v1502
  %v1910 = vpop.permute.xlu0 %1909
  %v1914 = vunpack.c.l.b16 %v1499
  %v1915 = vunpack.c.h.b16 %v1499
  %v1916 = vunpack.c.l.b16 %v1500
  %v1917 = vunpack.c.h.b16 %v1500
  %v1918 = vpack.c.b16 %v1916, %v1914
  %v1919 = vpack.c.b16 %v1917, %v1915
  %v1922 = vsel %vm658, %v1919, 0
  %1924 = vmatprep.subr.bf16.mxu0 %v1849
  %1925 = vmatpush1.bf16.msra.mxu0 %v1848
  %1926 = vmatprep.subr.bf16.mxu0 %v1855
  %1927 = vmatpush1.bf16.msra.mxu0 %v1854
  %1928 = vmatprep.subr.bf16.mxu0 %v1861
  %1929 = vmatpush1.bf16.msra.mxu0 %v1860
  %1930 = vmatprep.subr.bf16.mxu0 %v1867
  %1931 = vmatpush1.bf16.msra.mxu0 %v1866
  %1932 = vmatprep.subr.bf16.mxu0 %v1873
  %1933 = vmatpush1.bf16.msra.mxu0 %v1872
  %1934 = vmatprep.subr.bf16.mxu0 %v1879
  %1935 = vmatpush1.bf16.msra.mxu0 %v1878
  %1936 = vmatprep.subr.bf16.mxu0 %v1885
  %1937 = vmatpush1.bf16.msra.mxu0 %v1884
  %1938 = vmatprep.subr.bf16.mxu0 %v1891
  %1939 = vmatpush1.bf16.msra.mxu0 %v1890
  %1940 = vmatprep.subr.bf16.mxu0 %v1897
  %1941 = vmatpush1.bf16.msra.mxu0 %v1896
  %1942 = vmatprep.subr.bf16.mxu0 0
  %1943 = vmatpush1.bf16.msra.mxu0 0
  %1944 = vmatprep.subr.bf16.mxu0 0
  %1945 = vmatpush1.bf16.msra.mxu0 0
  %1946 = vmatprep.subr.bf16.mxu0 0
  %1947 = vmatpush1.bf16.msra.mxu0 0
  %1948 = vmatprep.subr.bf16.mxu0 0
  %1949 = vmatpush1.bf16.msra.mxu0 0
  %1950 = vmatprep.subr.bf16.mxu0 0
  %1951 = vmatpush1.bf16.msra.mxu0 0
  %1952 = vmatprep.subr.bf16.mxu0 0
  %1953 = vmatpush1.bf16.msra.mxu0 0
  %1954 = vmatprep.subr.bf16.mxu0 0
  %1955 = vmatpush1.bf16.msra.mxu0 0
  %1956 = vmatprep.mubr.bf16.mxu0 %v1922
  %1957 = vmatmul.mubr.bf16.gmra.mrb[0].mxu0 %v1918
  %v1958 = vpop.f32.mrb[0].mxu0
  %v1959 = vadd.f32 %v1905, %v1958
  %v1960 = vpop.f32.mrb[0].mxu0
  %v1961 = vadd.f32 %v1905, %v1960
  %v1962 = vpop.f32.mrb[0].mxu0
  %v1963 = vadd.f32 %v1910, %v1962
  %v1964 = vpop.f32.mrb[0].mxu0
  %v1965 = vadd.f32 %v1910, %v1964
  %1966 = vdwg.mxu0
  %1967 = vmatprep.subr.bf16.mxu0 %v1851
  %1968 = vmatpush1.bf16.msra.mxu0 %v1850
  %1969 = vmatprep.subr.bf16.mxu0 %v1857
  %1970 = vmatpush1.bf16.msra.mxu0 %v1856
  %1971 = vmatprep.subr.bf16.mxu0 %v1863
  %1972 = vmatpush1.bf16.msra.mxu0 %v1862
  %1973 = vmatprep.subr.bf16.mxu0 %v1869
  %1974 = vmatpush1.bf16.msra.mxu0 %v1868
  %1975 = vmatprep.subr.bf16.mxu0 %v1875
  %1976 = vmatpush1.bf16.msra.mxu0 %v1874
  %1977 = vmatprep.subr.bf16.mxu0 %v1881
  %1978 = vmatpush1.bf16.msra.mxu0 %v1880
  %1979 = vmatprep.subr.bf16.mxu0 %v1887
  %1980 = vmatpush1.bf16.msra.mxu0 %v1886
  %1981 = vmatprep.subr.bf16.mxu0 %v1893
  %1982 = vmatpush1.bf16.msra.mxu0 %v1892
  %1983 = vmatprep.subr.bf16.mxu0 %v1899
  %1984 = vmatpush1.bf16.msra.mxu0 %v1898
  %1985 = vmatprep.subr.bf16.mxu0 0
  %1986 = vmatpush1.bf16.msra.mxu0 0
  %1987 = vmatprep.subr.bf16.mxu0 0
  %1988 = vmatpush1.bf16.msra.mxu0 0
  %1989 = vmatprep.subr.bf16.mxu0 0
  %1990 = vmatpush1.bf16.msra.mxu0 0
  %1991 = vmatprep.subr.bf16.mxu0 0
  %1992 = vmatpush1.bf16.msra.mxu0 0
  %1993 = vmatprep.subr.bf16.mxu0 0
  %1994 = vmatpush1.bf16.msra.mxu0 0
  %1995 = vmatprep.subr.bf16.mxu0 0
  %1996 = vmatpush1.bf16.msra.mxu0 0
  %1997 = vmatprep.subr.bf16.mxu0 0
  %1998 = vmatpush1.bf16.msra.mxu0 0
  %1999 = vmatprep.mubr.bf16.mxu0 %v1922
  %2000 = vmatmul.mubr.bf16.gmra.mrb[0].mxu0 %v1918
  %v2001 = vpop.f32.mrb[0].mxu0
  %v2002 = vadd.f32 %v1905, %v2001
  %v2003 = vpop.f32.mrb[0].mxu0
  %v2004 = vadd.f32 %v1905, %v2003
  %v2005 = vpop.f32.mrb[0].mxu0
  %v2006 = vadd.f32 %v1910, %v2005
  %v2007 = vpop.f32.mrb[0].mxu0
  %v2008 = vadd.f32 %v1910, %v2007
  %2009 = vdwg.mxu0
  %2010 = vmatprep.subr.bf16.mxu0 %v1853
  %2011 = vmatpush1.bf16.msra.mxu0 %v1852
  %2012 = vmatprep.subr.bf16.mxu0 %v1859
  %2013 = vmatpush1.bf16.msra.mxu0 %v1858
  %2014 = vmatprep.subr.bf16.mxu0 %v1865
  %2015 = vmatpush1.bf16.msra.mxu0 %v1864
  %2016 = vmatprep.subr.bf16.mxu0 %v1871
  %2017 = vmatpush1.bf16.msra.mxu0 %v1870
  %2018 = vmatprep.subr.bf16.mxu0 %v1877
  %2019 = vmatpush1.bf16.msra.mxu0 %v1876
  %2020 = vmatprep.subr.bf16.mxu0 %v1883
  %2021 = vmatpush1.bf16.msra.mxu0 %v1882
  %2022 = vmatprep.subr.bf16.mxu0 %v1889
  %2023 = vmatpush1.bf16.msra.mxu0 %v1888
  %2024 = vmatprep.subr.bf16.mxu0 %v1895
  %2025 = vmatpush1.bf16.msra.mxu0 %v1894
  %2026 = vmatprep.subr.bf16.mxu0 %v1901
  %2027 = vmatpush1.bf16.msra.mxu0 %v1900
  %2028 = vmatprep.subr.bf16.mxu0 0
  %2029 = vmatpush1.bf16.msra.mxu0 0
  %2030 = vmatprep.subr.bf16.mxu0 0
  %2031 = vmatpush1.bf16.msra.mxu0 0
  %2032 = vmatprep.subr.bf16.mxu0 0
  %2033 = vmatpush1.bf16.msra.mxu0 0
  %2034 = vmatprep.subr.bf16.mxu0 0
  %2035 = vmatpush1.bf16.msra.mxu0 0
  %2036 = vmatprep.subr.bf16.mxu0 0
  %2037 = vmatpush1.bf16.msra.mxu0 0
  %2038 = vmatprep.subr.bf16.mxu0 0
  %2039 = vmatpush1.bf16.msra.mxu0 0
  %2040 = vmatprep.subr.bf16.mxu0 0
  %2041 = vmatpush1.bf16.msra.mxu0 0
  %2042 = vmatprep.mubr.bf16.mxu0 %v1922
  %2043 = vmatmul.mubr.bf16.gmra.mrb[0].mxu0 %v1918
  %v2044 = vpop.f32.mrb[0].mxu0
  %v2045 = vadd.f32 %v1905, %v2044
  %v2046 = vpop.f32.mrb[0].mxu0
  %v2047 = vadd.f32 %v1905, %v2046
  %v2048 = vpop.f32.mrb[0].mxu0
  %v2049 = vadd.f32 %v1910, %v2048
  %v2050 = vpop.f32.mrb[0].mxu0
  %v2051 = vadd.f32 %v1910, %v2050
  %2052 = vdwg.mxu0
  %v2053 = vadd.f32 %v1959, %v1487
  %v2054 = vadd.f32 %v1961, %v1488
  %v2055 = vadd.f32 %v2002, %v1489
  %v2056 = vadd.f32 %v2004, %v1490
  %v2057 = vadd.f32 %v2045, %v1491
  %v2058 = vadd.f32 %v2047, %v1492
  %v2059 = vadd.f32 %v1963, %v1493
  %v2060 = vadd.f32 %v1965, %v1494
  %v2061 = vadd.f32 %v2006, %v1495
  %v2062 = vadd.f32 %v2008, %v1496
  %v2063 = vadd.f32 %v2049, %v1497
  %v2064 = vadd.f32 %v2051, %v1498
  %v2065 = vld [vmem:[%s1] sm:$0x3f]
  %v2067 = vlaneseq
  %v2068 = vshrl.u32 %v2067, 7
  %v2069 = vsub.s32 0, %v2068
  %v2070 = vrot.slane %v2065, %v2069
  %v2071 = vlaneseq
  %v2072 = vshrl.u32 %v2071, 7
  %v2073 = vsub.s32 1, %v2072
  %v2074 = vrot.slane %v2065, %v2073
  %v2075 = vlaneseq
  %v2076 = vshrl.u32 %v2075, 7
  %v2077 = vsub.s32 2, %v2076
  %v2078 = vrot.slane %v2065, %v2077
  %v2079 = vlaneseq
  %v2080 = vshrl.u32 %v2079, 7
  %v2081 = vsub.s32 3, %v2080
  %v2082 = vrot.slane %v2065, %v2081
  %v2083 = vlaneseq
  %v2084 = vshrl.u32 %v2083, 7
  %v2085 = vsub.s32 4, %v2084
  %v2086 = vrot.slane %v2065, %v2085
  %v2087 = vlaneseq
  %v2088 = vshrl.u32 %v2087, 7
  %v2089 = vsub.s32 5, %v2088
  %v2090 = vrot.slane %v2065, %v2089
  %v2097 = vmul.f32 %v2053, %v2070
  %v2098 = vmul.f32 %v2054, %v2074
  %v2099 = vmul.f32 %v2055, %v2078
  %v2100 = vmul.f32 %v2056, %v2082
  %v2101 = vmul.f32 %v2057, %v2086
  %v2102 = vmul.f32 %v2058, %v2090
  %v2103 = vmul.f32 %v2059, %v2070
  %v2104 = vmul.f32 %v2060, %v2074
  %v2105 = vmul.f32 %v2061, %v2078
  %v2106 = vmul.f32 %v2062, %v2082
  %v2107 = vmul.f32 %v2063, %v2086
  %v2108 = vmul.f32 %v2064, %v2090
  %v2109 = vmax.f32 %v2097, 0.0
  %v2110 = vmax.f32 %v2098, 0.0
  %v2111 = vmax.f32 %v2099, 0.0
  %v2112 = vmax.f32 %v2100, 0.0
  %v2113 = vmax.f32 %v2101, 0.0
  %v2114 = vmax.f32 %v2102, 0.0
  %v2115 = vmax.f32 %v2103, 0.0
  %v2116 = vmax.f32 %v2104, 0.0
  %v2117 = vmax.f32 %v2105, 0.0
  %v2118 = vmax.f32 %v2106, 0.0
  %v2119 = vmax.f32 %v2107, 0.0
  %v2120 = vmax.f32 %v2108, 0.0
  %v2121 = vpack.c.bf16 %v2115, %v2109
  %v2122 = vpack.c.bf16 %v2116, %v2110
  %v2123 = vpack.c.bf16 %v2117, %v2111
  %v2124 = vpack.c.bf16 %v2118, %v2112
  %v2125 = vpack.c.bf16 %v2119, %v2113
  %v2126 = vpack.c.bf16 %v2120, %v2114
  %2127 = vst [vmem:[#allocation2 + $0x8] sm:$0xff] %v2121
  %2128 = vst [vmem:[#allocation2 + $0x10] sm:$0xff] %v2122
  %2129 = vst [vmem:[#allocation2 + $0x18] sm:$0xff] %v2123
  %2130 = vst [vmem:[#allocation2 + $0x20] sm:$0xff] %v2124
  %2131 = vst [vmem:[#allocation2 + $0x28] sm:$0xff] %v2125
  %2132 = vst.msk [vmem:[#allocation2 + $0x30] sm:$0xff] %vm36, %v2126
  %v2133 = vld [vmem:[%s3] sm:$0xff]
  %v2134 = vld [vmem:[%s3 + $0x8] sm:$0xff]
  %v2135 = vld [vmem:[%s3 + $0x10] sm:$0xff]
  %v2136 = vld [vmem:[%s3 + $0x18] sm:$0xff]
  %v2137 = vld [vmem:[%s3 + $0x20] sm:$0xff]
  %v2138 = vld [vmem:[%s3 + $0x28] sm:$0xff]
  %v2139 = vld [vmem:[%s3 + $0x30] sm:$0xff]
  %v2140 = vld [vmem:[%s3 + $0x38] sm:$0xff]
  %v2141 = vld [vmem:[%s3 + $0x40] sm:$0xff]
  %v2142 = vld [vmem:[%s3 + $0x48] sm:$0xff]
  %v2143 = vld [vmem:[%s3 + $0x50] sm:$0xff]
  %v2144 = vld [vmem:[%s3 + $0x58] sm:$0xff]
  %v2145 = vld [vmem:[%s3 + $0x60] sm:$0xff]
  %v2146 = vld [vmem:[%s3 + $0x68] sm:$0xff]
  %v2147 = vld [vmem:[%s3 + $0x70] sm:$0xff]
  %v2148 = vld [vmem:[%s3 + $0x78] sm:$0xff]
  %v2149 = vld [vmem:[%s3 + $0x80] sm:$0xff]
  %v2150 = vld [vmem:[%s3 + $0x88] sm:$0xff]
  %v2151 = vld [vmem:[%s3 + $0x90] sm:$0xff]
  %v2152 = vld [vmem:[%s3 + $0x98] sm:$0xff]
  %v2153 = vld [vmem:[%s3 + $0xa0] sm:$0xff]
  %v2154 = vld [vmem:[%s3 + $0xa8] sm:$0xff]
  %v2155 = vld [vmem:[%s3 + $0xb0] sm:$0xff]
  %v2156 = vld [vmem:[%s3 + $0xb8] sm:$0xff]
  %v2157 = vld [vmem:[%s3 + $0xc0] sm:$0xff]
  %v2158 = vld [vmem:[%s3 + $0xc8] sm:$0xff]
  %v2159 = vld [vmem:[%s3 + $0xd0] sm:$0xff]
  %v2160 = vld [vmem:[%s3 + $0xd8] sm:$0xff]
  %v2161 = vld [vmem:[%s3 + $0xe0] sm:$0xff]
  %v2162 = vld [vmem:[%s3 + $0xe8] sm:$0xff]
  %v2163 = vld [vmem:[%s3 + $0xf0] sm:$0xff]
  %v2164 = vld [vmem:[%s3 + $0xf8] sm:$0xff]
  %v2165 = vld [vmem:[%s3 + $0x100] sm:$0xff]
  %v2166 = vld [vmem:[%s3 + $0x108] sm:$0xff]
  %v2167 = vld [vmem:[%s3 + $0x110] sm:$0xff]
  %v2168 = vld [vmem:[%s3 + $0x118] sm:$0xff]
  %v2169 = vld [vmem:[%s3 + $0x120] sm:$0xff]
  %v2170 = vld [vmem:[%s3 + $0x128] sm:$0xff]
  %v2171 = vld [vmem:[%s3 + $0x130] sm:$0xff]
  %v2172 = vld [vmem:[%s3 + $0x138] sm:$0xff]
  %v2173 = vld [vmem:[%s3 + $0x140] sm:$0xff]
  %v2174 = vld [vmem:[%s3 + $0x148] sm:$0xff]
  %v2175 = vld [vmem:[%s3 + $0x150] sm:$0xff]
  %v2176 = vld [vmem:[%s3 + $0x158] sm:$0xff]
  %v2177 = vld [vmem:[%s3 + $0x160] sm:$0xff]
  %v2178 = vld [vmem:[%s3 + $0x168] sm:$0xff]
  %v2179 = vld [vmem:[%s3 + $0x170] sm:$0xff]
  %v2180 = vld [vmem:[%s3 + $0x178] sm:$0xff]
  %v2181 = vld [vmem:[%s3 + $0x180] sm:$0xff]
  %v2182 = vld [vmem:[%s3 + $0x188] sm:$0xff]
  %v2183 = vld [vmem:[%s3 + $0x190] sm:$0xff]
  %v2184 = vld [vmem:[%s3 + $0x198] sm:$0xff]
  %v2185 = vld [vmem:[%s3 + $0x1a0] sm:$0xff]
  %v2186 = vld [vmem:[%s3 + $0x1a8] sm:$0xff]
  %v2187 = vld [vmem:[%s3 + $0x1b0] sm:$0xff]
  %v2188 = vld [vmem:[%s3 + $0x1b8] sm:$0xff]
  %v2189 = vld [vmem:[%s3 + $0x1c0] sm:$0xff]
  %v2190 = vld [vmem:[%s3 + $0x1c8] sm:$0xff]
  %v2191 = vld [vmem:[%s3 + $0x1d0] sm:$0xff]
  %v2192 = vld [vmem:[%s3 + $0x1d8] sm:$0xff]
  %v2193 = vld [vmem:[%s3 + $0x1e0] sm:$0xff]
  %v2194 = vld [vmem:[%s3 + $0x1e8] sm:$0xff]
  %v2195 = vld [vmem:[%s3 + $0x1f0] sm:$0xff]
  %v2196 = vld [vmem:[%s3 + $0x1f8] sm:$0xff]
  %v2197 = vld [vmem:[%s3 + $0x200] sm:$0xff]
  %v2198 = vld [vmem:[%s3 + $0x208] sm:$0xff]
  %v2199 = vld [vmem:[%s3 + $0x210] sm:$0xff]
  %v2200 = vld [vmem:[%s3 + $0x218] sm:$0xff]
  %v2201 = vld [vmem:[%s3 + $0x220] sm:$0xff]
  %v2202 = vld [vmem:[%s3 + $0x228] sm:$0xff]
  %v2203 = vld [vmem:[%s3 + $0x230] sm:$0xff]
  %v2204 = vld [vmem:[%s3 + $0x238] sm:$0xff]
  %v2205 = vld [vmem:[%s3 + $0x240] sm:$0xff]
  %v2206 = vld [vmem:[%s3 + $0x248] sm:$0xff]
  %v2207 = vld [vmem:[%s3 + $0x250] sm:$0xff]
  %v2208 = vld [vmem:[%s3 + $0x258] sm:$0xff]
  %v2209 = vld [vmem:[%s3 + $0x260] sm:$0xff]
  %v2210 = vld [vmem:[%s3 + $0x268] sm:$0xff]
  %v2211 = vld [vmem:[%s3 + $0x270] sm:$0xff]
  %v2212 = vld [vmem:[%s3 + $0x278] sm:$0xff]
  %v2213 = vld [vmem:[%s3 + $0x280] sm:$0xff]
  %v2214 = vld [vmem:[%s4 + $0x30] sm:$0xff]
  %v2215 = vld [vmem:[%s4 + $0x38] sm:$0xff]
  %v2216 = vld [vmem:[%s5 + $0x30] sm:$0xff]
  %v2217 = vld [vmem:[%s5 + $0x38] sm:$0xff]
  %v2218 = vld [vmem:[#allocation2] sm:$0xff]
  %v2219 = vld [vmem:[#allocation2 + $0x8] sm:$0xff]
  %v2220 = vld [vmem:[#allocation2 + $0x10] sm:$0xff]
  %v2221 = vld [vmem:[#allocation2 + $0x18] sm:$0xff]
  %v2222 = vld [vmem:[#allocation2 + $0x20] sm:$0xff]
  %v2223 = vld [vmem:[#allocation2 + $0x28] sm:$0xff]
  %2230 = vrot.lane.b32.xlu0 %v2218, 19
  %v2231 = vpop.permute.xlu0 %2230
  %2232 = vrot.lane.b32.xlu0 %v2219, 19
  %v2233 = vpop.permute.xlu0 %2232
  %2234 = vrot.lane.b32.xlu0 %v2220, 19
  %v2235 = vpop.permute.xlu0 %2234
  %2236 = vrot.lane.b32.xlu0 %v2221, 19
  %v2237 = vpop.permute.xlu0 %2236
  %2238 = vrot.lane.b32.xlu0 %v2222, 19
  %v2239 = vpop.permute.xlu0 %2238
  %2240 = vrot.lane.b32.xlu0 %v2223, 19
  %v2241 = vpop.permute.xlu0 %2240
  %v2242 = vsel %vm95, %v2231, %v2233
  %v2243 = vsel %vm95, %v2233, %v2235
  %v2244 = vsel %vm95, %v2235, %v2237
  %v2245 = vsel %vm95, %v2237, %v2239
  %v2246 = vsel %vm95, %v2239, %v2241
  %2253 = vst [vmem:[#allocation6] sm:$0xff] %v2242
  %2254 = vst [vmem:[#allocation6 + $0x8] sm:$0xff] %v2243
  %2255 = vst [vmem:[#allocation6 + $0x10] sm:$0xff] %v2244
  %2256 = vst [vmem:[#allocation6 + $0x18] sm:$0xff] %v2245
  %2257 = vst [vmem:[#allocation6 + $0x20] sm:$0xff] %v2246
  %2258 = vst.msk [vmem:[#allocation6 + $0x28] sm:$0xff] %vm36, %v2241
  %v2259 = vld [vmem:[#allocation2] sm:$0xff]
  %v2260 = vld [vmem:[#allocation2 + $0x8] sm:$0xff]
  %v2261 = vld [vmem:[#allocation2 + $0x10] sm:$0xff]
  %v2262 = vld [vmem:[#allocation2 + $0x18] sm:$0xff]
  %v2263 = vld [vmem:[#allocation2 + $0x20] sm:$0xff]
  %v2264 = vld [vmem:[#allocation2 + $0x28] sm:$0xff]
  %2271 = vrot.lane.b32.xlu0 %v2259, 18
  %v2272 = vpop.permute.xlu0 %2271
  %2273 = vrot.lane.b32.xlu0 %v2260, 18
  %v2274 = vpop.permute.xlu0 %2273
  %2275 = vrot.lane.b32.xlu0 %v2261, 18
  %v2276 = vpop.permute.xlu0 %2275
  %2277 = vrot.lane.b32.xlu0 %v2262, 18
  %v2278 = vpop.permute.xlu0 %2277
  %2279 = vrot.lane.b32.xlu0 %v2263, 18
  %v2280 = vpop.permute.xlu0 %2279
  %2281 = vrot.lane.b32.xlu0 %v2264, 18
  %v2282 = vpop.permute.xlu0 %2281
  %v2283 = vsel %vm155, %v2272, %v2274
  %v2284 = vsel %vm155, %v2274, %v2276
  %v2285 = vsel %vm155, %v2276, %v2278
  %v2286 = vsel %vm155, %v2278, %v2280
  %v2287 = vsel %vm155, %v2280, %v2282
  %2294 = vst [vmem:[#allocation6 + $0x30] sm:$0xff] %v2283
  %2295 = vst [vmem:[#allocation6 + $0x38] sm:$0xff] %v2284
  %2296 = vst [vmem:[#allocation6 + $0x40] sm:$0xff] %v2285
  %2297 = vst [vmem:[#allocation6 + $0x48] sm:$0xff] %v2286
  %2298 = vst [vmem:[#allocation6 + $0x50] sm:$0xff] %v2287
  %2299 = vst.msk [vmem:[#allocation6 + $0x58] sm:$0xff] %vm36, %v2282
  %v2300 = vld [vmem:[#allocation2] sm:$0xff]
  %v2301 = vld [vmem:[#allocation2 + $0x8] sm:$0xff]
  %v2302 = vld [vmem:[#allocation2 + $0x10] sm:$0xff]
  %v2303 = vld [vmem:[#allocation2 + $0x18] sm:$0xff]
  %v2304 = vld [vmem:[#allocation2 + $0x20] sm:$0xff]
  %v2305 = vld [vmem:[#allocation2 + $0x28] sm:$0xff]
  %2312 = vrot.lane.b32.xlu0 %v2300, 17
  %v2313 = vpop.permute.xlu0 %2312
  %2314 = vrot.lane.b32.xlu0 %v2301, 17
  %v2315 = vpop.permute.xlu0 %2314
  %2316 = vrot.lane.b32.xlu0 %v2302, 17
  %v2317 = vpop.permute.xlu0 %2316
  %2318 = vrot.lane.b32.xlu0 %v2303, 17
  %v2319 = vpop.permute.xlu0 %2318
  %2320 = vrot.lane.b32.xlu0 %v2304, 17
  %v2321 = vpop.permute.xlu0 %2320
  %2322 = vrot.lane.b32.xlu0 %v2305, 17
  %v2323 = vpop.permute.xlu0 %2322
  %v2324 = vsel %vm215, %v2313, %v2315
  %v2325 = vsel %vm215, %v2315, %v2317
  %v2326 = vsel %vm215, %v2317, %v2319
  %v2327 = vsel %vm215, %v2319, %v2321
  %v2328 = vsel %vm215, %v2321, %v2323
  %2335 = vst [vmem:[#allocation6 + $0x60] sm:$0xff] %v2324
  %2336 = vst [vmem:[#allocation6 + $0x68] sm:$0xff] %v2325
  %2337 = vst [vmem:[#allocation6 + $0x70] sm:$0xff] %v2326
  %2338 = vst [vmem:[#allocation6 + $0x78] sm:$0xff] %v2327
  %2339 = vst [vmem:[#allocation6 + $0x80] sm:$0xff] %v2328
  %2340 = vst.msk [vmem:[#allocation6 + $0x88] sm:$0xff] %vm36, %v2323
  %v2341 = vld [vmem:[#allocation2] sm:$0xff]
  %v2342 = vld [vmem:[#allocation2 + $0x8] sm:$0xff]
  %v2343 = vld [vmem:[#allocation2 + $0x10] sm:$0xff]
  %v2344 = vld [vmem:[#allocation2 + $0x18] sm:$0xff]
  %v2345 = vld [vmem:[#allocation2 + $0x20] sm:$0xff]
  %v2346 = vld [vmem:[#allocation2 + $0x28] sm:$0xff]
  %v2347 = vld [vmem:[#allocation2 + $0x30] sm:$0xff]
  %2355 = vrot.lane.b32.xlu0 %v2341, 1
  %v2356 = vpop.permute.xlu0 %2355
  %2357 = vrot.lane.b32.xlu0 %v2342, 1
  %v2358 = vpop.permute.xlu0 %2357
  %2359 = vrot.lane.b32.xlu0 %v2343, 1
  %v2360 = vpop.permute.xlu0 %2359
  %2361 = vrot.lane.b32.xlu0 %v2344, 1
  %v2362 = vpop.permute.xlu0 %2361
  %2363 = vrot.lane.b32.xlu0 %v2345, 1
  %v2364 = vpop.permute.xlu0 %2363
  %2365 = vrot.lane.b32.xlu0 %v2346, 1
  %v2366 = vpop.permute.xlu0 %2365
  %2367 = vrot.lane.b32.xlu0 %v2347, 1
  %v2368 = vpop.permute.xlu0 %2367
  %v2369 = vsel %vm284, %v2356, %v2358
  %v2370 = vsel %vm284, %v2358, %v2360
  %v2371 = vsel %vm284, %v2360, %v2362
  %v2372 = vsel %vm284, %v2362, %v2364
  %v2373 = vsel %vm284, %v2364, %v2366
  %v2374 = vsel %vm284, %v2366, %v2368
  %2381 = vst [vmem:[#allocation6 + $0x90] sm:$0xff] %v2369
  %2382 = vst [vmem:[#allocation6 + $0x98] sm:$0xff] %v2370
  %2383 = vst [vmem:[#allocation6 + $0xa0] sm:$0xff] %v2371
  %2384 = vst [vmem:[#allocation6 + $0xa8] sm:$0xff] %v2372
  %2385 = vst [vmem:[#allocation6 + $0xb0] sm:$0xff] %v2373
  %2386 = vst.msk [vmem:[#allocation6 + $0xb8] sm:$0xff] %vm36, %v2374
  %v2387 = vld [vmem:[#allocation2 + $0x8] sm:$0xff]
  %v2388 = vld [vmem:[#allocation2 + $0x10] sm:$0xff]
  %v2389 = vld [vmem:[#allocation2 + $0x18] sm:$0xff]
  %v2390 = vld [vmem:[#allocation2 + $0x20] sm:$0xff]
  %v2391 = vld [vmem:[#allocation2 + $0x28] sm:$0xff]
  %v2392 = vld [vmem:[#allocation2 + $0x30] sm:$0xff]
  %2393 = vst [vmem:[#allocation6 + $0xc0] sm:$0xff] %v2387
  %2394 = vst [vmem:[#allocation6 + $0xc8] sm:$0xff] %v2388
  %2395 = vst [vmem:[#allocation6 + $0xd0] sm:$0xff] %v2389
  %2396 = vst [vmem:[#allocation6 + $0xd8] sm:$0xff] %v2390
  %2397 = vst [vmem:[#allocation6 + $0xe0] sm:$0xff] %v2391
  %2398 = vst.msk [vmem:[#allocation6 + $0xe8] sm:$0xff] %vm36, %v2392
  %v2399 = vld [vmem:[#allocation2 + $0x8] sm:$0xff]
  %v2400 = vld [vmem:[#allocation2 + $0x10] sm:$0xff]
  %v2401 = vld [vmem:[#allocation2 + $0x18] sm:$0xff]
  %v2402 = vld [vmem:[#allocation2 + $0x20] sm:$0xff]
  %v2403 = vld [vmem:[#allocation2 + $0x28] sm:$0xff]
  %v2404 = vld [vmem:[#allocation2 + $0x30] sm:$0xff]
  %2411 = vrot.lane.b32.xlu0 %v2399, 127
  %v2412 = vpop.permute.xlu0 %2411
  %2413 = vrot.lane.b32.xlu0 %v2400, 127
  %v2414 = vpop.permute.xlu0 %2413
  %2415 = vrot.lane.b32.xlu0 %v2401, 127
  %v2416 = vpop.permute.xlu0 %2415
  %2417 = vrot.lane.b32.xlu0 %v2402, 127
  %v2418 = vpop.permute.xlu0 %2417
  %2419 = vrot.lane.b32.xlu0 %v2403, 127
  %v2420 = vpop.permute.xlu0 %2419
  %2421 = vrot.lane.b32.xlu0 %v2404, 127
  %v2422 = vpop.permute.xlu0 %2421
  %v2423 = vsel %vm387, %v2412, %v2414
  %v2424 = vsel %vm387, %v2414, %v2416
  %v2425 = vsel %vm387, %v2416, %v2418
  %v2426 = vsel %vm387, %v2418, %v2420
  %v2427 = vsel %vm387, %v2420, %v2422
  %2434 = vst [vmem:[#allocation6 + $0xf0] sm:$0xff] %v2423
  %2435 = vst [vmem:[#allocation6 + $0xf8] sm:$0xff] %v2424
  %2436 = vst [vmem:[#allocation6 + $0x100] sm:$0xff] %v2425
  %2437 = vst [vmem:[#allocation6 + $0x108] sm:$0xff] %v2426
  %2438 = vst [vmem:[#allocation6 + $0x110] sm:$0xff] %v2427
  %2439 = vst.msk [vmem:[#allocation6 + $0x118] sm:$0xff] %vm36, %v2422
  %v2440 = vld [vmem:[#allocation2 + $0x8] sm:$0xff]
  %v2441 = vld [vmem:[#allocation2 + $0x10] sm:$0xff]
  %v2442 = vld [vmem:[#allocation2 + $0x18] sm:$0xff]
  %v2443 = vld [vmem:[#allocation2 + $0x20] sm:$0xff]
  %v2444 = vld [vmem:[#allocation2 + $0x28] sm:$0xff]
  %v2445 = vld [vmem:[#allocation2 + $0x30] sm:$0xff]
  %2452 = vrot.lane.b32.xlu0 %v2440, 111
  %v2453 = vpop.permute.xlu0 %2452
  %2454 = vrot.lane.b32.xlu0 %v2441, 111
  %v2455 = vpop.permute.xlu0 %2454
  %2456 = vrot.lane.b32.xlu0 %v2442, 111
  %v2457 = vpop.permute.xlu0 %2456
  %2458 = vrot.lane.b32.xlu0 %v2443, 111
  %v2459 = vpop.permute.xlu0 %2458
  %2460 = vrot.lane.b32.xlu0 %v2444, 111
  %v2461 = vpop.permute.xlu0 %2460
  %2462 = vrot.lane.b32.xlu0 %v2445, 111
  %v2463 = vpop.permute.xlu0 %2462
  %v2464 = vsel %vm447, %v2453, %v2455
  %v2465 = vsel %vm447, %v2455, %v2457
  %v2466 = vsel %vm447, %v2457, %v2459
  %v2467 = vsel %vm447, %v2459, %v2461
  %v2468 = vsel %vm447, %v2461, %v2463
  %2475 = vst [vmem:[#allocation6 + $0x120] sm:$0xff] %v2464
  %2476 = vst [vmem:[#allocation6 + $0x128] sm:$0xff] %v2465
  %2477 = vst [vmem:[#allocation6 + $0x130] sm:$0xff] %v2466
  %2478 = vst [vmem:[#allocation6 + $0x138] sm:$0xff] %v2467
  %2479 = vst [vmem:[#allocation6 + $0x140] sm:$0xff] %v2468
  %2480 = vst.msk [vmem:[#allocation6 + $0x148] sm:$0xff] %vm36, %v2463
  %v2481 = vld [vmem:[#allocation2 + $0x8] sm:$0xff]
  %v2482 = vld [vmem:[#allocation2 + $0x10] sm:$0xff]
  %v2483 = vld [vmem:[#allocation2 + $0x18] sm:$0xff]
  %v2484 = vld [vmem:[#allocation2 + $0x20] sm:$0xff]
  %v2485 = vld [vmem:[#allocation2 + $0x28] sm:$0xff]
  %v2486 = vld [vmem:[#allocation2 + $0x30] sm:$0xff]
  %2493 = vrot.lane.b32.xlu0 %v2481, 110
  %v2494 = vpop.permute.xlu0 %2493
  %2495 = vrot.lane.b32.xlu0 %v2482, 110
  %v2496 = vpop.permute.xlu0 %2495
  %2497 = vrot.lane.b32.xlu0 %v2483, 110
  %v2498 = vpop.permute.xlu0 %2497
  %2499 = vrot.lane.b32.xlu0 %v2484, 110
  %v2500 = vpop.permute.xlu0 %2499
  %2501 = vrot.lane.b32.xlu0 %v2485, 110
  %v2502 = vpop.permute.xlu0 %2501
  %2503 = vrot.lane.b32.xlu0 %v2486, 110
  %v2504 = vpop.permute.xlu0 %2503
  %v2505 = vsel %vm507, %v2494, %v2496
  %v2506 = vsel %vm507, %v2496, %v2498
  %v2507 = vsel %vm507, %v2498, %v2500
  %v2508 = vsel %vm507, %v2500, %v2502
  %v2509 = vsel %vm507, %v2502, %v2504
  %2516 = vst [vmem:[#allocation6 + $0x150] sm:$0xff] %v2505
  %2517 = vst [vmem:[#allocation6 + $0x158] sm:$0xff] %v2506
  %2518 = vst [vmem:[#allocation6 + $0x160] sm:$0xff] %v2507
  %2519 = vst [vmem:[#allocation6 + $0x168] sm:$0xff] %v2508
  %2520 = vst [vmem:[#allocation6 + $0x170] sm:$0xff] %v2509
  %2521 = vst.msk [vmem:[#allocation6 + $0x178] sm:$0xff] %vm36, %v2504
  %v2522 = vld [vmem:[#allocation2 + $0x8] sm:$0xff]
  %v2523 = vld [vmem:[#allocation2 + $0x10] sm:$0xff]
  %v2524 = vld [vmem:[#allocation2 + $0x18] sm:$0xff]
  %v2525 = vld [vmem:[#allocation2 + $0x20] sm:$0xff]
  %v2526 = vld [vmem:[#allocation2 + $0x28] sm:$0xff]
  %v2527 = vld [vmem:[#allocation2 + $0x30] sm:$0xff]
  %2534 = vrot.lane.b32.xlu0 %v2522, 109
  %v2535 = vpop.permute.xlu0 %2534
  %2536 = vrot.lane.b32.xlu0 %v2523, 109
  %v2537 = vpop.permute.xlu0 %2536
  %2538 = vrot.lane.b32.xlu0 %v2524, 109
  %v2539 = vpop.permute.xlu0 %2538
  %2540 = vrot.lane.b32.xlu0 %v2525, 109
  %v2541 = vpop.permute.xlu0 %2540
  %2542 = vrot.lane.b32.xlu0 %v2526, 109
  %v2543 = vpop.permute.xlu0 %2542
  %2544 = vrot.lane.b32.xlu0 %v2527, 109
  %v2545 = vpop.permute.xlu0 %2544
  %v2546 = vsel %vm567, %v2535, %v2537
  %v2547 = vsel %vm567, %v2537, %v2539
  %v2548 = vsel %vm567, %v2539, %v2541
  %v2549 = vsel %vm567, %v2541, %v2543
  %v2550 = vsel %vm567, %v2543, %v2545
  %2557 = vst [vmem:[#allocation6 + $0x180] sm:$0xff] %v2546
  %2558 = vst [vmem:[#allocation6 + $0x188] sm:$0xff] %v2547
  %2559 = vst [vmem:[#allocation6 + $0x190] sm:$0xff] %v2548
  %2560 = vst [vmem:[#allocation6 + $0x198] sm:$0xff] %v2549
  %2561 = vst [vmem:[#allocation6 + $0x1a0] sm:$0xff] %v2550
  %2562 = vst.msk [vmem:[#allocation6 + $0x1a8] sm:$0xff] %vm36, %v2545
  %v2563 = vld [vmem:[#allocation6] sm:$0xff]
  %v2564 = vld [vmem:[#allocation6 + $0x8] sm:$0xff]
  %v2565 = vld [vmem:[#allocation6 + $0x10] sm:$0xff]
  %v2566 = vld [vmem:[#allocation6 + $0x18] sm:$0xff]
  %v2567 = vld [vmem:[#allocation6 + $0x20] sm:$0xff]
  %v2568 = vld [vmem:[#allocation6 + $0x28] sm:$0xff]
  %v2569 = vld [vmem:[#allocation6 + $0x30] sm:$0xff]
  %v2570 = vld [vmem:[#allocation6 + $0x38] sm:$0xff]
  %v2571 = vld [vmem:[#allocation6 + $0x40] sm:$0xff]
  %v2572 = vld [vmem:[#allocation6 + $0x48] sm:$0xff]
  %v2573 = vld [vmem:[#allocation6 + $0x50] sm:$0xff]
  %v2574 = vld [vmem:[#allocation6 + $0x58] sm:$0xff]
  %v2575 = vld [vmem:[#allocation6 + $0x60] sm:$0xff]
  %v2576 = vld [vmem:[#allocation6 + $0x68] sm:$0xff]
  %v2577 = vld [vmem:[#allocation6 + $0x70] sm:$0xff]
  %v2578 = vld [vmem:[#allocation6 + $0x78] sm:$0xff]
  %v2579 = vld [vmem:[#allocation6 + $0x80] sm:$0xff]
  %v2580 = vld [vmem:[#allocation6 + $0x88] sm:$0xff]
  %v2581 = vld [vmem:[#allocation6 + $0x90] sm:$0xff]
  %v2582 = vld [vmem:[#allocation6 + $0x98] sm:$0xff]
  %v2583 = vld [vmem:[#allocation6 + $0xa0] sm:$0xff]
  %v2584 = vld [vmem:[#allocation6 + $0xa8] sm:$0xff]
  %v2585 = vld [vmem:[#allocation6 + $0xb0] sm:$0xff]
  %v2586 = vld [vmem:[#allocation6 + $0xb8] sm:$0xff]
  %v2587 = vld [vmem:[#allocation6 + $0xc0] sm:$0xff]
  %v2588 = vld [vmem:[#allocation6 + $0xc8] sm:$0xff]
  %v2589 = vld [vmem:[#allocation6 + $0xd0] sm:$0xff]
  %v2590 = vld [vmem:[#allocation6 + $0xd8] sm:$0xff]
  %v2591 = vld [vmem:[#allocation6 + $0xe0] sm:$0xff]
  %v2592 = vld [vmem:[#allocation6 + $0xe8] sm:$0xff]
  %v2593 = vld [vmem:[#allocation6 + $0xf0] sm:$0xff]
  %v2594 = vld [vmem:[#allocation6 + $0xf8] sm:$0xff]
  %v2595 = vld [vmem:[#allocation6 + $0x100] sm:$0xff]
  %v2596 = vld [vmem:[#allocation6 + $0x108] sm:$0xff]
  %v2597 = vld [vmem:[#allocation6 + $0x110] sm:$0xff]
  %v2598 = vld [vmem:[#allocation6 + $0x118] sm:$0xff]
  %v2599 = vld [vmem:[#allocation6 + $0x120] sm:$0xff]
  %v2600 = vld [vmem:[#allocation6 + $0x128] sm:$0xff]
  %v2601 = vld [vmem:[#allocation6 + $0x130] sm:$0xff]
  %v2602 = vld [vmem:[#allocation6 + $0x138] sm:$0xff]
  %v2603 = vld [vmem:[#allocation6 + $0x140] sm:$0xff]
  %v2604 = vld [vmem:[#allocation6 + $0x148] sm:$0xff]
  %v2605 = vld [vmem:[#allocation6 + $0x150] sm:$0xff]
  %v2606 = vld [vmem:[#allocation6 + $0x158] sm:$0xff]
  %v2607 = vld [vmem:[#allocation6 + $0x160] sm:$0xff]
  %v2608 = vld [vmem:[#allocation6 + $0x168] sm:$0xff]
  %v2609 = vld [vmem:[#allocation6 + $0x170] sm:$0xff]
  %v2610 = vld [vmem:[#allocation6 + $0x178] sm:$0xff]
  %v2611 = vld [vmem:[#allocation6 + $0x180] sm:$0xff]
  %v2612 = vld [vmem:[#allocation6 + $0x188] sm:$0xff]
  %v2613 = vld [vmem:[#allocation6 + $0x190] sm:$0xff]
  %v2614 = vld [vmem:[#allocation6 + $0x198] sm:$0xff]
  %v2615 = vld [vmem:[#allocation6 + $0x1a0] sm:$0xff]
  %v2616 = vld [vmem:[#allocation6 + $0x1a8] sm:$0xff]
  %v2619 = vunpack.c.l.b16 %v2214
  %v2620 = vunpack.c.h.b16 %v2214
  %v2621 = vunpack.c.l.b16 %v2215
  %v2622 = vunpack.c.h.b16 %v2215
  %v2623 = vpack.c.b16 %v2621, %v2619
  %v2624 = vpack.c.b16 %v2622, %v2620
  %v2627 = vsel %vm658, %v2624, 0
  %2629 = vmatprep.subr.bf16.mxu0 %v2564
  %2630 = vmatpush1.bf16.msra.mxu0 %v2563
  %2631 = vmatprep.subr.bf16.mxu0 %v2570
  %2632 = vmatpush1.bf16.msra.mxu0 %v2569
  %2633 = vmatprep.subr.bf16.mxu0 %v2576
  %2634 = vmatpush1.bf16.msra.mxu0 %v2575
  %2635 = vmatprep.subr.bf16.mxu0 %v2582
  %2636 = vmatpush1.bf16.msra.mxu0 %v2581
  %2637 = vmatprep.subr.bf16.mxu0 %v2588
  %2638 = vmatpush1.bf16.msra.mxu0 %v2587
  %2639 = vmatprep.subr.bf16.mxu0 %v2594
  %2640 = vmatpush1.bf16.msra.mxu0 %v2593
  %2641 = vmatprep.subr.bf16.mxu0 %v2600
  %2642 = vmatpush1.bf16.msra.mxu0 %v2599
  %2643 = vmatprep.subr.bf16.mxu0 %v2606
  %2644 = vmatpush1.bf16.msra.mxu0 %v2605
  %2645 = vmatprep.subr.bf16.mxu0 %v2612
  %2646 = vmatpush1.bf16.msra.mxu0 %v2611
  %2647 = vmatprep.subr.bf16.mxu0 0
  %2648 = vmatpush1.bf16.msra.mxu0 0
  %2649 = vmatprep.subr.bf16.mxu0 0
  %2650 = vmatpush1.bf16.msra.mxu0 0
  %2651 = vmatprep.subr.bf16.mxu0 0
  %2652 = vmatpush1.bf16.msra.mxu0 0
  %2653 = vmatprep.subr.bf16.mxu0 0
  %2654 = vmatpush1.bf16.msra.mxu0 0
  %2655 = vmatprep.subr.bf16.mxu0 0
  %2656 = vmatpush1.bf16.msra.mxu0 0
  %2657 = vmatprep.subr.bf16.mxu0 0
  %2658 = vmatpush1.bf16.msra.mxu0 0
  %2659 = vmatprep.subr.bf16.mxu0 0
  %2660 = vmatpush1.bf16.msra.mxu0 0
  %2661 = vmatprep.mubr.bf16.mxu0 %v2627
  %2662 = vmatmul.mubr.bf16.gmra.mrb[0].mxu0 %v2623
  %v2663 = vpop.f32.mrb[0].mxu0
  %v2664 = vadd.f32 0.0, %v2663
  %v2665 = vpop.f32.mrb[0].mxu0
  %v2666 = vadd.f32 0.0, %v2665
  %v2667 = vpop.f32.mrb[0].mxu0
  %v2668 = vadd.f32 0.0, %v2667
  %v2669 = vpop.f32.mrb[0].mxu0
  %v2670 = vadd.f32 0.0, %v2669
  %2671 = vdwg.mxu0
  %2672 = vmatprep.subr.bf16.mxu0 %v2566
  %2673 = vmatpush1.bf16.msra.mxu0 %v2565
  %2674 = vmatprep.subr.bf16.mxu0 %v2572
  %2675 = vmatpush1.bf16.msra.mxu0 %v2571
  %2676 = vmatprep.subr.bf16.mxu0 %v2578
  %2677 = vmatpush1.bf16.msra.mxu0 %v2577
  %2678 = vmatprep.subr.bf16.mxu0 %v2584
  %2679 = vmatpush1.bf16.msra.mxu0 %v2583
  %2680 = vmatprep.subr.bf16.mxu0 %v2590
  %2681 = vmatpush1.bf16.msra.mxu0 %v2589
  %2682 = vmatprep.subr.bf16.mxu0 %v2596
  %2683 = vmatpush1.bf16.msra.mxu0 %v2595
  %2684 = vmatprep.subr.bf16.mxu0 %v2602
  %2685 = vmatpush1.bf16.msra.mxu0 %v2601
  %2686 = vmatprep.subr.bf16.mxu0 %v2608
  %2687 = vmatpush1.bf16.msra.mxu0 %v2607
  %2688 = vmatprep.subr.bf16.mxu0 %v2614
  %2689 = vmatpush1.bf16.msra.mxu0 %v2613
  %2690 = vmatprep.subr.bf16.mxu0 0
  %2691 = vmatpush1.bf16.msra.mxu0 0
  %2692 = vmatprep.subr.bf16.mxu0 0
  %2693 = vmatpush1.bf16.msra.mxu0 0
  %2694 = vmatprep.subr.bf16.mxu0 0
  %2695 = vmatpush1.bf16.msra.mxu0 0
  %2696 = vmatprep.subr.bf16.mxu0 0
  %2697 = vmatpush1.bf16.msra.mxu0 0
  %2698 = vmatprep.subr.bf16.mxu0 0
  %2699 = vmatpush1.bf16.msra.mxu0 0
  %2700 = vmatprep.subr.bf16.mxu0 0
  %2701 = vmatpush1.bf16.msra.mxu0 0
  %2702 = vmatprep.subr.bf16.mxu0 0
  %2703 = vmatpush1.bf16.msra.mxu0 0
  %2704 = vmatprep.mubr.bf16.mxu0 %v2627
  %2705 = vmatmul.mubr.bf16.gmra.mrb[0].mxu0 %v2623
  %v2706 = vpop.f32.mrb[0].mxu0
  %v2707 = vadd.f32 0.0, %v2706
  %v2708 = vpop.f32.mrb[0].mxu0
  %v2709 = vadd.f32 0.0, %v2708
  %v2710 = vpop.f32.mrb[0].mxu0
  %v2711 = vadd.f32 0.0, %v2710
  %v2712 = vpop.f32.mrb[0].mxu0
  %v2713 = vadd.f32 0.0, %v2712
  %2714 = vdwg.mxu0
  %2715 = vmatprep.subr.bf16.mxu0 %v2568
  %2716 = vmatpush1.bf16.msra.mxu0 %v2567
  %2717 = vmatprep.subr.bf16.mxu0 %v2574
  %2718 = vmatpush1.bf16.msra.mxu0 %v2573
  %2719 = vmatprep.subr.bf16.mxu0 %v2580
  %2720 = vmatpush1.bf16.msra.mxu0 %v2579
  %2721 = vmatprep.subr.bf16.mxu0 %v2586
  %2722 = vmatpush1.bf16.msra.mxu0 %v2585
  %2723 = vmatprep.subr.bf16.mxu0 %v2592
  %2724 = vmatpush1.bf16.msra.mxu0 %v2591
  %2725 = vmatprep.subr.bf16.mxu0 %v2598
  %2726 = vmatpush1.bf16.msra.mxu0 %v2597
  %2727 = vmatprep.subr.bf16.mxu0 %v2604
  %2728 = vmatpush1.bf16.msra.mxu0 %v2603
  %2729 = vmatprep.subr.bf16.mxu0 %v2610
  %2730 = vmatpush1.bf16.msra.mxu0 %v2609
  %2731 = vmatprep.subr.bf16.mxu0 %v2616
  %2732 = vmatpush1.bf16.msra.mxu0 %v2615
  %2733 = vmatprep.subr.bf16.mxu0 0
  %2734 = vmatpush1.bf16.msra.mxu0 0
  %2735 = vmatprep.subr.bf16.mxu0 0
  %2736 = vmatpush1.bf16.msra.mxu0 0
  %2737 = vmatprep.subr.bf16.mxu0 0
  %2738 = vmatpush1.bf16.msra.mxu0 0
  %2739 = vmatprep.subr.bf16.mxu0 0
  %2740 = vmatpush1.bf16.msra.mxu0 0
  %2741 = vmatprep.subr.bf16.mxu0 0
  %2742 = vmatpush1.bf16.msra.mxu0 0
  %2743 = vmatprep.subr.bf16.mxu0 0
  %2744 = vmatpush1.bf16.msra.mxu0 0
  %2745 = vmatprep.subr.bf16.mxu0 0
  %2746 = vmatpush1.bf16.msra.mxu0 0
  %2747 = vmatprep.mubr.bf16.mxu0 %v2627
  %2748 = vmatmul.mubr.bf16.gmra.mrb[0].mxu0 %v2623
  %v2749 = vpop.f32.mrb[0].mxu0
  %v2750 = vadd.f32 0.0, %v2749
  %v2751 = vpop.f32.mrb[0].mxu0
  %v2752 = vadd.f32 0.0, %v2751
  %v2753 = vpop.f32.mrb[0].mxu0
  %v2754 = vadd.f32 0.0, %v2753
  %v2755 = vpop.f32.mrb[0].mxu0
  %v2756 = vadd.f32 0.0, %v2755
  %2757 = vdwg.mxu0
  %v2758 = vpack.c.bf16 %v2668, %v2664
  %v2759 = vpack.c.bf16 %v2670, %v2666
  %v2760 = vpack.c.bf16 %v2711, %v2707
  %v2761 = vpack.c.bf16 %v2713, %v2709
  %v2762 = vpack.c.bf16 %v2754, %v2750
  %v2763 = vpack.c.bf16 %v2756, %v2752
  %2765 = vset.pattern.permute.xlu0 0
  %2766 = vperm.xlu0 %2765, %v2216
  %v2767 = vpop.permute.xlu0 %2766
  %2770 = vset.pattern.permute.xlu0 0
  %2771 = vperm.xlu0 %2770, %v2217
  %v2772 = vpop.permute.xlu0 %2771
  %v2855 = vunpack.c.l.b16 %v2133
  %v2856 = vunpack.c.h.b16 %v2133
  %v2857 = vunpack.c.l.b16 %v2134
  %v2858 = vunpack.c.h.b16 %v2134
  %v2859 = vunpack.c.l.b16 %v2135
  %v2860 = vunpack.c.h.b16 %v2135
  %v2861 = vunpack.c.l.b16 %v2136
  %v2862 = vunpack.c.h.b16 %v2136
  %v2863 = vunpack.c.l.b16 %v2137
  %v2864 = vunpack.c.h.b16 %v2137
  %v2865 = vunpack.c.l.b16 %v2138
  %v2866 = vunpack.c.h.b16 %v2138
  %v2867 = vunpack.c.l.b16 %v2139
  %v2868 = vunpack.c.h.b16 %v2139
  %v2869 = vunpack.c.l.b16 %v2140
  %v2870 = vunpack.c.h.b16 %v2140
  %v2871 = vunpack.c.l.b16 %v2141
  %v2872 = vunpack.c.h.b16 %v2141
  %v2873 = vunpack.c.l.b16 %v2142
  %v2874 = vunpack.c.h.b16 %v2142
  %v2875 = vunpack.c.l.b16 %v2143
  %v2876 = vunpack.c.h.b16 %v2143
  %v2877 = vunpack.c.l.b16 %v2144
  %v2878 = vunpack.c.h.b16 %v2144
  %v2879 = vunpack.c.l.b16 %v2145
  %v2880 = vunpack.c.h.b16 %v2145
  %v2881 = vunpack.c.l.b16 %v2146
  %v2882 = vunpack.c.h.b16 %v2146
  %v2883 = vunpack.c.l.b16 %v2147
  %v2884 = vunpack.c.h.b16 %v2147
  %v2885 = vunpack.c.l.b16 %v2148
  %v2886 = vunpack.c.h.b16 %v2148
  %v2887 = vunpack.c.l.b16 %v2149
  %v2888 = vunpack.c.h.b16 %v2149
  %v2889 = vunpack.c.l.b16 %v2150
  %v2890 = vunpack.c.h.b16 %v2150
  %v2891 = vunpack.c.l.b16 %v2151
  %v2892 = vunpack.c.h.b16 %v2151
  %v2893 = vunpack.c.l.b16 %v2152
  %v2894 = vunpack.c.h.b16 %v2152
  %v2895 = vunpack.c.l.b16 %v2153
  %v2896 = vunpack.c.h.b16 %v2153
  %v2897 = vunpack.c.l.b16 %v2154
  %v2898 = vunpack.c.h.b16 %v2154
  %v2899 = vunpack.c.l.b16 %v2155
  %v2900 = vunpack.c.h.b16 %v2155
  %v2901 = vunpack.c.l.b16 %v2156
  %v2902 = vunpack.c.h.b16 %v2156
  %v2903 = vunpack.c.l.b16 %v2157
  %v2904 = vunpack.c.h.b16 %v2157
  %v2905 = vunpack.c.l.b16 %v2158
  %v2906 = vunpack.c.h.b16 %v2158
  %v2907 = vunpack.c.l.b16 %v2159
  %v2908 = vunpack.c.h.b16 %v2159
  %v2909 = vunpack.c.l.b16 %v2160
  %v2910 = vunpack.c.h.b16 %v2160
  %v2911 = vunpack.c.l.b16 %v2161
  %v2912 = vunpack.c.h.b16 %v2161
  %v2913 = vunpack.c.l.b16 %v2162
  %v2914 = vunpack.c.h.b16 %v2162
  %v2915 = vunpack.c.l.b16 %v2163
  %v2916 = vunpack.c.h.b16 %v2163
  %v2917 = vunpack.c.l.b16 %v2164
  %v2918 = vunpack.c.h.b16 %v2164
  %v2919 = vunpack.c.l.b16 %v2165
  %v2920 = vunpack.c.h.b16 %v2165
  %v2921 = vunpack.c.l.b16 %v2166
  %v2922 = vunpack.c.h.b16 %v2166
  %v2923 = vunpack.c.l.b16 %v2167
  %v2924 = vunpack.c.h.b16 %v2167
  %v2925 = vunpack.c.l.b16 %v2168
  %v2926 = vunpack.c.h.b16 %v2168
  %v2927 = vunpack.c.l.b16 %v2169
  %v2928 = vunpack.c.h.b16 %v2169
  %v2929 = vunpack.c.l.b16 %v2170
  %v2930 = vunpack.c.h.b16 %v2170
  %v2931 = vunpack.c.l.b16 %v2171
  %v2932 = vunpack.c.h.b16 %v2171
  %v2933 = vunpack.c.l.b16 %v2172
  %v2934 = vunpack.c.h.b16 %v2172
  %v2935 = vunpack.c.l.b16 %v2173
  %v2936 = vunpack.c.h.b16 %v2173
  %v2937 = vunpack.c.l.b16 %v2174
  %v2938 = vunpack.c.h.b16 %v2174
  %v2939 = vunpack.c.l.b16 %v2175
  %v2940 = vunpack.c.h.b16 %v2175
  %v2941 = vunpack.c.l.b16 %v2176
  %v2942 = vunpack.c.h.b16 %v2176
  %v2943 = vunpack.c.l.b16 %v2177
  %v2944 = vunpack.c.h.b16 %v2177
  %v2945 = vunpack.c.l.b16 %v2178
  %v2946 = vunpack.c.h.b16 %v2178
  %v2947 = vunpack.c.l.b16 %v2179
  %v2948 = vunpack.c.h.b16 %v2179
  %v2949 = vunpack.c.l.b16 %v2180
  %v2950 = vunpack.c.h.b16 %v2180
  %v2951 = vunpack.c.l.b16 %v2181
  %v2952 = vunpack.c.h.b16 %v2181
  %v2953 = vunpack.c.l.b16 %v2182
  %v2954 = vunpack.c.h.b16 %v2182
  %v2955 = vunpack.c.l.b16 %v2183
  %v2956 = vunpack.c.h.b16 %v2183
  %v2957 = vunpack.c.l.b16 %v2184
  %v2958 = vunpack.c.h.b16 %v2184
  %v2959 = vunpack.c.l.b16 %v2185
  %v2960 = vunpack.c.h.b16 %v2185
  %v2961 = vunpack.c.l.b16 %v2186
  %v2962 = vunpack.c.h.b16 %v2186
  %v2963 = vunpack.c.l.b16 %v2187
  %v2964 = vunpack.c.h.b16 %v2187
  %v2965 = vunpack.c.l.b16 %v2188
  %v2966 = vunpack.c.h.b16 %v2188
  %v2967 = vunpack.c.l.b16 %v2189
  %v2968 = vunpack.c.h.b16 %v2189
  %v2969 = vunpack.c.l.b16 %v2190
  %v2970 = vunpack.c.h.b16 %v2190
  %v2971 = vunpack.c.l.b16 %v2191
  %v2972 = vunpack.c.h.b16 %v2191
  %v2973 = vunpack.c.l.b16 %v2192
  %v2974 = vunpack.c.h.b16 %v2192
  %v2975 = vunpack.c.l.b16 %v2193
  %v2976 = vunpack.c.h.b16 %v2193
  %v2977 = vunpack.c.l.b16 %v2194
  %v2978 = vunpack.c.h.b16 %v2194
  %v2979 = vunpack.c.l.b16 %v2195
  %v2980 = vunpack.c.h.b16 %v2195
  %v2981 = vunpack.c.l.b16 %v2196
  %v2982 = vunpack.c.h.b16 %v2196
  %v2983 = vunpack.c.l.b16 %v2197
  %v2984 = vunpack.c.h.b16 %v2197
  %v2985 = vunpack.c.l.b16 %v2198
  %v2986 = vunpack.c.h.b16 %v2198
  %v2987 = vunpack.c.l.b16 %v2199
  %v2988 = vunpack.c.h.b16 %v2199
  %v2989 = vunpack.c.l.b16 %v2200
  %v2990 = vunpack.c.h.b16 %v2200
  %v2991 = vunpack.c.l.b16 %v2201
  %v2992 = vunpack.c.h.b16 %v2201
  %v2993 = vunpack.c.l.b16 %v2202
  %v2994 = vunpack.c.h.b16 %v2202
  %v2995 = vunpack.c.l.b16 %v2203
  %v2996 = vunpack.c.h.b16 %v2203
  %v2997 = vunpack.c.l.b16 %v2204
  %v2998 = vunpack.c.h.b16 %v2204
  %v2999 = vunpack.c.l.b16 %v2205
  %v3000 = vunpack.c.h.b16 %v2205
  %v3001 = vunpack.c.l.b16 %v2206
  %v3002 = vunpack.c.h.b16 %v2206
  %v3003 = vunpack.c.l.b16 %v2207
  %v3004 = vunpack.c.h.b16 %v2207
  %v3005 = vunpack.c.l.b16 %v2208
  %v3006 = vunpack.c.h.b16 %v2208
  %v3007 = vunpack.c.l.b16 %v2209
  %v3008 = vunpack.c.h.b16 %v2209
  %v3009 = vunpack.c.l.b16 %v2210
  %v3010 = vunpack.c.h.b16 %v2210
  %v3011 = vunpack.c.l.b16 %v2211
  %v3012 = vunpack.c.h.b16 %v2211
  %v3013 = vunpack.c.l.b16 %v2212
  %v3014 = vunpack.c.h.b16 %v2212
  %v3015 = vunpack.c.l.b16 %v2213
  %v3016 = vunpack.c.h.b16 %v2213
  %v3017 = vpack.c.b16 %v2857, %v2855
  %v3018 = vpack.c.b16 %v2858, %v2856
  %v3019 = vpack.c.b16 %v2861, %v2859
  %v3020 = vpack.c.b16 %v2862, %v2860
  %v3021 = vpack.c.b16 %v2865, %v2863
  %v3022 = vpack.c.b16 %v2866, %v2864
  %v3023 = vpack.c.b16 %v2869, %v2867
  %v3024 = vpack.c.b16 %v2870, %v2868
  %v3025 = vpack.c.b16 %v2873, %v2871
  %v3026 = vpack.c.b16 %v2874, %v2872
  %v3027 = vpack.c.b16 %v2877, %v2875
  %v3028 = vpack.c.b16 %v2878, %v2876
  %v3029 = vpack.c.b16 %v2881, %v2879
  %v3030 = vpack.c.b16 %v2882, %v2880
  %v3031 = vpack.c.b16 %v2885, %v2883
  %v3032 = vpack.c.b16 %v2886, %v2884
  %v3033 = vpack.c.b16 %v2889, %v2887
  %v3034 = vpack.c.b16 %v2890, %v2888
  %v3035 = vpack.c.b16 %v2893, %v2891
  %v3036 = vpack.c.b16 %v2894, %v2892
  %v3037 = vpack.c.b16 %v2897, %v2895
  %v3038 = vpack.c.b16 %v2898, %v2896
  %v3039 = vpack.c.b16 %v2901, %v2899
  %v3040 = vpack.c.b16 %v2902, %v2900
  %v3041 = vpack.c.b16 %v2905, %v2903
  %v3042 = vpack.c.b16 %v2906, %v2904
  %v3043 = vpack.c.b16 %v2909, %v2907
  %v3044 = vpack.c.b16 %v2910, %v2908
  %v3045 = vpack.c.b16 %v2913, %v2911
  %v3046 = vpack.c.b16 %v2914, %v2912
  %v3047 = vpack.c.b16 %v2917, %v2915
  %v3048 = vpack.c.b16 %v2918, %v2916
  %v3049 = vpack.c.b16 %v2921, %v2919
  %v3050 = vpack.c.b16 %v2922, %v2920
  %v3051 = vpack.c.b16 %v2925, %v2923
  %v3052 = vpack.c.b16 %v2926, %v2924
  %v3053 = vpack.c.b16 %v2929, %v2927
  %v3054 = vpack.c.b16 %v2930, %v2928
  %v3055 = vpack.c.b16 %v2933, %v2931
  %v3056 = vpack.c.b16 %v2934, %v2932
  %v3057 = vpack.c.b16 %v2937, %v2935
  %v3058 = vpack.c.b16 %v2938, %v2936
  %v3059 = vpack.c.b16 %v2941, %v2939
  %v3060 = vpack.c.b16 %v2942, %v2940
  %v3061 = vpack.c.b16 %v2945, %v2943
  %v3062 = vpack.c.b16 %v2946, %v2944
  %v3063 = vpack.c.b16 %v2949, %v2947
  %v3064 = vpack.c.b16 %v2950, %v2948
  %v3065 = vpack.c.b16 %v2953, %v2951
  %v3066 = vpack.c.b16 %v2954, %v2952
  %v3067 = vpack.c.b16 %v2957, %v2955
  %v3068 = vpack.c.b16 %v2958, %v2956
  %v3069 = vpack.c.b16 %v2961, %v2959
  %v3070 = vpack.c.b16 %v2962, %v2960
  %v3071 = vpack.c.b16 %v2965, %v2963
  %v3072 = vpack.c.b16 %v2966, %v2964
  %v3073 = vpack.c.b16 %v2969, %v2967
  %v3074 = vpack.c.b16 %v2970, %v2968
  %v3075 = vpack.c.b16 %v2973, %v2971
  %v3076 = vpack.c.b16 %v2974, %v2972
  %v3077 = vpack.c.b16 %v2977, %v2975
  %v3078 = vpack.c.b16 %v2978, %v2976
  %v3079 = vpack.c.b16 %v2981, %v2979
  %v3080 = vpack.c.b16 %v2982, %v2980
  %v3081 = vpack.c.b16 %v2985, %v2983
  %v3082 = vpack.c.b16 %v2986, %v2984
  %v3083 = vpack.c.b16 %v2989, %v2987
  %v3084 = vpack.c.b16 %v2990, %v2988
  %v3085 = vpack.c.b16 %v2993, %v2991
  %v3086 = vpack.c.b16 %v2994, %v2992
  %v3087 = vpack.c.b16 %v2997, %v2995
  %v3088 = vpack.c.b16 %v2998, %v2996
  %v3089 = vpack.c.b16 %v3001, %v2999
  %v3090 = vpack.c.b16 %v3002, %v3000
  %v3091 = vpack.c.b16 %v3005, %v3003
  %v3092 = vpack.c.b16 %v3006, %v3004
  %v3093 = vpack.c.b16 %v3009, %v3007
  %v3094 = vpack.c.b16 %v3010, %v3008
  %v3095 = vpack.c.b16 %v3013, %v3011
  %v3096 = vpack.c.b16 %v3014, %v3012
  %v3097 = vpack.c.b16 %v3015, %v3015
  %v3098 = vpack.c.b16 %v3016, %v3016
  %v3180 = vsel %vm36, %v2763, 0
  %vm3182 = vcmask 1043456
  %v3184 = vsel %vm3182, %v3097, 0
  %v3187 = vsel %vm3182, %v3098, 0
  %3189 = vmatprep.subr.bf16.mxu0 %v3018
  %3190 = vmatpush1.bf16.msra.mxu0 %v3017
  %3191 = vmatprep.subr.bf16.mxu0 %v3020
  %3192 = vmatpush1.bf16.msra.mxu0 %v3019
  %3193 = vmatprep.subr.bf16.mxu0 %v3022
  %3194 = vmatpush1.bf16.msra.mxu0 %v3021
  %3195 = vmatprep.subr.bf16.mxu0 %v3024
  %3196 = vmatpush1.bf16.msra.mxu0 %v3023
  %3197 = vmatprep.subr.bf16.mxu0 %v3026
  %3198 = vmatpush1.bf16.msra.mxu0 %v3025
  %3199 = vmatprep.subr.bf16.mxu0 %v3028
  %3200 = vmatpush1.bf16.msra.mxu0 %v3027
  %3201 = vmatprep.subr.bf16.mxu0 %v3030
  %3202 = vmatpush1.bf16.msra.mxu0 %v3029
  %3203 = vmatprep.subr.bf16.mxu0 %v3032
  %3204 = vmatpush1.bf16.msra.mxu0 %v3031
  %3205 = vmatprep.subr.bf16.mxu0 %v3034
  %3206 = vmatpush1.bf16.msra.mxu0 %v3033
  %3207 = vmatprep.subr.bf16.mxu0 %v3036
  %3208 = vmatpush1.bf16.msra.mxu0 %v3035
  %3209 = vmatprep.subr.bf16.mxu0 %v3038
  %3210 = vmatpush1.bf16.msra.mxu0 %v3037
  %3211 = vmatprep.subr.bf16.mxu0 %v3040
  %3212 = vmatpush1.bf16.msra.mxu0 %v3039
  %3213 = vmatprep.subr.bf16.mxu0 %v3042
  %3214 = vmatpush1.bf16.msra.mxu0 %v3041
  %3215 = vmatprep.subr.bf16.mxu0 %v3044
  %3216 = vmatpush1.bf16.msra.mxu0 %v3043
  %3217 = vmatprep.subr.bf16.mxu0 %v3046
  %3218 = vmatpush1.bf16.msra.mxu0 %v3045
  %3219 = vmatprep.subr.bf16.mxu0 %v3048
  %3220 = vmatpush1.bf16.msra.mxu0 %v3047
  %3221 = vmatprep.mubr.bf16.mxu0 %v2759
  %3222 = vmatmul.mubr.bf16.gmra.mrb[0].mxu0 %v2758
  %v3223 = vpop.f32.mrb[0].mxu0
  %v3224 = vadd.f32 %v2767, %v3223
  %v3225 = vpop.f32.mrb[0].mxu0
  %v3226 = vadd.f32 %v2767, %v3225
  %v3227 = vpop.f32.mrb[0].mxu0
  %v3228 = vadd.f32 %v2772, %v3227
  %v3229 = vpop.f32.mrb[0].mxu0
  %v3230 = vadd.f32 %v2772, %v3229
  %3231 = vdwg.mxu0
  %3232 = vmatprep.subr.bf16.mxu0 %v3050
  %3233 = vmatpush1.bf16.msra.mxu0 %v3049
  %3234 = vmatprep.subr.bf16.mxu0 %v3052
  %3235 = vmatpush1.bf16.msra.mxu0 %v3051
  %3236 = vmatprep.subr.bf16.mxu0 %v3054
  %3237 = vmatpush1.bf16.msra.mxu0 %v3053
  %3238 = vmatprep.subr.bf16.mxu0 %v3056
  %3239 = vmatpush1.bf16.msra.mxu0 %v3055
  %3240 = vmatprep.subr.bf16.mxu0 %v3058
  %3241 = vmatpush1.bf16.msra.mxu0 %v3057
  %3242 = vmatprep.subr.bf16.mxu0 %v3060
  %3243 = vmatpush1.bf16.msra.mxu0 %v3059
  %3244 = vmatprep.subr.bf16.mxu0 %v3062
  %3245 = vmatpush1.bf16.msra.mxu0 %v3061
  %3246 = vmatprep.subr.bf16.mxu0 %v3064
  %3247 = vmatpush1.bf16.msra.mxu0 %v3063
  %3248 = vmatprep.subr.bf16.mxu0 %v3066
  %3249 = vmatpush1.bf16.msra.mxu0 %v3065
  %3250 = vmatprep.subr.bf16.mxu0 %v3068
  %3251 = vmatpush1.bf16.msra.mxu0 %v3067
  %3252 = vmatprep.subr.bf16.mxu0 %v3070
  %3253 = vmatpush1.bf16.msra.mxu0 %v3069
  %3254 = vmatprep.subr.bf16.mxu0 %v3072
  %3255 = vmatpush1.bf16.msra.mxu0 %v3071
  %3256 = vmatprep.subr.bf16.mxu0 %v3074
  %3257 = vmatpush1.bf16.msra.mxu0 %v3073
  %3258 = vmatprep.subr.bf16.mxu0 %v3076
  %3259 = vmatpush1.bf16.msra.mxu0 %v3075
  %3260 = vmatprep.subr.bf16.mxu0 %v3078
  %3261 = vmatpush1.bf16.msra.mxu0 %v3077
  %3262 = vmatprep.subr.bf16.mxu0 %v3080
  %3263 = vmatpush1.bf16.msra.mxu0 %v3079
  %3264 = vmatprep.mubr.bf16.mxu0 %v2761
  %3265 = vmatmul.mubr.bf16.gmra.mrb[0].mxu0 %v2760
  %v3266 = vpop.f32.mrb[0].mxu0
  %v3267 = vadd.f32 %v3224, %v3266
  %v3268 = vpop.f32.mrb[0].mxu0
  %v3269 = vadd.f32 %v3226, %v3268
  %v3270 = vpop.f32.mrb[0].mxu0
  %v3271 = vadd.f32 %v3228, %v3270
  %v3272 = vpop.f32.mrb[0].mxu0
  %v3273 = vadd.f32 %v3230, %v3272
  %3274 = vdwg.mxu0
  %3275 = vmatprep.subr.bf16.mxu0 %v3082
  %3276 = vmatpush1.bf16.msra.mxu0 %v3081
  %3277 = vmatprep.subr.bf16.mxu0 %v3084
  %3278 = vmatpush1.bf16.msra.mxu0 %v3083
  %3279 = vmatprep.subr.bf16.mxu0 %v3086
  %3280 = vmatpush1.bf16.msra.mxu0 %v3085
  %3281 = vmatprep.subr.bf16.mxu0 %v3088
  %3282 = vmatpush1.bf16.msra.mxu0 %v3087
  %3283 = vmatprep.subr.bf16.mxu0 %v3090
  %3284 = vmatpush1.bf16.msra.mxu0 %v3089
  %3285 = vmatprep.subr.bf16.mxu0 %v3092
  %3286 = vmatpush1.bf16.msra.mxu0 %v3091
  %3287 = vmatprep.subr.bf16.mxu0 %v3094
  %3288 = vmatpush1.bf16.msra.mxu0 %v3093
  %3289 = vmatprep.subr.bf16.mxu0 %v3096
  %3290 = vmatpush1.bf16.msra.mxu0 %v3095
  %3291 = vmatprep.subr.bf16.mxu0 %v3187
  %3292 = vmatpush1.bf16.msra.mxu0 %v3184
  %3293 = vmatprep.subr.bf16.mxu0 0
  %3294 = vmatpush1.bf16.msra.mxu0 0
  %3295 = vmatprep.subr.bf16.mxu0 0
  %3296 = vmatpush1.bf16.msra.mxu0 0
  %3297 = vmatprep.subr.bf16.mxu0 0
  %3298 = vmatpush1.bf16.msra.mxu0 0
  %3299 = vmatprep.subr.bf16.mxu0 0
  %3300 = vmatpush1.bf16.msra.mxu0 0
  %3301 = vmatprep.subr.bf16.mxu0 0
  %3302 = vmatpush1.bf16.msra.mxu0 0
  %3303 = vmatprep.subr.bf16.mxu0 0
  %3304 = vmatpush1.bf16.msra.mxu0 0
  %3305 = vmatprep.subr.bf16.mxu0 0
  %3306 = vmatpush1.bf16.msra.mxu0 0
  %3307 = vmatprep.mubr.bf16.mxu0 %v3180
  %3308 = vmatmul.mubr.bf16.gmra.mrb[0].mxu0 %v2762
  %v3309 = vpop.f32.mrb[0].mxu0
  %v3310 = vadd.f32 %v3267, %v3309
  %v3311 = vpop.f32.mrb[0].mxu0
  %v3312 = vadd.f32 %v3269, %v3311
  %v3313 = vpop.f32.mrb[0].mxu0
  %v3314 = vadd.f32 %v3271, %v3313
  %v3315 = vpop.f32.mrb[0].mxu0
  %v3316 = vadd.f32 %v3273, %v3315
  %3317 = vdwg.mxu0
  %v3318 = vld [vmem:[%s2] sm:$0x3]
  %v3320 = vlaneseq
  %v3321 = vshrl.u32 %v3320, 7
  %v3322 = vsub.s32 0, %v3321
  %v3323 = vrot.slane %v3318, %v3322
  %v3324 = vlaneseq
  %v3325 = vshrl.u32 %v3324, 7
  %v3326 = vsub.s32 1, %v3325
  %v3327 = vrot.slane %v3318, %v3326
  %v3330 = vmul.f32 %v3310, %v3323
  %v3331 = vmul.f32 %v3312, %v3327
  %v3332 = vmul.f32 %v3314, %v3323
  %v3333 = vmul.f32 %v3316, %v3327
  %v3334 = vmax.f32 %v3330, 0.0
  %v3335 = vmax.f32 %v3331, 0.0
  %v3336 = vmax.f32 %v3332, 0.0
  %v3337 = vmax.f32 %v3333, 0.0
  %v3338 = vpack.c.bf16 %v3336, %v3334
  %v3339 = vpack.c.bf16 %v3337, %v3335
  %3340 = vst [vmem:[#allocation5 + $0x8] sm:$0xff] %v3338
  %3341 = vst.msk [vmem:[#allocation5 + $0x10] sm:$0xff] %vm44, %v3339
  %v3342 = vld [vmem:[%s4 + $0x40] sm:$0xf]
  %v3343 = vld [vmem:[%s4 + $0x48] sm:$0xf]
  %v3344 = vld [vmem:[%s5 + $0x40] sm:$0xff]
  %v3345 = vld [vmem:[%s5 + $0x48] sm:$0xff]
  %v3346 = vld [vmem:[#allocation2 + $0x8] sm:$0xff]
  %v3347 = vld [vmem:[#allocation2 + $0x10] sm:$0xff]
  %v3348 = vld [vmem:[#allocation2 + $0x18] sm:$0xff]
  %v3349 = vld [vmem:[#allocation2 + $0x20] sm:$0xff]
  %v3350 = vld [vmem:[#allocation2 + $0x28] sm:$0xff]
  %v3351 = vld [vmem:[#allocation2 + $0x30] sm:$0xff]
  %v3353 = vsel %vm36, %v3351, 0
  %3355 = vmatprep.subr.bf16.mxu0 %v3018
  %3356 = vmatpush1.bf16.msra.mxu0 %v3017
  %3357 = vmatprep.subr.bf16.mxu0 %v3020
  %3358 = vmatpush1.bf16.msra.mxu0 %v3019
  %3359 = vmatprep.subr.bf16.mxu0 %v3022
  %3360 = vmatpush1.bf16.msra.mxu0 %v3021
  %3361 = vmatprep.subr.bf16.mxu0 %v3024
  %3362 = vmatpush1.bf16.msra.mxu0 %v3023
  %3363 = vmatprep.subr.bf16.mxu0 %v3026
  %3364 = vmatpush1.bf16.msra.mxu0 %v3025
  %3365 = vmatprep.subr.bf16.mxu0 %v3028
  %3366 = vmatpush1.bf16.msra.mxu0 %v3027
  %3367 = vmatprep.subr.bf16.mxu0 %v3030
  %3368 = vmatpush1.bf16.msra.mxu0 %v3029
  %3369 = vmatprep.subr.bf16.mxu0 %v3032
  %3370 = vmatpush1.bf16.msra.mxu0 %v3031
  %3371 = vmatprep.subr.bf16.mxu0 %v3034
  %3372 = vmatpush1.bf16.msra.mxu0 %v3033
  %3373 = vmatprep.subr.bf16.mxu0 %v3036
  %3374 = vmatpush1.bf16.msra.mxu0 %v3035
  %3375 = vmatprep.subr.bf16.mxu0 %v3038
  %3376 = vmatpush1.bf16.msra.mxu0 %v3037
  %3377 = vmatprep.subr.bf16.mxu0 %v3040
  %3378 = vmatpush1.bf16.msra.mxu0 %v3039
  %3379 = vmatprep.subr.bf16.mxu0 %v3042
  %3380 = vmatpush1.bf16.msra.mxu0 %v3041
  %3381 = vmatprep.subr.bf16.mxu0 %v3044
  %3382 = vmatpush1.bf16.msra.mxu0 %v3043
  %3383 = vmatprep.subr.bf16.mxu0 %v3046
  %3384 = vmatpush1.bf16.msra.mxu0 %v3045
  %3385 = vmatprep.subr.bf16.mxu0 %v3048
  %3386 = vmatpush1.bf16.msra.mxu0 %v3047
  %3387 = vmatprep.mubr.bf16.mxu0 %v3347
  %3388 = vmatmul.mubr.bf16.gmra.mrb[0].mxu0 %v3346
  %v3389 = vpop.f32.mrb[0].mxu0
  %v3390 = vadd.f32 0.0, %v3389
  %v3391 = vpop.f32.mrb[0].mxu0
  %v3392 = vadd.f32 0.0, %v3391
  %v3393 = vpop.f32.mrb[0].mxu0
  %v3394 = vadd.f32 0.0, %v3393
  %v3395 = vpop.f32.mrb[0].mxu0
  %v3396 = vadd.f32 0.0, %v3395
  %3397 = vdwg.mxu0
  %3398 = vmatprep.subr.bf16.mxu0 %v3050
  %3399 = vmatpush1.bf16.msra.mxu0 %v3049
  %3400 = vmatprep.subr.bf16.mxu0 %v3052
  %3401 = vmatpush1.bf16.msra.mxu0 %v3051
  %3402 = vmatprep.subr.bf16.mxu0 %v3054
  %3403 = vmatpush1.bf16.msra.mxu0 %v3053
  %3404 = vmatprep.subr.bf16.mxu0 %v3056
  %3405 = vmatpush1.bf16.msra.mxu0 %v3055
  %3406 = vmatprep.subr.bf16.mxu0 %v3058
  %3407 = vmatpush1.bf16.msra.mxu0 %v3057
  %3408 = vmatprep.subr.bf16.mxu0 %v3060
  %3409 = vmatpush1.bf16.msra.mxu0 %v3059
  %3410 = vmatprep.subr.bf16.mxu0 %v3062
  %3411 = vmatpush1.bf16.msra.mxu0 %v3061
  %3412 = vmatprep.subr.bf16.mxu0 %v3064
  %3413 = vmatpush1.bf16.msra.mxu0 %v3063
  %3414 = vmatprep.subr.bf16.mxu0 %v3066
  %3415 = vmatpush1.bf16.msra.mxu0 %v3065
  %3416 = vmatprep.subr.bf16.mxu0 %v3068
  %3417 = vmatpush1.bf16.msra.mxu0 %v3067
  %3418 = vmatprep.subr.bf16.mxu0 %v3070
  %3419 = vmatpush1.bf16.msra.mxu0 %v3069
  %3420 = vmatprep.subr.bf16.mxu0 %v3072
  %3421 = vmatpush1.bf16.msra.mxu0 %v3071
  %3422 = vmatprep.subr.bf16.mxu0 %v3074
  %3423 = vmatpush1.bf16.msra.mxu0 %v3073
  %3424 = vmatprep.subr.bf16.mxu0 %v3076
  %3425 = vmatpush1.bf16.msra.mxu0 %v3075
  %3426 = vmatprep.subr.bf16.mxu0 %v3078
  %3427 = vmatpush1.bf16.msra.mxu0 %v3077
  %3428 = vmatprep.subr.bf16.mxu0 %v3080
  %3429 = vmatpush1.bf16.msra.mxu0 %v3079
  %3430 = vmatprep.mubr.bf16.mxu0 %v3349
  %3431 = vmatmul.mubr.bf16.gmra.mrb[0].mxu0 %v3348
  %v3432 = vpop.f32.mrb[0].mxu0
  %v3433 = vadd.f32 %v3390, %v3432
  %v3434 = vpop.f32.mrb[0].mxu0
  %v3435 = vadd.f32 %v3392, %v3434
  %v3436 = vpop.f32.mrb[0].mxu0
  %v3437 = vadd.f32 %v3394, %v3436
  %v3438 = vpop.f32.mrb[0].mxu0
  %v3439 = vadd.f32 %v3396, %v3438
  %3440 = vdwg.mxu0
  %3441 = vmatprep.subr.bf16.mxu0 %v3082
  %3442 = vmatpush1.bf16.msra.mxu0 %v3081
  %3443 = vmatprep.subr.bf16.mxu0 %v3084
  %3444 = vmatpush1.bf16.msra.mxu0 %v3083
  %3445 = vmatprep.subr.bf16.mxu0 %v3086
  %3446 = vmatpush1.bf16.msra.mxu0 %v3085
  %3447 = vmatprep.subr.bf16.mxu0 %v3088
  %3448 = vmatpush1.bf16.msra.mxu0 %v3087
  %3449 = vmatprep.subr.bf16.mxu0 %v3090
  %3450 = vmatpush1.bf16.msra.mxu0 %v3089
  %3451 = vmatprep.subr.bf16.mxu0 %v3092
  %3452 = vmatpush1.bf16.msra.mxu0 %v3091
  %3453 = vmatprep.subr.bf16.mxu0 %v3094
  %3454 = vmatpush1.bf16.msra.mxu0 %v3093
  %3455 = vmatprep.subr.bf16.mxu0 %v3096
  %3456 = vmatpush1.bf16.msra.mxu0 %v3095
  %3457 = vmatprep.subr.bf16.mxu0 %v3187
  %3458 = vmatpush1.bf16.msra.mxu0 %v3184
  %3459 = vmatprep.subr.bf16.mxu0 0
  %3460 = vmatpush1.bf16.msra.mxu0 0
  %3461 = vmatprep.subr.bf16.mxu0 0
  %3462 = vmatpush1.bf16.msra.mxu0 0
  %3463 = vmatprep.subr.bf16.mxu0 0
  %3464 = vmatpush1.bf16.msra.mxu0 0
  %3465 = vmatprep.subr.bf16.mxu0 0
  %3466 = vmatpush1.bf16.msra.mxu0 0
  %3467 = vmatprep.subr.bf16.mxu0 0
  %3468 = vmatpush1.bf16.msra.mxu0 0
  %3469 = vmatprep.subr.bf16.mxu0 0
  %3470 = vmatpush1.bf16.msra.mxu0 0
  %3471 = vmatprep.subr.bf16.mxu0 0
  %3472 = vmatpush1.bf16.msra.mxu0 0
  %3473 = vmatprep.mubr.bf16.mxu0 %v3353
  %3474 = vmatmul.mubr.bf16.gmra.mrb[0].mxu0 %v3350
  %v3475 = vpop.f32.mrb[0].mxu0
  %v3476 = vadd.f32 %v3433, %v3475
  %v3477 = vpop.f32.mrb[0].mxu0
  %v3478 = vadd.f32 %v3435, %v3477
  %v3479 = vpop.f32.mrb[0].mxu0
  %v3480 = vadd.f32 %v3437, %v3479
  %v3481 = vpop.f32.mrb[0].mxu0
  %v3482 = vadd.f32 %v3439, %v3481
  %3483 = vdwg.mxu0
  %v3484 = vpack.c.bf16 %v3480, %v3476
  %v3485 = vpack.c.bf16 %v3482, %v3478
  %3487 = vset.pattern.permute.xlu0 0
  %3488 = vperm.xlu0 %3487, %v3344
  %v3489 = vpop.permute.xlu0 %3488
  %3492 = vset.pattern.permute.xlu0 0
  %3493 = vperm.xlu0 %3492, %v3345
  %v3494 = vpop.permute.xlu0 %3493
  %v3498 = vunpack.c.l.b16 %v3342
  %v3499 = vunpack.c.l.b16 %v3343
  %v3500 = vpack.c.b16 %v3499, %v3498
  %v3502 = vsel %vm658, %v3500, 0
  %3504 = vmatprep.subr.bf16.mxu0 %v3485
  %3505 = vmatpush1.bf16.msra.mxu0 %v3484
  %3506 = vmatprep.subr.bf16.mxu0 0
  %3507 = vmatpush1.bf16.msra.mxu0 0
  %3508 = vmatprep.subr.bf16.mxu0 0
  %3509 = vmatpush1.bf16.msra.mxu0 0
  %3510 = vmatprep.subr.bf16.mxu0 0
  %3511 = vmatpush1.bf16.msra.mxu0 0
  %3512 = vmatprep.subr.bf16.mxu0 0
  %3513 = vmatpush1.bf16.msra.mxu0 0
  %3514 = vmatprep.subr.bf16.mxu0 0
  %3515 = vmatpush1.bf16.msra.mxu0 0
  %3516 = vmatprep.subr.bf16.mxu0 0
  %3517 = vmatpush1.bf16.msra.mxu0 0
  %3518 = vmatprep.subr.bf16.mxu0 0
  %3519 = vmatpush1.bf16.msra.mxu0 0
  %3520 = vmatprep.subr.bf16.mxu0 0
  %3521 = vmatpush1.bf16.msra.mxu0 0
  %3522 = vmatprep.subr.bf16.mxu0 0
  %3523 = vmatpush1.bf16.msra.mxu0 0
  %3524 = vmatprep.subr.bf16.mxu0 0
  %3525 = vmatpush1.bf16.msra.mxu0 0
  %3526 = vmatprep.subr.bf16.mxu0 0
  %3527 = vmatpush1.bf16.msra.mxu0 0
  %3528 = vmatprep.subr.bf16.mxu0 0
  %3529 = vmatpush1.bf16.msra.mxu0 0
  %3530 = vmatprep.subr.bf16.mxu0 0
  %3531 = vmatpush1.bf16.msra.mxu0 0
  %3532 = vmatprep.subr.bf16.mxu0 0
  %3533 = vmatpush1.bf16.msra.mxu0 0
  %3534 = vmatprep.subr.bf16.mxu0 0
  %3535 = vmatpush1.bf16.msra.mxu0 0
  %3536 = vmatprep.mubr.bf16.mxu0 0
  %3537 = vmatmul.mubr.bf16.gmra.mrb[0].mxu0 %v3502
  %v3538 = vpop.f32.mrb[0].mxu0
  %v3539 = vadd.f32 %v3489, %v3538
  %v3540 = vpop.f32.mrb[0].mxu0
  %v3541 = vadd.f32 %v3489, %v3540
  %v3542 = vpop.f32.mrb[0].mxu0
  %v3543 = vadd.f32 %v3494, %v3542
  %v3544 = vpop.f32.mrb[0].mxu0
  %v3545 = vadd.f32 %v3494, %v3544
  %3546 = vdwg.mxu0
  %v3547 = vld [vmem:[%s2] sm:$0x3]
  %v3549 = vlaneseq
  %v3550 = vshrl.u32 %v3549, 7
  %v3551 = vsub.s32 0, %v3550
  %v3552 = vrot.slane %v3547, %v3551
  %v3553 = vlaneseq
  %v3554 = vshrl.u32 %v3553, 7
  %v3555 = vsub.s32 1, %v3554
  %v3556 = vrot.slane %v3547, %v3555
  %v3559 = vmul.f32 %v3539, %v3552
  %v3560 = vmul.f32 %v3541, %v3556
  %v3561 = vmul.f32 %v3543, %v3552
  %v3562 = vmul.f32 %v3545, %v3556
  %v3563 = vld [vmem:[%s4 + $0x50] sm:$0xff]
  %v3564 = vld [vmem:[%s4 + $0x58] sm:$0xff]
  %v3565 = vld [vmem:[%s5 + $0x50] sm:$0xff]
  %v3566 = vld [vmem:[%s5 + $0x58] sm:$0xff]
  %v3567 = vld [vmem:[#allocation5] sm:$0xff]
  %v3568 = vld [vmem:[#allocation5 + $0x8] sm:$0xff]
  %v3569 = vld [vmem:[#allocation5 + $0x10] sm:$0xff]
  %3573 = vrot.lane.b32.xlu0 %v3567, 11
  %v3574 = vpop.permute.xlu0 %3573
  %3575 = vrot.lane.b32.xlu0 %v3568, 11
  %v3576 = vpop.permute.xlu0 %3575
  %3577 = vrot.lane.b32.xlu0 %v3569, 11
  %v3578 = vpop.permute.xlu0 %3577
  %vm3579 = vcmask 89088
  %v3580 = vsel %vm3579, %v3574, %v3576
  %v3581 = vsel %vm3579, %v3576, %v3578
  %3584 = vst [vmem:[#allocation6] sm:$0xff] %v3580
  %3585 = vst.msk [vmem:[#allocation6 + $0x8] sm:$0xff] %vm44, %v3581
  %v3586 = vld [vmem:[#allocation5] sm:$0xff]
  %v3587 = vld [vmem:[#allocation5 + $0x8] sm:$0xff]
  %v3588 = vld [vmem:[#allocation5 + $0x10] sm:$0xff]
  %3592 = vrot.lane.b32.xlu0 %v3586, 10
  %v3593 = vpop.permute.xlu0 %3592
  %3594 = vrot.lane.b32.xlu0 %v3587, 10
  %v3595 = vpop.permute.xlu0 %3594
  %3596 = vrot.lane.b32.xlu0 %v3588, 10
  %v3597 = vpop.permute.xlu0 %3596
  %vm3598 = vcmask 80896
  %v3599 = vsel %vm3598, %v3593, %v3595
  %v3600 = vsel %vm3598, %v3595, %v3597
  %3603 = vst [vmem:[#allocation6 + $0x30] sm:$0xff] %v3599
  %3604 = vst.msk [vmem:[#allocation6 + $0x38] sm:$0xff] %vm44, %v3600
  %v3605 = vld [vmem:[#allocation5] sm:$0xff]
  %v3606 = vld [vmem:[#allocation5 + $0x8] sm:$0xff]
  %v3607 = vld [vmem:[#allocation5 + $0x10] sm:$0xff]
  %3611 = vrot.lane.b32.xlu0 %v3605, 9
  %v3612 = vpop.permute.xlu0 %3611
  %3613 = vrot.lane.b32.xlu0 %v3606, 9
  %v3614 = vpop.permute.xlu0 %3613
  %3615 = vrot.lane.b32.xlu0 %v3607, 9
  %v3616 = vpop.permute.xlu0 %3615
  %vm3617 = vcmask 72704
  %v3618 = vsel %vm3617, %v3612, %v3614
  %v3619 = vsel %vm3617, %v3614, %v3616
  %3622 = vst [vmem:[#allocation6 + $0x60] sm:$0xff] %v3618
  %3623 = vst.msk [vmem:[#allocation6 + $0x68] sm:$0xff] %vm44, %v3619
  %v3624 = vld [vmem:[#allocation5] sm:$0xff]
  %v3625 = vld [vmem:[#allocation5 + $0x8] sm:$0xff]
  %v3626 = vld [vmem:[#allocation5 + $0x10] sm:$0xff]
  %3630 = vrot.lane.b32.xlu0 %v3624, 1
  %v3631 = vpop.permute.xlu0 %3630
  %3632 = vrot.lane.b32.xlu0 %v3625, 1
  %v3633 = vpop.permute.xlu0 %3632
  %3634 = vrot.lane.b32.xlu0 %v3626, 1
  %v3635 = vpop.permute.xlu0 %3634
  %v3636 = vsel %vm284, %v3631, %v3633
  %v3637 = vsel %vm284, %v3633, %v3635
  %3640 = vst [vmem:[#allocation6 + $0x90] sm:$0xff] %v3636
  %3641 = vst.msk [vmem:[#allocation6 + $0x98] sm:$0xff] %vm44, %v3637
  %v3642 = vld [vmem:[#allocation5 + $0x8] sm:$0xff]
  %v3643 = vld [vmem:[#allocation5 + $0x10] sm:$0xff]
  %3644 = vst [vmem:[#allocation6 + $0xc0] sm:$0xff] %v3642
  %3645 = vst.msk [vmem:[#allocation6 + $0xc8] sm:$0xff] %vm44, %v3643
  %v3646 = vld [vmem:[#allocation5 + $0x8] sm:$0xff]
  %v3647 = vld [vmem:[#allocation5 + $0x10] sm:$0xff]
  %3650 = vrot.lane.b32.xlu0 %v3646, 127
  %v3651 = vpop.permute.xlu0 %3650
  %3652 = vrot.lane.b32.xlu0 %v3647, 127
  %v3653 = vpop.permute.xlu0 %3652
  %v3654 = vsel %vm387, %v3651, %v3653
  %3657 = vst [vmem:[#allocation6 + $0xf0] sm:$0xff] %v3654
  %3658 = vst.msk [vmem:[#allocation6 + $0xf8] sm:$0xff] %vm44, %v3653
  %v3659 = vld [vmem:[#allocation5 + $0x8] sm:$0xff]
  %v3660 = vld [vmem:[#allocation5 + $0x10] sm:$0xff]
  %3663 = vrot.lane.b32.xlu0 %v3659, 119
  %v3664 = vpop.permute.xlu0 %3663
  %3665 = vrot.lane.b32.xlu0 %v3660, 119
  %v3666 = vpop.permute.xlu0 %3665
  %vm3667 = vcmask 973824
  %v3668 = vsel %vm3667, %v3664, %v3666
  %3671 = vst [vmem:[#allocation6 + $0x120] sm:$0xff] %v3668
  %3672 = vst.msk [vmem:[#allocation6 + $0x128] sm:$0xff] %vm44, %v3666
  %v3673 = vld [vmem:[#allocation5 + $0x8] sm:$0xff]
  %v3674 = vld [vmem:[#allocation5 + $0x10] sm:$0xff]
  %3677 = vrot.lane.b32.xlu0 %v3673, 118
  %v3678 = vpop.permute.xlu0 %3677
  %3679 = vrot.lane.b32.xlu0 %v3674, 118
  %v3680 = vpop.permute.xlu0 %3679
  %vm3681 = vcmask 965632
  %v3682 = vsel %vm3681, %v3678, %v3680
  %3685 = vst [vmem:[#allocation6 + $0x150] sm:$0xff] %v3682
  %3686 = vst.msk [vmem:[#allocation6 + $0x158] sm:$0xff] %vm44, %v3680
  %v3687 = vld [vmem:[#allocation5 + $0x8] sm:$0xff]
  %v3688 = vld [vmem:[#allocation5 + $0x10] sm:$0xff]
  %3691 = vrot.lane.b32.xlu0 %v3687, 117
  %v3692 = vpop.permute.xlu0 %3691
  %3693 = vrot.lane.b32.xlu0 %v3688, 117
  %v3694 = vpop.permute.xlu0 %3693
  %vm3695 = vcmask 957440
  %v3696 = vsel %vm3695, %v3692, %v3694
  %3699 = vst [vmem:[#allocation6 + $0x180] sm:$0xff] %v3696
  %3700 = vst.msk [vmem:[#allocation6 + $0x188] sm:$0xff] %vm44, %v3694
  %v3701 = vld [vmem:[#allocation6] sm:$0xff]
  %v3702 = vld [vmem:[#allocation6 + $0x8] sm:$0xff]
  %v3703 = vld [vmem:[#allocation6 + $0x30] sm:$0xff]
  %v3704 = vld [vmem:[#allocation6 + $0x38] sm:$0xff]
  %v3705 = vld [vmem:[#allocation6 + $0x60] sm:$0xff]
  %v3706 = vld [vmem:[#allocation6 + $0x68] sm:$0xff]
  %v3707 = vld [vmem:[#allocation6 + $0x90] sm:$0xff]
  %v3708 = vld [vmem:[#allocation6 + $0x98] sm:$0xff]
  %v3709 = vld [vmem:[#allocation6 + $0xc0] sm:$0xff]
  %v3710 = vld [vmem:[#allocation6 + $0xc8] sm:$0xff]
  %v3711 = vld [vmem:[#allocation6 + $0xf0] sm:$0xff]
  %v3712 = vld [vmem:[#allocation6 + $0xf8] sm:$0xff]
  %v3713 = vld [vmem:[#allocation6 + $0x120] sm:$0xff]
  %v3714 = vld [vmem:[#allocation6 + $0x128] sm:$0xff]
  %v3715 = vld [vmem:[#allocation6 + $0x150] sm:$0xff]
  %v3716 = vld [vmem:[#allocation6 + $0x158] sm:$0xff]
  %v3717 = vld [vmem:[#allocation6 + $0x180] sm:$0xff]
  %v3718 = vld [vmem:[#allocation6 + $0x188] sm:$0xff]
  %3720 = vset.pattern.permute.xlu0 0
  %3721 = vperm.xlu0 %3720, %v3565
  %v3722 = vpop.permute.xlu0 %3721
  %3725 = vset.pattern.permute.xlu0 0
  %3726 = vperm.xlu0 %3725, %v3566
  %v3727 = vpop.permute.xlu0 %3726
  %v3731 = vunpack.c.l.b16 %v3563
  %v3732 = vunpack.c.h.b16 %v3563
  %v3733 = vunpack.c.l.b16 %v3564
  %v3734 = vunpack.c.h.b16 %v3564
  %v3735 = vpack.c.b16 %v3733, %v3731
  %v3736 = vpack.c.b16 %v3734, %v3732
  %v3739 = vsel %vm658, %v3736, 0
  %3741 = vmatprep.subr.bf16.mxu0 %v3702
  %3742 = vmatpush1.bf16.msra.mxu0 %v3701
  %3743 = vmatprep.subr.bf16.mxu0 %v3704
  %3744 = vmatpush1.bf16.msra.mxu0 %v3703
  %3745 = vmatprep.subr.bf16.mxu0 %v3706
  %3746 = vmatpush1.bf16.msra.mxu0 %v3705
  %3747 = vmatprep.subr.bf16.mxu0 %v3708
  %3748 = vmatpush1.bf16.msra.mxu0 %v3707
  %3749 = vmatprep.subr.bf16.mxu0 %v3710
  %3750 = vmatpush1.bf16.msra.mxu0 %v3709
  %3751 = vmatprep.subr.bf16.mxu0 %v3712
  %3752 = vmatpush1.bf16.msra.mxu0 %v3711
  %3753 = vmatprep.subr.bf16.mxu0 %v3714
  %3754 = vmatpush1.bf16.msra.mxu0 %v3713
  %3755 = vmatprep.subr.bf16.mxu0 %v3716
  %3756 = vmatpush1.bf16.msra.mxu0 %v3715
  %3757 = vmatprep.subr.bf16.mxu0 %v3718
  %3758 = vmatpush1.bf16.msra.mxu0 %v3717
  %3759 = vmatprep.subr.bf16.mxu0 0
  %3760 = vmatpush1.bf16.msra.mxu0 0
  %3761 = vmatprep.subr.bf16.mxu0 0
  %3762 = vmatpush1.bf16.msra.mxu0 0
  %3763 = vmatprep.subr.bf16.mxu0 0
  %3764 = vmatpush1.bf16.msra.mxu0 0
  %3765 = vmatprep.subr.bf16.mxu0 0
  %3766 = vmatpush1.bf16.msra.mxu0 0
  %3767 = vmatprep.subr.bf16.mxu0 0
  %3768 = vmatpush1.bf16.msra.mxu0 0
  %3769 = vmatprep.subr.bf16.mxu0 0
  %3770 = vmatpush1.bf16.msra.mxu0 0
  %3771 = vmatprep.subr.bf16.mxu0 0
  %3772 = vmatpush1.bf16.msra.mxu0 0
  %3773 = vmatprep.mubr.bf16.mxu0 %v3739
  %3774 = vmatmul.mubr.bf16.gmra.mrb[0].mxu0 %v3735
  %v3775 = vpop.f32.mrb[0].mxu0
  %v3776 = vadd.f32 %v3722, %v3775
  %v3777 = vpop.f32.mrb[0].mxu0
  %v3778 = vadd.f32 %v3722, %v3777
  %v3779 = vpop.f32.mrb[0].mxu0
  %v3780 = vadd.f32 %v3727, %v3779
  %v3781 = vpop.f32.mrb[0].mxu0
  %v3782 = vadd.f32 %v3727, %v3781
  %3783 = vdwg.mxu0
  %v3784 = vadd.f32 %v3776, %v3559
  %v3785 = vadd.f32 %v3778, %v3560
  %v3786 = vadd.f32 %v3780, %v3561
  %v3787 = vadd.f32 %v3782, %v3562
  %v3788 = vld [vmem:[%s2] sm:$0x3]
  %v3790 = vlaneseq
  %v3791 = vshrl.u32 %v3790, 7
  %v3792 = vsub.s32 0, %v3791
  %v3793 = vrot.slane %v3788, %v3792
  %v3794 = vlaneseq
  %v3795 = vshrl.u32 %v3794, 7
  %v3796 = vsub.s32 1, %v3795
  %v3797 = vrot.slane %v3788, %v3796
  %v3800 = vmul.f32 %v3784, %v3793
  %v3801 = vmul.f32 %v3785, %v3797
  %v3802 = vmul.f32 %v3786, %v3793
  %v3803 = vmul.f32 %v3787, %v3797
  %v3804 = vmax.f32 %v3800, 0.0
  %v3805 = vmax.f32 %v3801, 0.0
  %v3806 = vmax.f32 %v3802, 0.0
  %v3807 = vmax.f32 %v3803, 0.0
  %v3808 = vpack.c.bf16 %v3806, %v3804
  %v3809 = vpack.c.bf16 %v3807, %v3805
  %3810 = vst [vmem:[#allocation4 + $0x8] sm:$0xff] %v3808
  %3811 = vst.msk [vmem:[#allocation4 + $0x10] sm:$0xff] %vm44, %v3809
  %v3812 = vld [vmem:[#allocation4 + $0x8] sm:$0xff]
  %v3813 = vld [vmem:[#allocation4 + $0x10] sm:$0xff]
  %v3814 = vld [vmem:[%s6] sm:$0xf]
  %v3815 = vld [vmem:[%s6 + $0x4] sm:$0xf]
  %v3816 = vld [vmem:[%s6 + $0x8] sm:$0xf]
  %v3817 = vld [vmem:[%s6 + $0xc] sm:$0xf]
  %v3818 = vld [vmem:[%s6 + $0x10] sm:$0xf]
  %v3819 = vld [vmem:[%s6 + $0x14] sm:$0xf]
  %v3820 = vld [vmem:[%s6 + $0x18] sm:$0xf]
  %v3821 = vld [vmem:[%s6 + $0x1c] sm:$0xf]
  %v3822 = vld [vmem:[%s6 + $0x20] sm:$0xf]
  %v3823 = vld [vmem:[%s6 + $0x24] sm:$0xf]
  %v3824 = vld [vmem:[%s6 + $0x28] sm:$0xf]
  %v3825 = vld [vmem:[%s6 + $0x2c] sm:$0xf]
  %v3826 = vld [vmem:[%s6 + $0x30] sm:$0xf]
  %v3827 = vld [vmem:[%s6 + $0x34] sm:$0xf]
  %v3828 = vld [vmem:[%s6 + $0x38] sm:$0xf]
  %v3829 = vld [vmem:[%s6 + $0x3c] sm:$0xf]
  %v3830 = vld [vmem:[%s6 + $0x40] sm:$0xf]
  %v3831 = vld [vmem:[%s6 + $0x44] sm:$0xf]
  %v3832 = vld [vmem:[%s6 + $0x48] sm:$0xf]
  %v3833 = vld [vmem:[%s6 + $0x4c] sm:$0xf]
  %v3834 = vld [vmem:[%s6 + $0x50] sm:$0xf]
  %v3835 = vld [vmem:[%s6 + $0x54] sm:$0xf]
  %v3836 = vld [vmem:[%s6 + $0x58] sm:$0xf]
  %v3837 = vld [vmem:[%s6 + $0x5c] sm:$0xf]
  %v3838 = vld [vmem:[%s6 + $0x60] sm:$0xf]
  %v3864 = vunpack.c.l.b16 %v3814
  %v3865 = vunpack.c.l.b16 %v3815
  %v3866 = vunpack.c.l.b16 %v3816
  %v3867 = vunpack.c.l.b16 %v3817
  %v3868 = vunpack.c.l.b16 %v3818
  %v3869 = vunpack.c.l.b16 %v3819
  %v3870 = vunpack.c.l.b16 %v3820
  %v3871 = vunpack.c.l.b16 %v3821
  %v3872 = vunpack.c.l.b16 %v3822
  %v3873 = vunpack.c.l.b16 %v3823
  %v3874 = vunpack.c.l.b16 %v3824
  %v3875 = vunpack.c.l.b16 %v3825
  %v3876 = vunpack.c.l.b16 %v3826
  %v3877 = vunpack.c.l.b16 %v3827
  %v3878 = vunpack.c.l.b16 %v3828
  %v3879 = vunpack.c.l.b16 %v3829
  %v3880 = vunpack.c.l.b16 %v3830
  %v3881 = vunpack.c.l.b16 %v3831
  %v3882 = vunpack.c.l.b16 %v3832
  %v3883 = vunpack.c.l.b16 %v3833
  %v3884 = vunpack.c.l.b16 %v3834
  %v3885 = vunpack.c.l.b16 %v3835
  %v3886 = vunpack.c.l.b16 %v3836
  %v3887 = vunpack.c.l.b16 %v3837
  %v3888 = vunpack.c.l.b16 %v3838
  %v3889 = vpack.c.b16 %v3865, %v3864
  %v3890 = vpack.c.b16 %v3867, %v3866
  %v3891 = vpack.c.b16 %v3869, %v3868
  %v3892 = vpack.c.b16 %v3871, %v3870
  %v3893 = vpack.c.b16 %v3873, %v3872
  %v3894 = vpack.c.b16 %v3875, %v3874
  %v3895 = vpack.c.b16 %v3877, %v3876
  %v3896 = vpack.c.b16 %v3879, %v3878
  %v3897 = vpack.c.b16 %v3881, %v3880
  %v3898 = vpack.c.b16 %v3883, %v3882
  %v3899 = vpack.c.b16 %v3885, %v3884
  %v3900 = vpack.c.b16 %v3887, %v3886
  %v3901 = vpack.c.b16 %v3888, %v3888
  %v3915 = vsel %vm44, %v3813, 0
  %v3918 = vsel %vm3182, %v3901, 0
  %3920 = vmatprep.subr.bf16.mxu0 0
  %3921 = vmatpush1.bf16.msra.mxu0 %v3889
  %3922 = vmatprep.subr.bf16.mxu0 0
  %3923 = vmatpush1.bf16.msra.mxu0 %v3890
  %3924 = vmatprep.subr.bf16.mxu0 0
  %3925 = vmatpush1.bf16.msra.mxu0 %v3891
  %3926 = vmatprep.subr.bf16.mxu0 0
  %3927 = vmatpush1.bf16.msra.mxu0 %v3892
  %3928 = vmatprep.subr.bf16.mxu0 0
  %3929 = vmatpush1.bf16.msra.mxu0 %v3893
  %3930 = vmatprep.subr.bf16.mxu0 0
  %3931 = vmatpush1.bf16.msra.mxu0 %v3894
  %3932 = vmatprep.subr.bf16.mxu0 0
  %3933 = vmatpush1.bf16.msra.mxu0 %v3895
  %3934 = vmatprep.subr.bf16.mxu0 0
  %3935 = vmatpush1.bf16.msra.mxu0 %v3896
  %3936 = vmatprep.subr.bf16.mxu0 0
  %3937 = vmatpush1.bf16.msra.mxu0 %v3897
  %3938 = vmatprep.subr.bf16.mxu0 0
  %3939 = vmatpush1.bf16.msra.mxu0 %v3898
  %3940 = vmatprep.subr.bf16.mxu0 0
  %3941 = vmatpush1.bf16.msra.mxu0 %v3899
  %3942 = vmatprep.subr.bf16.mxu0 0
  %3943 = vmatpush1.bf16.msra.mxu0 %v3900
  %3944 = vmatprep.subr.bf16.mxu0 0
  %3945 = vmatpush1.bf16.msra.mxu0 %v3918
  %3946 = vmatprep.subr.bf16.mxu0 0
  %3947 = vmatpush1.bf16.msra.mxu0 0
  %3948 = vmatprep.subr.bf16.mxu0 0
  %3949 = vmatpush1.bf16.msra.mxu0 0
  %3950 = vmatprep.subr.bf16.mxu0 0
  %3951 = vmatpush1.bf16.msra.mxu0 0
  %3952 = vmatprep.mubr.bf16.mxu0 %v3915
  %3953 = vmatmul.mubr.bf16.gmra.mrb[0].mxu0 %v3812
  %v3954 = vpop.f32.mrb[0].mxu0
  %v3955 = vadd.f32 0.0, %v3954
  %v3956 = vpop.f32.mrb[0].mxu0
  %v3957 = vpop.f32.mrb[0].mxu0
  %v3958 = vadd.f32 0.0, %v3957
  %v3959 = vpop.f32.mrb[0].mxu0
  %3960 = vdwg.mxu0
  %v3961 = vld [vmem:[%s7] sm:$0xff]
  %v3962 = vld [vmem:[%s7 + $0x8] sm:$0x3]
  %v3963 = vld [vmem:[%s8] sm:$0xff]
  %v3964 = vld [vmem:[%s8 + $0x8] sm:$0x3]
  %3966 = vset.pattern.permute.xlu0 0
  %3967 = vperm.xlu0 %3966, %v3963
  %v3968 = vpop.permute.xlu0 %3967
  %3971 = vset.pattern.permute.xlu0 0
  %3972 = vperm.xlu0 %3971, %v3964
  %v3973 = vpop.permute.xlu0 %3972
  %v3976 = vsel %vm658, %v3961, 0
  %v3979 = vsel %vm658, %v3962, 0
  %3981 = vmatprep.subr.mxu0 0.0
  %3982 = vmatpush1.msra.mxu0 %v3955
  %3983 = vmatprep.subr.mxu0 0.0
  %3984 = vmatpush1.msra.mxu0 %v3958
  %3985 = vmatprep.subr.mxu0 0.0
  %3986 = vmatpush1.msra.mxu0 0.0
  %3987 = vmatprep.subr.mxu0 0.0
  %3988 = vmatpush1.msra.mxu0 0.0
  %3989 = vmatprep.subr.mxu0 0.0
  %3990 = vmatpush1.msra.mxu0 0.0
  %3991 = vmatprep.subr.mxu0 0.0
  %3992 = vmatpush1.msra.mxu0 0.0
  %3993 = vmatprep.subr.mxu0 0.0
  %3994 = vmatpush1.msra.mxu0 0.0
  %3995 = vmatprep.subr.mxu0 0.0
  %3996 = vmatpush1.msra.mxu0 0.0
  %3997 = vmatprep.subr.mxu0 0.0
  %3998 = vmatpush1.msra.mxu0 0.0
  %3999 = vmatprep.subr.mxu0 0.0
  %4000 = vmatpush1.msra.mxu0 0.0
  %4001 = vmatprep.subr.mxu0 0.0
  %4002 = vmatpush1.msra.mxu0 0.0
  %4003 = vmatprep.subr.mxu0 0.0
  %4004 = vmatpush1.msra.mxu0 0.0
  %4005 = vmatprep.subr.mxu0 0.0
  %4006 = vmatpush1.msra.mxu0 0.0
  %4007 = vmatprep.subr.mxu0 0.0
  %4008 = vmatpush1.msra.mxu0 0.0
  %4009 = vmatprep.subr.mxu0 0.0
  %4010 = vmatpush1.msra.mxu0 0.0
  %4011 = vmatprep.subr.mxu0 0.0
  %4012 = vmatpush1.msra.mxu0 0.0
  %4013 = vmatprep.subr.mxu0 0.0
  %4014 = vmatpush1.msra.mxu0 0.0
  %4015 = vmatprep.subr.mxu0 0.0
  %4016 = vmatpush1.msra.mxu0 0.0
  %4017 = vmatprep.subr.mxu0 0.0
  %4018 = vmatpush1.msra.mxu0 0.0
  %4019 = vmatprep.subr.mxu0 0.0
  %4020 = vmatpush1.msra.mxu0 0.0
  %4021 = vmatprep.subr.mxu0 0.0
  %4022 = vmatpush1.msra.mxu0 0.0
  %4023 = vmatprep.subr.mxu0 0.0
  %4024 = vmatpush1.msra.mxu0 0.0
  %4025 = vmatprep.subr.mxu0 0.0
  %4026 = vmatpush1.msra.mxu0 0.0
  %4027 = vmatprep.subr.mxu0 0.0
  %4028 = vmatpush1.msra.mxu0 0.0
  %4029 = vmatprep.subr.mxu0 0.0
  %4030 = vmatpush1.msra.mxu0 0.0
  %4031 = vmatprep.subr.mxu0 0.0
  %4032 = vmatpush1.msra.mxu0 0.0
  %4033 = vmatprep.subr.mxu0 0.0
  %4034 = vmatpush1.msra.mxu0 0.0
  %4035 = vmatprep.subr.mxu0 0.0
  %4036 = vmatpush1.msra.mxu0 0.0
  %4037 = vmatprep.subr.mxu0 0.0
  %4038 = vmatpush1.msra.mxu0 0.0
  %4039 = vmatprep.subr.mxu0 0.0
  %4040 = vmatpush1.msra.mxu0 0.0
  %4041 = vmatprep.subr.mxu0 0.0
  %4042 = vmatpush1.msra.mxu0 0.0
  %4043 = vmatprep.subr.mxu0 0.0
  %4044 = vmatpush1.msra.mxu0 0.0
  %4045 = vmatprep.mubr.f32.mxu0 0.0
  %4046 = vmatmul.mubr.f32.gmra.mrb[0].mxu0 %v3976
  %v4047 = vpop.f32.mrb[0].mxu0
  %v4048 = vadd.f32 %v3968, %v4047
  %v4049 = vpop.f32.mrb[0].mxu0
  %4050 = vmatprep.mubr.f32.mxu0 0.0
  %4051 = vmatmul.mubr.f32.gmra.mrb[0].mxu0 %v3979
  %v4052 = vpop.f32.mrb[0].mxu0
  %v4053 = vadd.f32 %v3973, %v4052
  %v4054 = vpop.f32.mrb[0].mxu0
  %4055 = vdwg.mxu0
  %vm4056 = vcmask 15360
  %4057 = vst.msk [vmem:[%s9] sm:$0xff] %vm4056, %v4048
  %vm4058 = vcmask 9216
  %4059 = vst.msk [vmem:[%s9 + $0x8] sm:$0x3] %vm4058, %v4053
  // Predicated region
  $region38: #{forward.1} parent=0 // pred_check
    _
  $region39: #{forward.1} parent=0 // pred_check_branch
    %4061 = sbr.rel (0) target = $region41
  $region40: #{forward.1} parent=0 // pred_region
    _
  $region41: #{forward.1} parent=0 // pred_fallthru
    _
  // Predicated region
  $region42: #{forward.1} parent=0 // pred_check
    _
  $region43: #{forward.1} parent=0 // pred_check_branch
    %4063 = sbr.rel (0) target = $region45
  $region44: #{forward.1} parent=0 // pred_region
    _
  $region45: #{forward.1} parent=0 // pred_fallthru
    _

</llo_original>
